<compile_context>
chip_gen: v7x
topology: tpu7x:2x2x1
jax: 0.10.0
libtpu: 0.0.40
codegen_flags: <defaults>
</compile_context>

<pallas_src>
import jax
import jax.numpy as jnp
from jax.experimental import pallas as pl
from jax.experimental.pallas import tpu as pltpu

HIGHEST = jax.lax.Precision.HIGHEST


# ---------------- fused Pallas kernel (entire forward pass) ----------------

def fused_one_gnn_kernel(g_ref, xp_ref, dis_ref, idx_ref, wg_ref, wh_ref,
                         out_ref):
    n = g_ref.shape[0]                      # nodes
    hf = wg_ref.shape[0] - 1                # H*F (last row of wg is the bias)
    he = wg_ref.shape[1]                    # H*E
    m2 = idx_ref.shape[0]                   # 2*M (origins then destinations)
    m = m2 // 2

    # ---- GCN for all 24 hours at once (hours packed into the lane axis) ----
    w_big = wg_ref[0:hf, :]                                              # [H*F, H*E]
    b_big = wg_ref[hf:hf + 1, :]                                         # [1,   H*E]
    xw = jnp.dot(xp_ref[...], w_big,
                 preferred_element_type=jnp.float32, precision=HIGHEST)  # [N, H*E]
    h_all = jax.nn.sigmoid(
        jnp.dot(g_ref[...], xw,
                preferred_element_type=jnp.float32, precision=HIGHEST)
        + b_big)                                                         # [N, H*E]

    # ---- single merged gather: one [2M,N] one-hot selector, one MXU issue ----
    targets = idx_ref[...]                                               # [2M, 1]
    lane_n = jax.lax.broadcasted_iota(jnp.int32, (m2, n), 1)             # [2M, N]
    sel = (lane_n == targets).astype(jnp.float32)                        # [2M, N]
    rhs = jnp.concatenate([h_all, dis_ref[...]], axis=1)                 # [N, H*E+N]
    gathered = jnp.dot(sel, rhs,
                       preferred_element_type=jnp.float32,
                       precision=HIGHEST)                                # [2M, H*E+N]

    o_all = gathered[0:m, 0:he]                                          # [M, H*E]
    d_all = gathered[m:m2, 0:he]                                         # [M, H*E]
    dis_rows = gathered[0:m, he:he + n]                                  # [M, N] = dis[o,:]
    sel_d = sel[m:m2, :]                                                 # [M, N]
    dis_pair = jnp.sum(dis_rows * sel_d, axis=1, keepdims=True)          # [M, 1]

    # ---- pairwise head as one matmul; dis scalar + bias are the last two
    #      rows of the packed head buffer; output written lane-dense [M, H] ----
    kk = wh_ref.shape[0] - 2                                             # 2*H*E
    w_head = wh_ref[0:kk, :]                                             # [2*H*E, H]
    tail = wh_ref[kk:kk + 2, :]                                          # [2, H]: w_dis, b_out
    od = jnp.concatenate([o_all, d_all], axis=1)                         # [M, 2*H*E]
    z = (jnp.dot(od, w_head,
                 preferred_element_type=jnp.float32, precision=HIGHEST)
         + dis_pair * tail[0:1, :] + tail[1:2, :])                       # [M, H]
    out_ref[...] = jnp.tanh(z)


# ---------------- one-time parameter packing (hoisted out of forward) ----------------

def pack_params(params, hours):
    """Build the packed weight buffers ONCE (parameter-load time)."""
    feat_dim, emb_dim = params["w_gnn"].shape
    eye_h = jnp.eye(hours, dtype=jnp.float32)

    # GCN weights: block-diagonal so all 24 hours run as one matmul, bias row appended.
    w_big = jnp.kron(eye_h, params["w_gnn"])                   # [H*F, H*E]
    b_big = jnp.tile(params["b_gnn"], (1, hours))              # [1,   H*E]
    wg_packed = jnp.concatenate([w_big, b_big], axis=0)        # [H*F+1, H*E]

    # Head weights: origin block stacked over destination block, then one row
    # holding the dis scalar and one row holding the output bias.
    w1_big = jnp.kron(eye_h, params["w_out"][:emb_dim])        # [H*E, H]
    w2_big = jnp.kron(eye_h, params["w_out"][emb_dim:2 * emb_dim])
    w_dis_row = jnp.broadcast_to(params["w_out"][2 * emb_dim], (1, hours))
    b_row = jnp.broadcast_to(params["b_out"][0], (1, hours))
    wh_packed = jnp.concatenate([w1_big, w2_big, w_dis_row, b_row], axis=0)

    return wg_packed.astype(jnp.float32), wh_packed.astype(jnp.float32)


# ---------------- per-call wrapper (only layout of per-call data + pallas_call) ----------------

def one_gnn_forward(g, x, dis, train_idx, wg_packed, wh_packed):
    H, N, F = x.shape
    M = train_idx.shape[1]

    # Per-call plumbing only: pack hour axis into lanes; flatten idx to a
    # [2M,1] column (origins then destinations) for the one-hot selector.
    xp = jnp.transpose(x, (1, 0, 2)).reshape(N, H * F)          # [N, H*F]
    idx_col = train_idx.reshape(2 * M, 1).astype(jnp.int32)     # [2M, 1]

    vmem = pl.BlockSpec(memory_space=pltpu.MemorySpace.VMEM)
    return pl.pallas_call(
        fused_one_gnn_kernel,
        out_shape=jax.ShapeDtypeStruct((M, H), jnp.float32),
        in_specs=[vmem, vmem, vmem, vmem, vmem, vmem],
        out_specs=vmem,
        compiler_params=pltpu.CompilerParams(vmem_limit_bytes=2 * 1024 * 1024),
    )(g, xp, dis, idx_col, wg_packed, wh_packed)


# ---------------- pure-JAX reference (for a sanity check) ----------------

def one_gnn_reference(g, x, dis, train_idx, params):
    h = jax.nn.sigmoid(
        jnp.einsum("nk,hkf,fe->hne", g, x, params["w_gnn"], precision="highest")
        + params["b_gnn"])
    o = h[:, train_idx[0], :]
    d = h[:, train_idx[1], :]
    H, M = x.shape[0], train_idx.shape[1]
    dd = jnp.broadcast_to(dis[train_idx[0], train_idx[1]][None, :, None], (H, M, 1))
    emb = jnp.concatenate([o, d, dd], axis=-1)
    pre = jnp.tanh(
        jnp.einsum("hmc,co->hmo", emb, params["w_out"], precision="highest")
        + params["b_out"])
    return jnp.transpose(pre[:, :, 0], (1, 0))


# ---------------- deterministic setup & run ----------------

def make_params(key, feat_dim, emb_dim):
    k1, k2, k3, k4 = jax.random.split(key, 4)
    return {
        "w_gnn": 0.1 * jax.random.normal(k1, (feat_dim, emb_dim), jnp.float32),
        "b_gnn": 0.1 * jax.random.normal(k2, (1, emb_dim), jnp.float32),
        "w_out": 0.1 * jax.random.normal(k3, (2 * emb_dim + 1, 1), jnp.float32),
        "b_out": 0.1 * jax.random.normal(k4, (1, 1), jnp.float32),
    }


if __name__ == "__main__":
    H, N, F, E, M = 24, 16, 8, 8, 8   # hours, nodes, feat dim, node_embsize, train pairs

    key = jax.random.PRNGKey(0)
    kp, kx, ka, kd, ki = jax.random.split(key, 5)

    params = make_params(kp, F, E)

    # node features per hour
    x = jax.random.normal(kx, (H, N, F), jnp.float32)

    # dense normalized adjacency with self loops: A_hat = D^-1/2 (A + I) D^-1/2
    a = (jax.random.uniform(ka, (N, N)) > 0.7).astype(jnp.float32)
    a = jnp.maximum(a, a.T) + jnp.eye(N, dtype=jnp.float32)
    deg = jnp.sum(a, axis=1)
    dinv = 1.0 / jnp.sqrt(deg)
    g = dinv[:, None] * a * dinv[None, :]

    # pairwise distances and origin/destination training indices
    dis = jax.random.uniform(kd, (N, N), jnp.float32)
    train_idx = jax.random.randint(ki, (2, M), 0, N, dtype=jnp.int32)

    # one-time parameter packing (NOT in the per-call path)
    wg_packed, wh_packed = pack_params(params, H)
    wg_packed = jax.block_until_ready(wg_packed)
    wh_packed = jax.block_until_ready(wh_packed)

    fwd = jax.jit(one_gnn_forward)
    pres = fwd(g, x, dis, train_idx, wg_packed, wh_packed)
    pres = jax.block_until_ready(pres)

    assert pres.shape == (M, H), pres.shape
    assert bool(jnp.all(jnp.isfinite(pres)))

    ref = one_gnn_reference(g, x, dis, train_idx, params)
    assert bool(jnp.allclose(pres, ref, atol=1e-3, rtol=1e-3)), "mismatch vs JAX reference"

    print("KERNEL_OK")
</pallas_src>

<mosaic_0001>
module attributes {stable_mosaic.version = 11 : i64} {
  func.func @fused_one_gnn_kernel(%arg0: memref<16x16xf32, #tpu.memory_space<vmem>>, %arg1: memref<16x192xf32, #tpu.memory_space<vmem>>, %arg2: memref<16x16xf32, #tpu.memory_space<vmem>>, %arg3: memref<16x1xi32, #tpu.memory_space<vmem>>, %arg4: memref<193x192xf32, #tpu.memory_space<vmem>>, %arg5: memref<386x24xf32, #tpu.memory_space<vmem>>, %arg6: memref<8x24xf32, #tpu.memory_space<vmem>>) attributes {dimension_semantics = [], scalar_prefetch = 0 : i64, scratch_operands = 0 : i64, tpu.core_type = #tpu.core_type<tc>} {
    %c0 = arith.constant 0 : index
    %c0_0 = arith.constant 0 : index
    %0 = vector.load %arg4[%c0, %c0_0] : memref<193x192xf32, #tpu.memory_space<vmem>>, vector<192x192xf32>
    %c192 = arith.constant 192 : index
    %c0_1 = arith.constant 0 : index
    %1 = vector.load %arg4[%c192, %c0_1] : memref<193x192xf32, #tpu.memory_space<vmem>>, vector<1x192xf32>
    %c0_2 = arith.constant 0 : index
    %c0_3 = arith.constant 0 : index
    %2 = vector.load %arg1[%c0_2, %c0_3] : memref<16x192xf32, #tpu.memory_space<vmem>>, vector<16x192xf32>
    %cst = arith.constant dense<0.000000e+00> : vector<16x192xf32>
    %3 = tpu.matmul %2, %0, %cst {dimension_numbers = #tpu.dot_dimension_numbers<[1], [0], [0], [1], [0, 0, 1, 1], [], []>, precision = #tpu.contract_precision<fp32>} : vector<16x192xf32>, vector<192x192xf32>, vector<16x192xf32> -> vector<16x192xf32>
    %c0_4 = arith.constant 0 : index
    %c0_5 = arith.constant 0 : index
    %4 = vector.load %arg0[%c0_4, %c0_5] : memref<16x16xf32, #tpu.memory_space<vmem>>, vector<16x16xf32>
    %cst_6 = arith.constant dense<0.000000e+00> : vector<16x192xf32>
    %5 = tpu.matmul %4, %3, %cst_6 {dimension_numbers = #tpu.dot_dimension_numbers<[1], [0], [0], [1], [0, 0, 1, 1], [], []>, precision = #tpu.contract_precision<fp32>} : vector<16x16xf32>, vector<16x192xf32>, vector<16x192xf32> -> vector<16x192xf32>
    %6 = vector.broadcast %1 : vector<1x192xf32> to vector<16x192xf32>
    %7 = arith.addf %5, %6 : vector<16x192xf32>
    %8 = arith.negf %7 : vector<16x192xf32>
    %9 = math.exp %8 : vector<16x192xf32>
    %cst_7 = arith.constant 1.000000e+00 : f32
    %10 = vector.broadcast %cst_7 : f32 to vector<16x192xf32>
    %11 = arith.addf %10, %9 : vector<16x192xf32>
    %12 = arith.divf %10, %11 : vector<16x192xf32>
    %c0_8 = arith.constant 0 : index
    %c0_9 = arith.constant 0 : index
    %13 = vector.load %arg3[%c0_8, %c0_9] : memref<16x1xi32, #tpu.memory_space<vmem>>, vector<16x1xi32>
    %14 = tpu.iota {dimensions = array<i32: 1>} : vector<16x16xi32>
    %15 = vector.broadcast %13 : vector<16x1xi32> to vector<16x16xi32>
    %16 = arith.cmpi eq, %14, %15 : vector<16x16xi32>
    %17 = arith.extui %16 : vector<16x16xi1> to vector<16x16xi32>
    %18 = arith.sitofp %17 : vector<16x16xi32> to vector<16x16xf32>
    %c0_10 = arith.constant 0 : index
    %c0_11 = arith.constant 0 : index
    %19 = vector.load %arg2[%c0_10, %c0_11] : memref<16x16xf32, #tpu.memory_space<vmem>>, vector<16x16xf32>
    %20 = tpu.concatenate %12, %19 in 1 : vector<16x192xf32>, vector<16x16xf32> -> vector<16x208xf32>
    %cst_12 = arith.constant dense<0.000000e+00> : vector<16x208xf32>
    %21 = tpu.matmul %18, %20, %cst_12 {dimension_numbers = #tpu.dot_dimension_numbers<[1], [0], [0], [1], [0, 0, 1, 1], [], []>, precision = #tpu.contract_precision<fp32>} : vector<16x16xf32>, vector<16x208xf32>, vector<16x208xf32> -> vector<16x208xf32>
    %22 = vector.extract_strided_slice %21 {offsets = [0, 0], sizes = [8, 192], strides = [1, 1]} : vector<16x208xf32> to vector<8x192xf32>
    %23 = vector.extract_strided_slice %21 {offsets = [8, 0], sizes = [8, 192], strides = [1, 1]} : vector<16x208xf32> to vector<8x192xf32>
    %24 = vector.extract_strided_slice %21 {offsets = [0, 192], sizes = [8, 16], strides = [1, 1]} : vector<16x208xf32> to vector<8x16xf32>
    %25 = vector.extract_strided_slice %18 {offsets = [8, 0], sizes = [8, 16], strides = [1, 1]} : vector<16x16xf32> to vector<8x16xf32>
    %26 = arith.mulf %24, %25 : vector<8x16xf32>
    %cst_13 = arith.constant dense<0.000000e+00> : vector<8xf32>
    %27 = vector.multi_reduction <add>, %26, %cst_13 [1] : vector<8x16xf32> to vector<8xf32>
    %28 = vector.shape_cast %27 : vector<8xf32> to vector<8x1xf32>
    %c0_14 = arith.constant 0 : index
    %c0_15 = arith.constant 0 : index
    %29 = vector.load %arg5[%c0_14, %c0_15] : memref<386x24xf32, #tpu.memory_space<vmem>>, vector<384x24xf32>
    %c384 = arith.constant 384 : index
    %c0_16 = arith.constant 0 : index
    %30 = vector.load %arg5[%c384, %c0_16] : memref<386x24xf32, #tpu.memory_space<vmem>>, vector<2x24xf32>
    %31 = tpu.concatenate %22, %23 in 1 : vector<8x192xf32>, vector<8x192xf32> -> vector<8x384xf32>
    %cst_17 = arith.constant dense<0.000000e+00> : vector<8x24xf32>
    %32 = tpu.matmul %31, %29, %cst_17 {dimension_numbers = #tpu.dot_dimension_numbers<[1], [0], [0], [1], [0, 0, 1, 1], [], []>, precision = #tpu.contract_precision<fp32>} : vector<8x384xf32>, vector<384x24xf32>, vector<8x24xf32> -> vector<8x24xf32>
    %33 = vector.extract_strided_slice %30 {offsets = [0, 0], sizes = [1, 24], strides = [1, 1]} : vector<2x24xf32> to vector<1x24xf32>
    %34 = vector.broadcast %28 : vector<8x1xf32> to vector<8x24xf32>
    %35 = vector.broadcast %33 : vector<1x24xf32> to vector<8x24xf32>
    %36 = arith.mulf %34, %35 : vector<8x24xf32>
    %37 = arith.addf %32, %36 : vector<8x24xf32>
    %38 = vector.extract_strided_slice %30 {offsets = [1, 0], sizes = [1, 24], strides = [1, 1]} : vector<2x24xf32> to vector<1x24xf32>
    %39 = vector.broadcast %38 : vector<1x24xf32> to vector<8x24xf32>
    %40 = arith.addf %37, %39 : vector<8x24xf32>
    %41 = math.tanh %40 : vector<8x24xf32>
    %c0_18 = arith.constant 0 : index
    %c0_19 = arith.constant 0 : index
    %42 = vector.load %arg6[%c0_18, %c0_19] : memref<8x24xf32, #tpu.memory_space<vmem>>, vector<8x24xf32>
    tpu.vector_store %arg6[%c0_18, %c0_19], %41 {strides = array<i32>} : memref<8x24xf32, #tpu.memory_space<vmem>>, vector<8x24xf32>,
    return
  }
}

</mosaic_0001>

<llo_original>
// kernel: one_gnn_forward.1
$region0: #{one_gnn_forward.1}
  #allocation0 [shape = 'u32[]', space=smem, size = 0x4, offset = 0x4, fixed_abs, tag = 'smem constant byte address 0x4 - core index']
  #allocation1 [shape = 'u32[144,128]{1,0:T(1,128)}', space=vmem, size = 0x12000, scoped, tag = 'internal scratch']
  %s0 = inlined_call_operand.vmem [shape: f32[16,16], index: 0, kind: input, shape index: {}]
  %s1 = inlined_call_operand.vmem [shape: f32[16,192], index: 1, kind: input, shape index: {}]
  %s2 = inlined_call_operand.vmem [shape: f32[16,16], index: 2, kind: input, shape index: {}]
  %s3 = inlined_call_operand.vmem [shape: s32[16,1], index: 3, kind: input, shape index: {}]
  %s4 = inlined_call_operand.vmem [shape: f32[193,192], index: 4, kind: input, shape index: {}]
  %s5 = inlined_call_operand.vmem [shape: f32[386,24], index: 5, kind: input, shape index: {}]
  %s6 = inlined_call_operand.hbm [shape: f32[8,24], index: 6, kind: output, shape index: {}]
  %s7 = sld [smem:[#allocation0]]
  $region34: #{one_gnn_forward.1} parent=0
    _
  %s9 = ssub.s32 1, %s7
  %s10 = scalar_select 0, %s9, %s7
  $region1: #{one_gnn_forward.1} parent=0
    #allocation2 [shape = 'u8[4096]{0}', space=vmem, size = 0x1000, scoped, tag = 'output window, operand 0, single buffered']
    #allocation3 [shape = 's32[1]{0}', space=sflag, size = 0x4, scoped, tag = 'scoped memory for one_gnn_forward.1']
    %11 = vsyncpa [#allocation3], 0
    // Predicated region
    $region2: #{one_gnn_forward.1} parent=1 // pred_check
      _
    $region3: #{one_gnn_forward.1} parent=1 // pred_check_branch
      %13 = sbr.rel (0) target = $region5
    $region4: #{one_gnn_forward.1} parent=1 // pred_region
      _
    $region5: #{one_gnn_forward.1} parent=1 // pred_fallthru
      _
    // Predicated region
    $region6: #{one_gnn_forward.1} parent=1 // pred_check
      _
    $region7: #{one_gnn_forward.1} parent=1 // pred_check_branch
      %15 = sbr.rel (0) target = $region9
    $region8: #{one_gnn_forward.1} parent=1 // pred_region
      _
    $region9: #{one_gnn_forward.1} parent=1 // pred_fallthru
      _
    // Predicated region
    $region10: #{one_gnn_forward.1} parent=1 // pred_check
      _
    $region11: #{one_gnn_forward.1} parent=1 // pred_check_branch
      %17 = sbr.rel (0) target = $region13
    $region12: #{one_gnn_forward.1} parent=1 // pred_region
      _
    $region13: #{one_gnn_forward.1} parent=1 // pred_fallthru
      _
    // Predicated region
    $region14: #{one_gnn_forward.1} parent=1 // pred_check
      _
    $region15: #{one_gnn_forward.1} parent=1 // pred_check_branch
      %19 = sbr.rel (0) target = $region17
    $region16: #{one_gnn_forward.1} parent=1 // pred_region
      _
    $region17: #{one_gnn_forward.1} parent=1 // pred_fallthru
      _
    // Predicated region
    $region18: #{one_gnn_forward.1} parent=1 // pred_check
      _
    $region19: #{one_gnn_forward.1} parent=1 // pred_check_branch
      %21 = sbr.rel (0) target = $region21
    $region20: #{one_gnn_forward.1} parent=1 // pred_region
      _
    $region21: #{one_gnn_forward.1} parent=1 // pred_fallthru
      _
    // Predicated region
    $region22: #{one_gnn_forward.1} parent=1 // pred_check
      _
    $region23: #{one_gnn_forward.1} parent=1 // pred_check_branch
      %23 = sbr.rel (0) target = $region25
    $region24: #{one_gnn_forward.1} parent=1 // pred_region
      _
    $region25: #{one_gnn_forward.1} parent=1 // pred_fallthru
      _
    %v24 = vld [vmem:[%s4] sm:$0xff]
    %v25 = vld [vmem:[%s4 + $0x8] sm:$0xff]
    %v26 = vld [vmem:[%s4 + $0x10] sm:$0xff]
    %v27 = vld [vmem:[%s4 + $0x18] sm:$0xff]
    %v28 = vld [vmem:[%s4 + $0x20] sm:$0xff]
    %v29 = vld [vmem:[%s4 + $0x28] sm:$0xff]
    %v30 = vld [vmem:[%s4 + $0x30] sm:$0xff]
    %v31 = vld [vmem:[%s4 + $0x38] sm:$0xff]
    %v32 = vld [vmem:[%s4 + $0x40] sm:$0xff]
    %v33 = vld [vmem:[%s4 + $0x48] sm:$0xff]
    %v34 = vld [vmem:[%s4 + $0x50] sm:$0xff]
    %v35 = vld [vmem:[%s4 + $0x58] sm:$0xff]
    %v36 = vld [vmem:[%s4 + $0x60] sm:$0xff]
    %v37 = vld [vmem:[%s4 + $0x68] sm:$0xff]
    %v38 = vld [vmem:[%s4 + $0x70] sm:$0xff]
    %v39 = vld [vmem:[%s4 + $0x78] sm:$0xff]
    %v40 = vld [vmem:[%s4 + $0x80] sm:$0xff]
    %v41 = vld [vmem:[%s4 + $0x88] sm:$0xff]
    %v42 = vld [vmem:[%s4 + $0x90] sm:$0xff]
    %v43 = vld [vmem:[%s4 + $0x98] sm:$0xff]
    %v44 = vld [vmem:[%s4 + $0xa0] sm:$0xff]
    %v45 = vld [vmem:[%s4 + $0xa8] sm:$0xff]
    %v46 = vld [vmem:[%s4 + $0xb0] sm:$0xff]
    %v47 = vld [vmem:[%s4 + $0xb8] sm:$0xff]
    %v48 = vld [vmem:[%s4 + $0xc0] sm:$0xff]
    %v49 = vld [vmem:[%s4 + $0xc8] sm:$0xff]
    %v50 = vld [vmem:[%s4 + $0xd0] sm:$0xff]
    %v51 = vld [vmem:[%s4 + $0xd8] sm:$0xff]
    %v52 = vld [vmem:[%s4 + $0xe0] sm:$0xff]
    %v53 = vld [vmem:[%s4 + $0xe8] sm:$0xff]
    %v54 = vld [vmem:[%s4 + $0xf0] sm:$0xff]
    %v55 = vld [vmem:[%s4 + $0xf8] sm:$0xff]
    %v56 = vld [vmem:[%s4 + $0x100] sm:$0xff]
    %v57 = vld [vmem:[%s4 + $0x108] sm:$0xff]
    %v58 = vld [vmem:[%s4 + $0x110] sm:$0xff]
    %v59 = vld [vmem:[%s4 + $0x118] sm:$0xff]
    %v60 = vld [vmem:[%s4 + $0x120] sm:$0xff]
    %v61 = vld [vmem:[%s4 + $0x128] sm:$0xff]
    %v62 = vld [vmem:[%s4 + $0x130] sm:$0xff]
    %v63 = vld [vmem:[%s4 + $0x138] sm:$0xff]
    %v64 = vld [vmem:[%s4 + $0x140] sm:$0xff]
    %v65 = vld [vmem:[%s4 + $0x148] sm:$0xff]
    %v66 = vld [vmem:[%s4 + $0x150] sm:$0xff]
    %v67 = vld [vmem:[%s4 + $0x158] sm:$0xff]
    %v68 = vld [vmem:[%s4 + $0x160] sm:$0xff]
    %v69 = vld [vmem:[%s4 + $0x168] sm:$0xff]
    %v70 = vld [vmem:[%s4 + $0x170] sm:$0xff]
    %v71 = vld [vmem:[%s4 + $0x178] sm:$0xff]
    %s72 = scalar_lea.vmem %s4, 384
    %v73 = vld [vmem:[%s72] ss:$8 sm:$0x3]
    %v74 = vld [vmem:[%s1] sm:$0xff]
    %v75 = vld [vmem:[%s1 + $0x8] sm:$0xff]
    %v76 = vld [vmem:[%s1 + $0x10] sm:$0xff]
    %v77 = vld [vmem:[%s1 + $0x18] sm:$0xff]
    %vm78 = vcmask 523264
    %v80 = vsel %vm78, %v75, 0
    %v83 = vsel %vm78, %v77, 0
    %v85 = vand.u32 %v25, 4294901760
    %86 = vmatprep.subr.mxu0 %v85
    %v87 = vand.u32 %v24, 4294901760
    %88 = vmatpush1.msra.mxu0 %v87
    %v89 = vand.u32 %v27, 4294901760
    %90 = vmatprep.subr.mxu0 %v89
    %v91 = vand.u32 %v26, 4294901760
    %92 = vmatpush1.msra.mxu0 %v91
    %v93 = vand.u32 %v29, 4294901760
    %94 = vmatprep.subr.mxu0 %v93
    %v95 = vand.u32 %v28, 4294901760
    %96 = vmatpush1.msra.mxu0 %v95
    %v97 = vand.u32 %v31, 4294901760
    %98 = vmatprep.subr.mxu0 %v97
    %v99 = vand.u32 %v30, 4294901760
    %100 = vmatpush1.msra.mxu0 %v99
    %v101 = vand.u32 %v33, 4294901760
    %102 = vmatprep.subr.mxu0 %v101
    %v103 = vand.u32 %v32, 4294901760
    %104 = vmatpush1.msra.mxu0 %v103
    %v105 = vand.u32 %v35, 4294901760
    %106 = vmatprep.subr.mxu0 %v105
    %v107 = vand.u32 %v34, 4294901760
    %108 = vmatpush1.msra.mxu0 %v107
    %v109 = vand.u32 %v37, 4294901760
    %110 = vmatprep.subr.mxu0 %v109
    %v111 = vand.u32 %v36, 4294901760
    %112 = vmatpush1.msra.mxu0 %v111
    %v113 = vand.u32 %v39, 4294901760
    %114 = vmatprep.subr.mxu0 %v113
    %v115 = vand.u32 %v38, 4294901760
    %116 = vmatpush1.msra.mxu0 %v115
    %v117 = vand.u32 %v41, 4294901760
    %118 = vmatprep.subr.mxu0 %v117
    %v119 = vand.u32 %v40, 4294901760
    %120 = vmatpush1.msra.mxu0 %v119
    %v121 = vand.u32 %v43, 4294901760
    %122 = vmatprep.subr.mxu0 %v121
    %v123 = vand.u32 %v42, 4294901760
    %124 = vmatpush1.msra.mxu0 %v123
    %v125 = vand.u32 %v45, 4294901760
    %126 = vmatprep.subr.mxu0 %v125
    %v127 = vand.u32 %v44, 4294901760
    %128 = vmatpush1.msra.mxu0 %v127
    %v129 = vand.u32 %v47, 4294901760
    %130 = vmatprep.subr.mxu0 %v129
    %v131 = vand.u32 %v46, 4294901760
    %132 = vmatpush1.msra.mxu0 %v131
    %v133 = vand.u32 %v49, 4294901760
    %134 = vmatprep.subr.mxu0 %v133
    %v135 = vand.u32 %v48, 4294901760
    %136 = vmatpush1.msra.mxu0 %v135
    %v137 = vand.u32 %v51, 4294901760
    %138 = vmatprep.subr.mxu0 %v137
    %v139 = vand.u32 %v50, 4294901760
    %140 = vmatpush1.msra.mxu0 %v139
    %v141 = vand.u32 %v53, 4294901760
    %142 = vmatprep.subr.mxu0 %v141
    %v143 = vand.u32 %v52, 4294901760
    %144 = vmatpush1.msra.mxu0 %v143
    %v145 = vand.u32 %v55, 4294901760
    %146 = vmatprep.subr.mxu0 %v145
    %v147 = vand.u32 %v54, 4294901760
    %148 = vmatpush1.msra.mxu0 %v147
    %v149 = vand.u32 %v57, 4294901760
    %150 = vmatprep.subr.mxu0 %v149
    %v151 = vand.u32 %v56, 4294901760
    %152 = vmatpush1.msra.mxu0 %v151
    %v153 = vand.u32 %v59, 4294901760
    %154 = vmatprep.subr.mxu0 %v153
    %v155 = vand.u32 %v58, 4294901760
    %156 = vmatpush1.msra.mxu0 %v155
    %v157 = vand.u32 %v61, 4294901760
    %158 = vmatprep.subr.mxu0 %v157
    %v159 = vand.u32 %v60, 4294901760
    %160 = vmatpush1.msra.mxu0 %v159
    %v161 = vand.u32 %v63, 4294901760
    %162 = vmatprep.subr.mxu0 %v161
    %v163 = vand.u32 %v62, 4294901760
    %164 = vmatpush1.msra.mxu0 %v163
    %v165 = vand.u32 %v65, 4294901760
    %166 = vmatprep.subr.mxu0 %v165
    %v167 = vand.u32 %v64, 4294901760
    %168 = vmatpush1.msra.mxu0 %v167
    %v169 = vand.u32 %v67, 4294901760
    %170 = vmatprep.subr.mxu0 %v169
    %v171 = vand.u32 %v66, 4294901760
    %172 = vmatpush1.msra.mxu0 %v171
    %v173 = vand.u32 %v69, 4294901760
    %174 = vmatprep.subr.mxu0 %v173
    %v175 = vand.u32 %v68, 4294901760
    %176 = vmatpush1.msra.mxu0 %v175
    %v177 = vand.u32 %v71, 4294901760
    %178 = vmatprep.subr.mxu0 %v177
    %v179 = vand.u32 %v70, 4294901760
    %180 = vmatpush1.msra.mxu0 %v179
    %181 = vmatprep.subr.mxu0 0.0
    %182 = vmatpush1.msra.mxu0 0.0
    %183 = vmatprep.subr.mxu0 0.0
    %184 = vmatpush1.msra.mxu0 0.0
    %185 = vmatprep.subr.mxu0 0.0
    %186 = vmatpush1.msra.mxu0 0.0
    %187 = vmatprep.subr.mxu0 0.0
    %188 = vmatpush1.msra.mxu0 0.0
    %189 = vmatprep.subr.mxu0 0.0
    %190 = vmatpush1.msra.mxu0 0.0
    %191 = vmatprep.subr.mxu0 0.0
    %192 = vmatpush1.msra.mxu0 0.0
    %193 = vmatprep.subr.mxu0 0.0
    %194 = vmatpush1.msra.mxu0 0.0
    %195 = vmatprep.subr.mxu0 0.0
    %196 = vmatpush1.msra.mxu0 0.0
    %v197 = vand.u32 %v80, 4294901760
    %v198 = vsub.f32 %v80, %v197
    %v199 = vand.u32 %v198, 4294901760
    %v200 = vsub.f32 %v198, %v199
    %v201 = vand.u32 %v200, 4294901760
    %202 = vmatprep.mubr.f32.mxu0 %v201
    %v203 = vand.u32 %v74, 4294901760
    %v204 = vsub.f32 %v74, %v203
    %v205 = vand.u32 %v204, 4294901760
    %v206 = vsub.f32 %v204, %v205
    %v207 = vand.u32 %v206, 4294901760
    %208 = vmatmul.mubr.f32.gmra.mrb[0].mxu0 %v207
    %v209 = vpop.f32.mrb[0].mxu0
    %v210 = vadd.f32 0.0, %v209
    %v211 = vpop.f32.mrb[0].mxu0
    %v212 = vadd.f32 0.0, %v211
    %v213 = vand.u32 %v83, 4294901760
    %v214 = vsub.f32 %v83, %v213
    %v215 = vand.u32 %v214, 4294901760
    %v216 = vsub.f32 %v214, %v215
    %v217 = vand.u32 %v216, 4294901760
    %218 = vmatprep.mubr.f32.mxu0 %v217
    %v219 = vand.u32 %v76, 4294901760
    %v220 = vsub.f32 %v76, %v219
    %v221 = vand.u32 %v220, 4294901760
    %v222 = vsub.f32 %v220, %v221
    %v223 = vand.u32 %v222, 4294901760
    %224 = vmatmul.mubr.f32.gmra.mrb[0].mxu0 %v223
    %v225 = vpop.f32.mrb[0].mxu0
    %v226 = vadd.f32 0.0, %v225
    %v227 = vpop.f32.mrb[0].mxu0
    %v228 = vadd.f32 0.0, %v227
    %229 = vdwg.mxu0
    %v230 = vand.u32 %v25, 4294901760
    %v231 = vsub.f32 %v25, %v230
    %v232 = vand.u32 %v231, 4294901760
    %v233 = vsub.f32 %v231, %v232
    %v234 = vand.u32 %v233, 4294901760
    %235 = vmatprep.subr.mxu0 %v234
    %v236 = vand.u32 %v24, 4294901760
    %v237 = vsub.f32 %v24, %v236
    %v238 = vand.u32 %v237, 4294901760
    %v239 = vsub.f32 %v237, %v238
    %v240 = vand.u32 %v239, 4294901760
    %241 = vmatpush1.msra.mxu0 %v240
    %v242 = vand.u32 %v27, 4294901760
    %v243 = vsub.f32 %v27, %v242
    %v244 = vand.u32 %v243, 4294901760
    %v245 = vsub.f32 %v243, %v244
    %v246 = vand.u32 %v245, 4294901760
    %247 = vmatprep.subr.mxu0 %v246
    %v248 = vand.u32 %v26, 4294901760
    %v249 = vsub.f32 %v26, %v248
    %v250 = vand.u32 %v249, 4294901760
    %v251 = vsub.f32 %v249, %v250
    %v252 = vand.u32 %v251, 4294901760
    %253 = vmatpush1.msra.mxu0 %v252
    %v254 = vand.u32 %v29, 4294901760
    %v255 = vsub.f32 %v29, %v254
    %v256 = vand.u32 %v255, 4294901760
    %v257 = vsub.f32 %v255, %v256
    %v258 = vand.u32 %v257, 4294901760
    %259 = vmatprep.subr.mxu0 %v258
    %v260 = vand.u32 %v28, 4294901760
    %v261 = vsub.f32 %v28, %v260
    %v262 = vand.u32 %v261, 4294901760
    %v263 = vsub.f32 %v261, %v262
    %v264 = vand.u32 %v263, 4294901760
    %265 = vmatpush1.msra.mxu0 %v264
    %v266 = vand.u32 %v31, 4294901760
    %v267 = vsub.f32 %v31, %v266
    %v268 = vand.u32 %v267, 4294901760
    %v269 = vsub.f32 %v267, %v268
    %v270 = vand.u32 %v269, 4294901760
    %271 = vmatprep.subr.mxu0 %v270
    %v272 = vand.u32 %v30, 4294901760
    %v273 = vsub.f32 %v30, %v272
    %v274 = vand.u32 %v273, 4294901760
    %v275 = vsub.f32 %v273, %v274
    %v276 = vand.u32 %v275, 4294901760
    %277 = vmatpush1.msra.mxu0 %v276
    %v278 = vand.u32 %v33, 4294901760
    %v279 = vsub.f32 %v33, %v278
    %v280 = vand.u32 %v279, 4294901760
    %v281 = vsub.f32 %v279, %v280
    %v282 = vand.u32 %v281, 4294901760
    %283 = vmatprep.subr.mxu0 %v282
    %v284 = vand.u32 %v32, 4294901760
    %v285 = vsub.f32 %v32, %v284
    %v286 = vand.u32 %v285, 4294901760
    %v287 = vsub.f32 %v285, %v286
    %v288 = vand.u32 %v287, 4294901760
    %289 = vmatpush1.msra.mxu0 %v288
    %v290 = vand.u32 %v35, 4294901760
    %v291 = vsub.f32 %v35, %v290
    %v292 = vand.u32 %v291, 4294901760
    %v293 = vsub.f32 %v291, %v292
    %v294 = vand.u32 %v293, 4294901760
    %295 = vmatprep.subr.mxu0 %v294
    %v296 = vand.u32 %v34, 4294901760
    %v297 = vsub.f32 %v34, %v296
    %v298 = vand.u32 %v297, 4294901760
    %v299 = vsub.f32 %v297, %v298
    %v300 = vand.u32 %v299, 4294901760
    %301 = vmatpush1.msra.mxu0 %v300
    %v302 = vand.u32 %v37, 4294901760
    %v303 = vsub.f32 %v37, %v302
    %v304 = vand.u32 %v303, 4294901760
    %v305 = vsub.f32 %v303, %v304
    %v306 = vand.u32 %v305, 4294901760
    %307 = vmatprep.subr.mxu0 %v306
    %v308 = vand.u32 %v36, 4294901760
    %v309 = vsub.f32 %v36, %v308
    %v310 = vand.u32 %v309, 4294901760
    %v311 = vsub.f32 %v309, %v310
    %v312 = vand.u32 %v311, 4294901760
    %313 = vmatpush1.msra.mxu0 %v312
    %v314 = vand.u32 %v39, 4294901760
    %v315 = vsub.f32 %v39, %v314
    %v316 = vand.u32 %v315, 4294901760
    %v317 = vsub.f32 %v315, %v316
    %v318 = vand.u32 %v317, 4294901760
    %319 = vmatprep.subr.mxu0 %v318
    %v320 = vand.u32 %v38, 4294901760
    %v321 = vsub.f32 %v38, %v320
    %v322 = vand.u32 %v321, 4294901760
    %v323 = vsub.f32 %v321, %v322
    %v324 = vand.u32 %v323, 4294901760
    %325 = vmatpush1.msra.mxu0 %v324
    %v326 = vand.u32 %v41, 4294901760
    %v327 = vsub.f32 %v41, %v326
    %v328 = vand.u32 %v327, 4294901760
    %v329 = vsub.f32 %v327, %v328
    %v330 = vand.u32 %v329, 4294901760
    %331 = vmatprep.subr.mxu0 %v330
    %v332 = vand.u32 %v40, 4294901760
    %v333 = vsub.f32 %v40, %v332
    %v334 = vand.u32 %v333, 4294901760
    %v335 = vsub.f32 %v333, %v334
    %v336 = vand.u32 %v335, 4294901760
    %337 = vmatpush1.msra.mxu0 %v336
    %v338 = vand.u32 %v43, 4294901760
    %v339 = vsub.f32 %v43, %v338
    %v340 = vand.u32 %v339, 4294901760
    %v341 = vsub.f32 %v339, %v340
    %v342 = vand.u32 %v341, 4294901760
    %343 = vmatprep.subr.mxu0 %v342
    %v344 = vand.u32 %v42, 4294901760
    %v345 = vsub.f32 %v42, %v344
    %v346 = vand.u32 %v345, 4294901760
    %v347 = vsub.f32 %v345, %v346
    %v348 = vand.u32 %v347, 4294901760
    %349 = vmatpush1.msra.mxu0 %v348
    %v350 = vand.u32 %v45, 4294901760
    %v351 = vsub.f32 %v45, %v350
    %v352 = vand.u32 %v351, 4294901760
    %v353 = vsub.f32 %v351, %v352
    %v354 = vand.u32 %v353, 4294901760
    %355 = vmatprep.subr.mxu0 %v354
    %v356 = vand.u32 %v44, 4294901760
    %v357 = vsub.f32 %v44, %v356
    %v358 = vand.u32 %v357, 4294901760
    %v359 = vsub.f32 %v357, %v358
    %v360 = vand.u32 %v359, 4294901760
    %361 = vmatpush1.msra.mxu0 %v360
    %v362 = vand.u32 %v47, 4294901760
    %v363 = vsub.f32 %v47, %v362
    %v364 = vand.u32 %v363, 4294901760
    %v365 = vsub.f32 %v363, %v364
    %v366 = vand.u32 %v365, 4294901760
    %367 = vmatprep.subr.mxu0 %v366
    %v368 = vand.u32 %v46, 4294901760
    %v369 = vsub.f32 %v46, %v368
    %v370 = vand.u32 %v369, 4294901760
    %v371 = vsub.f32 %v369, %v370
    %v372 = vand.u32 %v371, 4294901760
    %373 = vmatpush1.msra.mxu0 %v372
    %v374 = vand.u32 %v49, 4294901760
    %v375 = vsub.f32 %v49, %v374
    %v376 = vand.u32 %v375, 4294901760
    %v377 = vsub.f32 %v375, %v376
    %v378 = vand.u32 %v377, 4294901760
    %379 = vmatprep.subr.mxu0 %v378
    %v380 = vand.u32 %v48, 4294901760
    %v381 = vsub.f32 %v48, %v380
    %v382 = vand.u32 %v381, 4294901760
    %v383 = vsub.f32 %v381, %v382
    %v384 = vand.u32 %v383, 4294901760
    %385 = vmatpush1.msra.mxu0 %v384
    %v386 = vand.u32 %v51, 4294901760
    %v387 = vsub.f32 %v51, %v386
    %v388 = vand.u32 %v387, 4294901760
    %v389 = vsub.f32 %v387, %v388
    %v390 = vand.u32 %v389, 4294901760
    %391 = vmatprep.subr.mxu0 %v390
    %v392 = vand.u32 %v50, 4294901760
    %v393 = vsub.f32 %v50, %v392
    %v394 = vand.u32 %v393, 4294901760
    %v395 = vsub.f32 %v393, %v394
    %v396 = vand.u32 %v395, 4294901760
    %397 = vmatpush1.msra.mxu0 %v396
    %v398 = vand.u32 %v53, 4294901760
    %v399 = vsub.f32 %v53, %v398
    %v400 = vand.u32 %v399, 4294901760
    %v401 = vsub.f32 %v399, %v400
    %v402 = vand.u32 %v401, 4294901760
    %403 = vmatprep.subr.mxu0 %v402
    %v404 = vand.u32 %v52, 4294901760
    %v405 = vsub.f32 %v52, %v404
    %v406 = vand.u32 %v405, 4294901760
    %v407 = vsub.f32 %v405, %v406
    %v408 = vand.u32 %v407, 4294901760
    %409 = vmatpush1.msra.mxu0 %v408
    %v410 = vand.u32 %v55, 4294901760
    %v411 = vsub.f32 %v55, %v410
    %v412 = vand.u32 %v411, 4294901760
    %v413 = vsub.f32 %v411, %v412
    %v414 = vand.u32 %v413, 4294901760
    %415 = vmatprep.subr.mxu0 %v414
    %v416 = vand.u32 %v54, 4294901760
    %v417 = vsub.f32 %v54, %v416
    %v418 = vand.u32 %v417, 4294901760
    %v419 = vsub.f32 %v417, %v418
    %v420 = vand.u32 %v419, 4294901760
    %421 = vmatpush1.msra.mxu0 %v420
    %v422 = vand.u32 %v57, 4294901760
    %v423 = vsub.f32 %v57, %v422
    %v424 = vand.u32 %v423, 4294901760
    %v425 = vsub.f32 %v423, %v424
    %v426 = vand.u32 %v425, 4294901760
    %427 = vmatprep.subr.mxu0 %v426
    %v428 = vand.u32 %v56, 4294901760
    %v429 = vsub.f32 %v56, %v428
    %v430 = vand.u32 %v429, 4294901760
    %v431 = vsub.f32 %v429, %v430
    %v432 = vand.u32 %v431, 4294901760
    %433 = vmatpush1.msra.mxu0 %v432
    %v434 = vand.u32 %v59, 4294901760
    %v435 = vsub.f32 %v59, %v434
    %v436 = vand.u32 %v435, 4294901760
    %v437 = vsub.f32 %v435, %v436
    %v438 = vand.u32 %v437, 4294901760
    %439 = vmatprep.subr.mxu0 %v438
    %v440 = vand.u32 %v58, 4294901760
    %v441 = vsub.f32 %v58, %v440
    %v442 = vand.u32 %v441, 4294901760
    %v443 = vsub.f32 %v441, %v442
    %v444 = vand.u32 %v443, 4294901760
    %445 = vmatpush1.msra.mxu0 %v444
    %v446 = vand.u32 %v61, 4294901760
    %v447 = vsub.f32 %v61, %v446
    %v448 = vand.u32 %v447, 4294901760
    %v449 = vsub.f32 %v447, %v448
    %v450 = vand.u32 %v449, 4294901760
    %451 = vmatprep.subr.mxu0 %v450
    %v452 = vand.u32 %v60, 4294901760
    %v453 = vsub.f32 %v60, %v452
    %v454 = vand.u32 %v453, 4294901760
    %v455 = vsub.f32 %v453, %v454
    %v456 = vand.u32 %v455, 4294901760
    %457 = vmatpush1.msra.mxu0 %v456
    %v458 = vand.u32 %v63, 4294901760
    %v459 = vsub.f32 %v63, %v458
    %v460 = vand.u32 %v459, 4294901760
    %v461 = vsub.f32 %v459, %v460
    %v462 = vand.u32 %v461, 4294901760
    %463 = vmatprep.subr.mxu0 %v462
    %v464 = vand.u32 %v62, 4294901760
    %v465 = vsub.f32 %v62, %v464
    %v466 = vand.u32 %v465, 4294901760
    %v467 = vsub.f32 %v465, %v466
    %v468 = vand.u32 %v467, 4294901760
    %469 = vmatpush1.msra.mxu0 %v468
    %v470 = vand.u32 %v65, 4294901760
    %v471 = vsub.f32 %v65, %v470
    %v472 = vand.u32 %v471, 4294901760
    %v473 = vsub.f32 %v471, %v472
    %v474 = vand.u32 %v473, 4294901760
    %475 = vmatprep.subr.mxu0 %v474
    %v476 = vand.u32 %v64, 4294901760
    %v477 = vsub.f32 %v64, %v476
    %v478 = vand.u32 %v477, 4294901760
    %v479 = vsub.f32 %v477, %v478
    %v480 = vand.u32 %v479, 4294901760
    %481 = vmatpush1.msra.mxu0 %v480
    %v482 = vand.u32 %v67, 4294901760
    %v483 = vsub.f32 %v67, %v482
    %v484 = vand.u32 %v483, 4294901760
    %v485 = vsub.f32 %v483, %v484
    %v486 = vand.u32 %v485, 4294901760
    %487 = vmatprep.subr.mxu0 %v486
    %v488 = vand.u32 %v66, 4294901760
    %v489 = vsub.f32 %v66, %v488
    %v490 = vand.u32 %v489, 4294901760
    %v491 = vsub.f32 %v489, %v490
    %v492 = vand.u32 %v491, 4294901760
    %493 = vmatpush1.msra.mxu0 %v492
    %v494 = vand.u32 %v69, 4294901760
    %v495 = vsub.f32 %v69, %v494
    %v496 = vand.u32 %v495, 4294901760
    %v497 = vsub.f32 %v495, %v496
    %v498 = vand.u32 %v497, 4294901760
    %499 = vmatprep.subr.mxu0 %v498
    %v500 = vand.u32 %v68, 4294901760
    %v501 = vsub.f32 %v68, %v500
    %v502 = vand.u32 %v501, 4294901760
    %v503 = vsub.f32 %v501, %v502
    %v504 = vand.u32 %v503, 4294901760
    %505 = vmatpush1.msra.mxu0 %v504
    %v506 = vand.u32 %v71, 4294901760
    %v507 = vsub.f32 %v71, %v506
    %v508 = vand.u32 %v507, 4294901760
    %v509 = vsub.f32 %v507, %v508
    %v510 = vand.u32 %v509, 4294901760
    %511 = vmatprep.subr.mxu0 %v510
    %v512 = vand.u32 %v70, 4294901760
    %v513 = vsub.f32 %v70, %v512
    %v514 = vand.u32 %v513, 4294901760
    %v515 = vsub.f32 %v513, %v514
    %v516 = vand.u32 %v515, 4294901760
    %517 = vmatpush1.msra.mxu0 %v516
    %518 = vmatprep.subr.mxu0 0.0
    %519 = vmatpush1.msra.mxu0 0.0
    %520 = vmatprep.subr.mxu0 0.0
    %521 = vmatpush1.msra.mxu0 0.0
    %522 = vmatprep.subr.mxu0 0.0
    %523 = vmatpush1.msra.mxu0 0.0
    %524 = vmatprep.subr.mxu0 0.0
    %525 = vmatpush1.msra.mxu0 0.0
    %526 = vmatprep.subr.mxu0 0.0
    %527 = vmatpush1.msra.mxu0 0.0
    %528 = vmatprep.subr.mxu0 0.0
    %529 = vmatpush1.msra.mxu0 0.0
    %530 = vmatprep.subr.mxu0 0.0
    %531 = vmatpush1.msra.mxu0 0.0
    %532 = vmatprep.subr.mxu0 0.0
    %533 = vmatpush1.msra.mxu0 0.0
    %v534 = vand.u32 %v80, 4294901760
    %535 = vmatprep.mubr.f32.mxu0 %v534
    %v536 = vand.u32 %v74, 4294901760
    %537 = vmatmul.mubr.f32.gmra.mrb[0].mxu0 %v536
    %v538 = vpop.f32.mrb[0].mxu0
    %v539 = vadd.f32 %v210, %v538
    %v540 = vpop.f32.mrb[0].mxu0
    %v541 = vadd.f32 %v212, %v540
    %v542 = vand.u32 %v83, 4294901760
    %543 = vmatprep.mubr.f32.mxu0 %v542
    %v544 = vand.u32 %v76, 4294901760
    %545 = vmatmul.mubr.f32.gmra.mrb[0].mxu0 %v544
    %v546 = vpop.f32.mrb[0].mxu0
    %v547 = vadd.f32 %v226, %v546
    %v548 = vpop.f32.mrb[0].mxu0
    %v549 = vadd.f32 %v228, %v548
    %550 = vdwg.mxu0
    %v551 = vand.u32 %v25, 4294901760
    %v552 = vsub.f32 %v25, %v551
    %553 = vmatprep.subr.mxu0 %v552
    %v554 = vand.u32 %v24, 4294901760
    %v555 = vsub.f32 %v24, %v554
    %556 = vmatpush1.msra.mxu0 %v555
    %v557 = vand.u32 %v27, 4294901760
    %v558 = vsub.f32 %v27, %v557
    %559 = vmatprep.subr.mxu0 %v558
    %v560 = vand.u32 %v26, 4294901760
    %v561 = vsub.f32 %v26, %v560
    %562 = vmatpush1.msra.mxu0 %v561
    %v563 = vand.u32 %v29, 4294901760
    %v564 = vsub.f32 %v29, %v563
    %565 = vmatprep.subr.mxu0 %v564
    %v566 = vand.u32 %v28, 4294901760
    %v567 = vsub.f32 %v28, %v566
    %568 = vmatpush1.msra.mxu0 %v567
    %v569 = vand.u32 %v31, 4294901760
    %v570 = vsub.f32 %v31, %v569
    %571 = vmatprep.subr.mxu0 %v570
    %v572 = vand.u32 %v30, 4294901760
    %v573 = vsub.f32 %v30, %v572
    %574 = vmatpush1.msra.mxu0 %v573
    %v575 = vand.u32 %v33, 4294901760
    %v576 = vsub.f32 %v33, %v575
    %577 = vmatprep.subr.mxu0 %v576
    %v578 = vand.u32 %v32, 4294901760
    %v579 = vsub.f32 %v32, %v578
    %580 = vmatpush1.msra.mxu0 %v579
    %v581 = vand.u32 %v35, 4294901760
    %v582 = vsub.f32 %v35, %v581
    %583 = vmatprep.subr.mxu0 %v582
    %v584 = vand.u32 %v34, 4294901760
    %v585 = vsub.f32 %v34, %v584
    %586 = vmatpush1.msra.mxu0 %v585
    %v587 = vand.u32 %v37, 4294901760
    %v588 = vsub.f32 %v37, %v587
    %589 = vmatprep.subr.mxu0 %v588
    %v590 = vand.u32 %v36, 4294901760
    %v591 = vsub.f32 %v36, %v590
    %592 = vmatpush1.msra.mxu0 %v591
    %v593 = vand.u32 %v39, 4294901760
    %v594 = vsub.f32 %v39, %v593
    %595 = vmatprep.subr.mxu0 %v594
    %v596 = vand.u32 %v38, 4294901760
    %v597 = vsub.f32 %v38, %v596
    %598 = vmatpush1.msra.mxu0 %v597
    %v599 = vand.u32 %v41, 4294901760
    %v600 = vsub.f32 %v41, %v599
    %601 = vmatprep.subr.mxu0 %v600
    %v602 = vand.u32 %v40, 4294901760
    %v603 = vsub.f32 %v40, %v602
    %604 = vmatpush1.msra.mxu0 %v603
    %v605 = vand.u32 %v43, 4294901760
    %v606 = vsub.f32 %v43, %v605
    %607 = vmatprep.subr.mxu0 %v606
    %v608 = vand.u32 %v42, 4294901760
    %v609 = vsub.f32 %v42, %v608
    %610 = vmatpush1.msra.mxu0 %v609
    %v611 = vand.u32 %v45, 4294901760
    %v612 = vsub.f32 %v45, %v611
    %613 = vmatprep.subr.mxu0 %v612
    %v614 = vand.u32 %v44, 4294901760
    %v615 = vsub.f32 %v44, %v614
    %616 = vmatpush1.msra.mxu0 %v615
    %v617 = vand.u32 %v47, 4294901760
    %v618 = vsub.f32 %v47, %v617
    %619 = vmatprep.subr.mxu0 %v618
    %v620 = vand.u32 %v46, 4294901760
    %v621 = vsub.f32 %v46, %v620
    %622 = vmatpush1.msra.mxu0 %v621
    %v623 = vand.u32 %v49, 4294901760
    %v624 = vsub.f32 %v49, %v623
    %625 = vmatprep.subr.mxu0 %v624
    %v626 = vand.u32 %v48, 4294901760
    %v627 = vsub.f32 %v48, %v626
    %628 = vmatpush1.msra.mxu0 %v627
    %v629 = vand.u32 %v51, 4294901760
    %v630 = vsub.f32 %v51, %v629
    %631 = vmatprep.subr.mxu0 %v630
    %v632 = vand.u32 %v50, 4294901760
    %v633 = vsub.f32 %v50, %v632
    %634 = vmatpush1.msra.mxu0 %v633
    %v635 = vand.u32 %v53, 4294901760
    %v636 = vsub.f32 %v53, %v635
    %637 = vmatprep.subr.mxu0 %v636
    %v638 = vand.u32 %v52, 4294901760
    %v639 = vsub.f32 %v52, %v638
    %640 = vmatpush1.msra.mxu0 %v639
    %v641 = vand.u32 %v55, 4294901760
    %v642 = vsub.f32 %v55, %v641
    %643 = vmatprep.subr.mxu0 %v642
    %v644 = vand.u32 %v54, 4294901760
    %v645 = vsub.f32 %v54, %v644
    %646 = vmatpush1.msra.mxu0 %v645
    %v647 = vand.u32 %v57, 4294901760
    %v648 = vsub.f32 %v57, %v647
    %649 = vmatprep.subr.mxu0 %v648
    %v650 = vand.u32 %v56, 4294901760
    %v651 = vsub.f32 %v56, %v650
    %652 = vmatpush1.msra.mxu0 %v651
    %v653 = vand.u32 %v59, 4294901760
    %v654 = vsub.f32 %v59, %v653
    %655 = vmatprep.subr.mxu0 %v654
    %v656 = vand.u32 %v58, 4294901760
    %v657 = vsub.f32 %v58, %v656
    %658 = vmatpush1.msra.mxu0 %v657
    %v659 = vand.u32 %v61, 4294901760
    %v660 = vsub.f32 %v61, %v659
    %661 = vmatprep.subr.mxu0 %v660
    %v662 = vand.u32 %v60, 4294901760
    %v663 = vsub.f32 %v60, %v662
    %664 = vmatpush1.msra.mxu0 %v663
    %v665 = vand.u32 %v63, 4294901760
    %v666 = vsub.f32 %v63, %v665
    %667 = vmatprep.subr.mxu0 %v666
    %v668 = vand.u32 %v62, 4294901760
    %v669 = vsub.f32 %v62, %v668
    %670 = vmatpush1.msra.mxu0 %v669
    %v671 = vand.u32 %v65, 4294901760
    %v672 = vsub.f32 %v65, %v671
    %673 = vmatprep.subr.mxu0 %v672
    %v674 = vand.u32 %v64, 4294901760
    %v675 = vsub.f32 %v64, %v674
    %676 = vmatpush1.msra.mxu0 %v675
    %v677 = vand.u32 %v67, 4294901760
    %v678 = vsub.f32 %v67, %v677
    %679 = vmatprep.subr.mxu0 %v678
    %v680 = vand.u32 %v66, 4294901760
    %v681 = vsub.f32 %v66, %v680
    %682 = vmatpush1.msra.mxu0 %v681
    %v683 = vand.u32 %v69, 4294901760
    %v684 = vsub.f32 %v69, %v683
    %685 = vmatprep.subr.mxu0 %v684
    %v686 = vand.u32 %v68, 4294901760
    %v687 = vsub.f32 %v68, %v686
    %688 = vmatpush1.msra.mxu0 %v687
    %v689 = vand.u32 %v71, 4294901760
    %v690 = vsub.f32 %v71, %v689
    %691 = vmatprep.subr.mxu0 %v690
    %v692 = vand.u32 %v70, 4294901760
    %v693 = vsub.f32 %v70, %v692
    %694 = vmatpush1.msra.mxu0 %v693
    %695 = vmatprep.subr.mxu0 0.0
    %696 = vmatpush1.msra.mxu0 0.0
    %697 = vmatprep.subr.mxu0 0.0
    %698 = vmatpush1.msra.mxu0 0.0
    %699 = vmatprep.subr.mxu0 0.0
    %700 = vmatpush1.msra.mxu0 0.0
    %701 = vmatprep.subr.mxu0 0.0
    %702 = vmatpush1.msra.mxu0 0.0
    %703 = vmatprep.subr.mxu0 0.0
    %704 = vmatpush1.msra.mxu0 0.0
    %705 = vmatprep.subr.mxu0 0.0
    %706 = vmatpush1.msra.mxu0 0.0
    %707 = vmatprep.subr.mxu0 0.0
    %708 = vmatpush1.msra.mxu0 0.0
    %709 = vmatprep.subr.mxu0 0.0
    %710 = vmatpush1.msra.mxu0 0.0
    %v711 = vand.u32 %v80, 4294901760
    %v712 = vsub.f32 %v80, %v711
    %713 = vmatprep.mubr.f32.mxu0 %v712
    %v714 = vand.u32 %v74, 4294901760
    %v715 = vsub.f32 %v74, %v714
    %716 = vmatmul.mubr.f32.gmra.mrb[0].mxu0 %v715
    %v717 = vpop.f32.mrb[0].mxu0
    %v718 = vadd.f32 %v539, %v717
    %v719 = vpop.f32.mrb[0].mxu0
    %v720 = vadd.f32 %v541, %v719
    %v721 = vand.u32 %v83, 4294901760
    %v722 = vsub.f32 %v83, %v721
    %723 = vmatprep.mubr.f32.mxu0 %v722
    %v724 = vand.u32 %v76, 4294901760
    %v725 = vsub.f32 %v76, %v724
    %726 = vmatmul.mubr.f32.gmra.mrb[0].mxu0 %v725
    %v727 = vpop.f32.mrb[0].mxu0
    %v728 = vadd.f32 %v547, %v727
    %v729 = vpop.f32.mrb[0].mxu0
    %v730 = vadd.f32 %v549, %v729
    %731 = vdwg.mxu0
    %v732 = vand.u32 %v25, 4294901760
    %733 = vmatprep.subr.mxu0 %v732
    %v734 = vand.u32 %v24, 4294901760
    %735 = vmatpush1.msra.mxu0 %v734
    %v736 = vand.u32 %v27, 4294901760
    %737 = vmatprep.subr.mxu0 %v736
    %v738 = vand.u32 %v26, 4294901760
    %739 = vmatpush1.msra.mxu0 %v738
    %v740 = vand.u32 %v29, 4294901760
    %741 = vmatprep.subr.mxu0 %v740
    %v742 = vand.u32 %v28, 4294901760
    %743 = vmatpush1.msra.mxu0 %v742
    %v744 = vand.u32 %v31, 4294901760
    %745 = vmatprep.subr.mxu0 %v744
    %v746 = vand.u32 %v30, 4294901760
    %747 = vmatpush1.msra.mxu0 %v746
    %v748 = vand.u32 %v33, 4294901760
    %749 = vmatprep.subr.mxu0 %v748
    %v750 = vand.u32 %v32, 4294901760
    %751 = vmatpush1.msra.mxu0 %v750
    %v752 = vand.u32 %v35, 4294901760
    %753 = vmatprep.subr.mxu0 %v752
    %v754 = vand.u32 %v34, 4294901760
    %755 = vmatpush1.msra.mxu0 %v754
    %v756 = vand.u32 %v37, 4294901760
    %757 = vmatprep.subr.mxu0 %v756
    %v758 = vand.u32 %v36, 4294901760
    %759 = vmatpush1.msra.mxu0 %v758
    %v760 = vand.u32 %v39, 4294901760
    %761 = vmatprep.subr.mxu0 %v760
    %v762 = vand.u32 %v38, 4294901760
    %763 = vmatpush1.msra.mxu0 %v762
    %v764 = vand.u32 %v41, 4294901760
    %765 = vmatprep.subr.mxu0 %v764
    %v766 = vand.u32 %v40, 4294901760
    %767 = vmatpush1.msra.mxu0 %v766
    %v768 = vand.u32 %v43, 4294901760
    %769 = vmatprep.subr.mxu0 %v768
    %v770 = vand.u32 %v42, 4294901760
    %771 = vmatpush1.msra.mxu0 %v770
    %v772 = vand.u32 %v45, 4294901760
    %773 = vmatprep.subr.mxu0 %v772
    %v774 = vand.u32 %v44, 4294901760
    %775 = vmatpush1.msra.mxu0 %v774
    %v776 = vand.u32 %v47, 4294901760
    %777 = vmatprep.subr.mxu0 %v776
    %v778 = vand.u32 %v46, 4294901760
    %779 = vmatpush1.msra.mxu0 %v778
    %v780 = vand.u32 %v49, 4294901760
    %781 = vmatprep.subr.mxu0 %v780
    %v782 = vand.u32 %v48, 4294901760
    %783 = vmatpush1.msra.mxu0 %v782
    %v784 = vand.u32 %v51, 4294901760
    %785 = vmatprep.subr.mxu0 %v784
    %v786 = vand.u32 %v50, 4294901760
    %787 = vmatpush1.msra.mxu0 %v786
    %v788 = vand.u32 %v53, 4294901760
    %789 = vmatprep.subr.mxu0 %v788
    %v790 = vand.u32 %v52, 4294901760
    %791 = vmatpush1.msra.mxu0 %v790
    %v792 = vand.u32 %v55, 4294901760
    %793 = vmatprep.subr.mxu0 %v792
    %v794 = vand.u32 %v54, 4294901760
    %795 = vmatpush1.msra.mxu0 %v794
    %v796 = vand.u32 %v57, 4294901760
    %797 = vmatprep.subr.mxu0 %v796
    %v798 = vand.u32 %v56, 4294901760
    %799 = vmatpush1.msra.mxu0 %v798
    %v800 = vand.u32 %v59, 4294901760
    %801 = vmatprep.subr.mxu0 %v800
    %v802 = vand.u32 %v58, 4294901760
    %803 = vmatpush1.msra.mxu0 %v802
    %v804 = vand.u32 %v61, 4294901760
    %805 = vmatprep.subr.mxu0 %v804
    %v806 = vand.u32 %v60, 4294901760
    %807 = vmatpush1.msra.mxu0 %v806
    %v808 = vand.u32 %v63, 4294901760
    %809 = vmatprep.subr.mxu0 %v808
    %v810 = vand.u32 %v62, 4294901760
    %811 = vmatpush1.msra.mxu0 %v810
    %v812 = vand.u32 %v65, 4294901760
    %813 = vmatprep.subr.mxu0 %v812
    %v814 = vand.u32 %v64, 4294901760
    %815 = vmatpush1.msra.mxu0 %v814
    %v816 = vand.u32 %v67, 4294901760
    %817 = vmatprep.subr.mxu0 %v816
    %v818 = vand.u32 %v66, 4294901760
    %819 = vmatpush1.msra.mxu0 %v818
    %v820 = vand.u32 %v69, 4294901760
    %821 = vmatprep.subr.mxu0 %v820
    %v822 = vand.u32 %v68, 4294901760
    %823 = vmatpush1.msra.mxu0 %v822
    %v824 = vand.u32 %v71, 4294901760
    %825 = vmatprep.subr.mxu0 %v824
    %v826 = vand.u32 %v70, 4294901760
    %827 = vmatpush1.msra.mxu0 %v826
    %828 = vmatprep.subr.mxu0 0.0
    %829 = vmatpush1.msra.mxu0 0.0
    %830 = vmatprep.subr.mxu0 0.0
    %831 = vmatpush1.msra.mxu0 0.0
    %832 = vmatprep.subr.mxu0 0.0
    %833 = vmatpush1.msra.mxu0 0.0
    %834 = vmatprep.subr.mxu0 0.0
    %835 = vmatpush1.msra.mxu0 0.0
    %836 = vmatprep.subr.mxu0 0.0
    %837 = vmatpush1.msra.mxu0 0.0
    %838 = vmatprep.subr.mxu0 0.0
    %839 = vmatpush1.msra.mxu0 0.0
    %840 = vmatprep.subr.mxu0 0.0
    %841 = vmatpush1.msra.mxu0 0.0
    %842 = vmatprep.subr.mxu0 0.0
    %843 = vmatpush1.msra.mxu0 0.0
    %v844 = vand.u32 %v80, 4294901760
    %v845 = vsub.f32 %v80, %v844
    %v846 = vand.u32 %v845, 4294901760
    %847 = vmatprep.mubr.f32.mxu0 %v846
    %v848 = vand.u32 %v74, 4294901760
    %v849 = vsub.f32 %v74, %v848
    %v850 = vand.u32 %v849, 4294901760
    %851 = vmatmul.mubr.f32.gmra.mrb[0].mxu0 %v850
    %v852 = vpop.f32.mrb[0].mxu0
    %v853 = vadd.f32 %v718, %v852
    %v854 = vpop.f32.mrb[0].mxu0
    %v855 = vadd.f32 %v720, %v854
    %v856 = vand.u32 %v83, 4294901760
    %v857 = vsub.f32 %v83, %v856
    %v858 = vand.u32 %v857, 4294901760
    %859 = vmatprep.mubr.f32.mxu0 %v858
    %v860 = vand.u32 %v76, 4294901760
    %v861 = vsub.f32 %v76, %v860
    %v862 = vand.u32 %v861, 4294901760
    %863 = vmatmul.mubr.f32.gmra.mrb[0].mxu0 %v862
    %v864 = vpop.f32.mrb[0].mxu0
    %v865 = vadd.f32 %v728, %v864
    %v866 = vpop.f32.mrb[0].mxu0
    %v867 = vadd.f32 %v730, %v866
    %868 = vdwg.mxu0
    %v869 = vand.u32 %v25, 4294901760
    %v870 = vsub.f32 %v25, %v869
    %v871 = vand.u32 %v870, 4294901760
    %872 = vmatprep.subr.mxu0 %v871
    %v873 = vand.u32 %v24, 4294901760
    %v874 = vsub.f32 %v24, %v873
    %v875 = vand.u32 %v874, 4294901760
    %876 = vmatpush1.msra.mxu0 %v875
    %v877 = vand.u32 %v27, 4294901760
    %v878 = vsub.f32 %v27, %v877
    %v879 = vand.u32 %v878, 4294901760
    %880 = vmatprep.subr.mxu0 %v879
    %v881 = vand.u32 %v26, 4294901760
    %v882 = vsub.f32 %v26, %v881
    %v883 = vand.u32 %v882, 4294901760
    %884 = vmatpush1.msra.mxu0 %v883
    %v885 = vand.u32 %v29, 4294901760
    %v886 = vsub.f32 %v29, %v885
    %v887 = vand.u32 %v886, 4294901760
    %888 = vmatprep.subr.mxu0 %v887
    %v889 = vand.u32 %v28, 4294901760
    %v890 = vsub.f32 %v28, %v889
    %v891 = vand.u32 %v890, 4294901760
    %892 = vmatpush1.msra.mxu0 %v891
    %v893 = vand.u32 %v31, 4294901760
    %v894 = vsub.f32 %v31, %v893
    %v895 = vand.u32 %v894, 4294901760
    %896 = vmatprep.subr.mxu0 %v895
    %v897 = vand.u32 %v30, 4294901760
    %v898 = vsub.f32 %v30, %v897
    %v899 = vand.u32 %v898, 4294901760
    %900 = vmatpush1.msra.mxu0 %v899
    %v901 = vand.u32 %v33, 4294901760
    %v902 = vsub.f32 %v33, %v901
    %v903 = vand.u32 %v902, 4294901760
    %904 = vmatprep.subr.mxu0 %v903
    %v905 = vand.u32 %v32, 4294901760
    %v906 = vsub.f32 %v32, %v905
    %v907 = vand.u32 %v906, 4294901760
    %908 = vmatpush1.msra.mxu0 %v907
    %v909 = vand.u32 %v35, 4294901760
    %v910 = vsub.f32 %v35, %v909
    %v911 = vand.u32 %v910, 4294901760
    %912 = vmatprep.subr.mxu0 %v911
    %v913 = vand.u32 %v34, 4294901760
    %v914 = vsub.f32 %v34, %v913
    %v915 = vand.u32 %v914, 4294901760
    %916 = vmatpush1.msra.mxu0 %v915
    %v917 = vand.u32 %v37, 4294901760
    %v918 = vsub.f32 %v37, %v917
    %v919 = vand.u32 %v918, 4294901760
    %920 = vmatprep.subr.mxu0 %v919
    %v921 = vand.u32 %v36, 4294901760
    %v922 = vsub.f32 %v36, %v921
    %v923 = vand.u32 %v922, 4294901760
    %924 = vmatpush1.msra.mxu0 %v923
    %v925 = vand.u32 %v39, 4294901760
    %v926 = vsub.f32 %v39, %v925
    %v927 = vand.u32 %v926, 4294901760
    %928 = vmatprep.subr.mxu0 %v927
    %v929 = vand.u32 %v38, 4294901760
    %v930 = vsub.f32 %v38, %v929
    %v931 = vand.u32 %v930, 4294901760
    %932 = vmatpush1.msra.mxu0 %v931
    %v933 = vand.u32 %v41, 4294901760
    %v934 = vsub.f32 %v41, %v933
    %v935 = vand.u32 %v934, 4294901760
    %936 = vmatprep.subr.mxu0 %v935
    %v937 = vand.u32 %v40, 4294901760
    %v938 = vsub.f32 %v40, %v937
    %v939 = vand.u32 %v938, 4294901760
    %940 = vmatpush1.msra.mxu0 %v939
    %v941 = vand.u32 %v43, 4294901760
    %v942 = vsub.f32 %v43, %v941
    %v943 = vand.u32 %v942, 4294901760
    %944 = vmatprep.subr.mxu0 %v943
    %v945 = vand.u32 %v42, 4294901760
    %v946 = vsub.f32 %v42, %v945
    %v947 = vand.u32 %v946, 4294901760
    %948 = vmatpush1.msra.mxu0 %v947
    %v949 = vand.u32 %v45, 4294901760
    %v950 = vsub.f32 %v45, %v949
    %v951 = vand.u32 %v950, 4294901760
    %952 = vmatprep.subr.mxu0 %v951
    %v953 = vand.u32 %v44, 4294901760
    %v954 = vsub.f32 %v44, %v953
    %v955 = vand.u32 %v954, 4294901760
    %956 = vmatpush1.msra.mxu0 %v955
    %v957 = vand.u32 %v47, 4294901760
    %v958 = vsub.f32 %v47, %v957
    %v959 = vand.u32 %v958, 4294901760
    %960 = vmatprep.subr.mxu0 %v959
    %v961 = vand.u32 %v46, 4294901760
    %v962 = vsub.f32 %v46, %v961
    %v963 = vand.u32 %v962, 4294901760
    %964 = vmatpush1.msra.mxu0 %v963
    %v965 = vand.u32 %v49, 4294901760
    %v966 = vsub.f32 %v49, %v965
    %v967 = vand.u32 %v966, 4294901760
    %968 = vmatprep.subr.mxu0 %v967
    %v969 = vand.u32 %v48, 4294901760
    %v970 = vsub.f32 %v48, %v969
    %v971 = vand.u32 %v970, 4294901760
    %972 = vmatpush1.msra.mxu0 %v971
    %v973 = vand.u32 %v51, 4294901760
    %v974 = vsub.f32 %v51, %v973
    %v975 = vand.u32 %v974, 4294901760
    %976 = vmatprep.subr.mxu0 %v975
    %v977 = vand.u32 %v50, 4294901760
    %v978 = vsub.f32 %v50, %v977
    %v979 = vand.u32 %v978, 4294901760
    %980 = vmatpush1.msra.mxu0 %v979
    %v981 = vand.u32 %v53, 4294901760
    %v982 = vsub.f32 %v53, %v981
    %v983 = vand.u32 %v982, 4294901760
    %984 = vmatprep.subr.mxu0 %v983
    %v985 = vand.u32 %v52, 4294901760
    %v986 = vsub.f32 %v52, %v985
    %v987 = vand.u32 %v986, 4294901760
    %988 = vmatpush1.msra.mxu0 %v987
    %v989 = vand.u32 %v55, 4294901760
    %v990 = vsub.f32 %v55, %v989
    %v991 = vand.u32 %v990, 4294901760
    %992 = vmatprep.subr.mxu0 %v991
    %v993 = vand.u32 %v54, 4294901760
    %v994 = vsub.f32 %v54, %v993
    %v995 = vand.u32 %v994, 4294901760
    %996 = vmatpush1.msra.mxu0 %v995
    %v997 = vand.u32 %v57, 4294901760
    %v998 = vsub.f32 %v57, %v997
    %v999 = vand.u32 %v998, 4294901760
    %1000 = vmatprep.subr.mxu0 %v999
    %v1001 = vand.u32 %v56, 4294901760
    %v1002 = vsub.f32 %v56, %v1001
    %v1003 = vand.u32 %v1002, 4294901760
    %1004 = vmatpush1.msra.mxu0 %v1003
    %v1005 = vand.u32 %v59, 4294901760
    %v1006 = vsub.f32 %v59, %v1005
    %v1007 = vand.u32 %v1006, 4294901760
    %1008 = vmatprep.subr.mxu0 %v1007
    %v1009 = vand.u32 %v58, 4294901760
    %v1010 = vsub.f32 %v58, %v1009
    %v1011 = vand.u32 %v1010, 4294901760
    %1012 = vmatpush1.msra.mxu0 %v1011
    %v1013 = vand.u32 %v61, 4294901760
    %v1014 = vsub.f32 %v61, %v1013
    %v1015 = vand.u32 %v1014, 4294901760
    %1016 = vmatprep.subr.mxu0 %v1015
    %v1017 = vand.u32 %v60, 4294901760
    %v1018 = vsub.f32 %v60, %v1017
    %v1019 = vand.u32 %v1018, 4294901760
    %1020 = vmatpush1.msra.mxu0 %v1019
    %v1021 = vand.u32 %v63, 4294901760
    %v1022 = vsub.f32 %v63, %v1021
    %v1023 = vand.u32 %v1022, 4294901760
    %1024 = vmatprep.subr.mxu0 %v1023
    %v1025 = vand.u32 %v62, 4294901760
    %v1026 = vsub.f32 %v62, %v1025
    %v1027 = vand.u32 %v1026, 4294901760
    %1028 = vmatpush1.msra.mxu0 %v1027
    %v1029 = vand.u32 %v65, 4294901760
    %v1030 = vsub.f32 %v65, %v1029
    %v1031 = vand.u32 %v1030, 4294901760
    %1032 = vmatprep.subr.mxu0 %v1031
    %v1033 = vand.u32 %v64, 4294901760
    %v1034 = vsub.f32 %v64, %v1033
    %v1035 = vand.u32 %v1034, 4294901760
    %1036 = vmatpush1.msra.mxu0 %v1035
    %v1037 = vand.u32 %v67, 4294901760
    %v1038 = vsub.f32 %v67, %v1037
    %v1039 = vand.u32 %v1038, 4294901760
    %1040 = vmatprep.subr.mxu0 %v1039
    %v1041 = vand.u32 %v66, 4294901760
    %v1042 = vsub.f32 %v66, %v1041
    %v1043 = vand.u32 %v1042, 4294901760
    %1044 = vmatpush1.msra.mxu0 %v1043
    %v1045 = vand.u32 %v69, 4294901760
    %v1046 = vsub.f32 %v69, %v1045
    %v1047 = vand.u32 %v1046, 4294901760
    %1048 = vmatprep.subr.mxu0 %v1047
    %v1049 = vand.u32 %v68, 4294901760
    %v1050 = vsub.f32 %v68, %v1049
    %v1051 = vand.u32 %v1050, 4294901760
    %1052 = vmatpush1.msra.mxu0 %v1051
    %v1053 = vand.u32 %v71, 4294901760
    %v1054 = vsub.f32 %v71, %v1053
    %v1055 = vand.u32 %v1054, 4294901760
    %1056 = vmatprep.subr.mxu0 %v1055
    %v1057 = vand.u32 %v70, 4294901760
    %v1058 = vsub.f32 %v70, %v1057
    %v1059 = vand.u32 %v1058, 4294901760
    %1060 = vmatpush1.msra.mxu0 %v1059
    %1061 = vmatprep.subr.mxu0 0.0
    %1062 = vmatpush1.msra.mxu0 0.0
    %1063 = vmatprep.subr.mxu0 0.0
    %1064 = vmatpush1.msra.mxu0 0.0
    %1065 = vmatprep.subr.mxu0 0.0
    %1066 = vmatpush1.msra.mxu0 0.0
    %1067 = vmatprep.subr.mxu0 0.0
    %1068 = vmatpush1.msra.mxu0 0.0
    %1069 = vmatprep.subr.mxu0 0.0
    %1070 = vmatpush1.msra.mxu0 0.0
    %1071 = vmatprep.subr.mxu0 0.0
    %1072 = vmatpush1.msra.mxu0 0.0
    %1073 = vmatprep.subr.mxu0 0.0
    %1074 = vmatpush1.msra.mxu0 0.0
    %1075 = vmatprep.subr.mxu0 0.0
    %1076 = vmatpush1.msra.mxu0 0.0
    %v1077 = vand.u32 %v80, 4294901760
    %1078 = vmatprep.mubr.f32.mxu0 %v1077
    %v1079 = vand.u32 %v74, 4294901760
    %1080 = vmatmul.mubr.f32.gmra.mrb[0].mxu0 %v1079
    %v1081 = vpop.f32.mrb[0].mxu0
    %v1082 = vadd.f32 %v853, %v1081
    %v1083 = vpop.f32.mrb[0].mxu0
    %v1084 = vadd.f32 %v855, %v1083
    %v1085 = vand.u32 %v83, 4294901760
    %1086 = vmatprep.mubr.f32.mxu0 %v1085
    %v1087 = vand.u32 %v76, 4294901760
    %1088 = vmatmul.mubr.f32.gmra.mrb[0].mxu0 %v1087
    %v1089 = vpop.f32.mrb[0].mxu0
    %v1090 = vadd.f32 %v865, %v1089
    %v1091 = vpop.f32.mrb[0].mxu0
    %v1092 = vadd.f32 %v867, %v1091
    %1093 = vdwg.mxu0
    %v1094 = vand.u32 %v25, 4294901760
    %1095 = vmatprep.subr.mxu0 %v1094
    %v1096 = vand.u32 %v24, 4294901760
    %1097 = vmatpush1.msra.mxu0 %v1096
    %v1098 = vand.u32 %v27, 4294901760
    %1099 = vmatprep.subr.mxu0 %v1098
    %v1100 = vand.u32 %v26, 4294901760
    %1101 = vmatpush1.msra.mxu0 %v1100
    %v1102 = vand.u32 %v29, 4294901760
    %1103 = vmatprep.subr.mxu0 %v1102
    %v1104 = vand.u32 %v28, 4294901760
    %1105 = vmatpush1.msra.mxu0 %v1104
    %v1106 = vand.u32 %v31, 4294901760
    %1107 = vmatprep.subr.mxu0 %v1106
    %v1108 = vand.u32 %v30, 4294901760
    %1109 = vmatpush1.msra.mxu0 %v1108
    %v1110 = vand.u32 %v33, 4294901760
    %1111 = vmatprep.subr.mxu0 %v1110
    %v1112 = vand.u32 %v32, 4294901760
    %1113 = vmatpush1.msra.mxu0 %v1112
    %v1114 = vand.u32 %v35, 4294901760
    %1115 = vmatprep.subr.mxu0 %v1114
    %v1116 = vand.u32 %v34, 4294901760
    %1117 = vmatpush1.msra.mxu0 %v1116
    %v1118 = vand.u32 %v37, 4294901760
    %1119 = vmatprep.subr.mxu0 %v1118
    %v1120 = vand.u32 %v36, 4294901760
    %1121 = vmatpush1.msra.mxu0 %v1120
    %v1122 = vand.u32 %v39, 4294901760
    %1123 = vmatprep.subr.mxu0 %v1122
    %v1124 = vand.u32 %v38, 4294901760
    %1125 = vmatpush1.msra.mxu0 %v1124
    %v1126 = vand.u32 %v41, 4294901760
    %1127 = vmatprep.subr.mxu0 %v1126
    %v1128 = vand.u32 %v40, 4294901760
    %1129 = vmatpush1.msra.mxu0 %v1128
    %v1130 = vand.u32 %v43, 4294901760
    %1131 = vmatprep.subr.mxu0 %v1130
    %v1132 = vand.u32 %v42, 4294901760
    %1133 = vmatpush1.msra.mxu0 %v1132
    %v1134 = vand.u32 %v45, 4294901760
    %1135 = vmatprep.subr.mxu0 %v1134
    %v1136 = vand.u32 %v44, 4294901760
    %1137 = vmatpush1.msra.mxu0 %v1136
    %v1138 = vand.u32 %v47, 4294901760
    %1139 = vmatprep.subr.mxu0 %v1138
    %v1140 = vand.u32 %v46, 4294901760
    %1141 = vmatpush1.msra.mxu0 %v1140
    %v1142 = vand.u32 %v49, 4294901760
    %1143 = vmatprep.subr.mxu0 %v1142
    %v1144 = vand.u32 %v48, 4294901760
    %1145 = vmatpush1.msra.mxu0 %v1144
    %v1146 = vand.u32 %v51, 4294901760
    %1147 = vmatprep.subr.mxu0 %v1146
    %v1148 = vand.u32 %v50, 4294901760
    %1149 = vmatpush1.msra.mxu0 %v1148
    %v1150 = vand.u32 %v53, 4294901760
    %1151 = vmatprep.subr.mxu0 %v1150
    %v1152 = vand.u32 %v52, 4294901760
    %1153 = vmatpush1.msra.mxu0 %v1152
    %v1154 = vand.u32 %v55, 4294901760
    %1155 = vmatprep.subr.mxu0 %v1154
    %v1156 = vand.u32 %v54, 4294901760
    %1157 = vmatpush1.msra.mxu0 %v1156
    %v1158 = vand.u32 %v57, 4294901760
    %1159 = vmatprep.subr.mxu0 %v1158
    %v1160 = vand.u32 %v56, 4294901760
    %1161 = vmatpush1.msra.mxu0 %v1160
    %v1162 = vand.u32 %v59, 4294901760
    %1163 = vmatprep.subr.mxu0 %v1162
    %v1164 = vand.u32 %v58, 4294901760
    %1165 = vmatpush1.msra.mxu0 %v1164
    %v1166 = vand.u32 %v61, 4294901760
    %1167 = vmatprep.subr.mxu0 %v1166
    %v1168 = vand.u32 %v60, 4294901760
    %1169 = vmatpush1.msra.mxu0 %v1168
    %v1170 = vand.u32 %v63, 4294901760
    %1171 = vmatprep.subr.mxu0 %v1170
    %v1172 = vand.u32 %v62, 4294901760
    %1173 = vmatpush1.msra.mxu0 %v1172
    %v1174 = vand.u32 %v65, 4294901760
    %1175 = vmatprep.subr.mxu0 %v1174
    %v1176 = vand.u32 %v64, 4294901760
    %1177 = vmatpush1.msra.mxu0 %v1176
    %v1178 = vand.u32 %v67, 4294901760
    %1179 = vmatprep.subr.mxu0 %v1178
    %v1180 = vand.u32 %v66, 4294901760
    %1181 = vmatpush1.msra.mxu0 %v1180
    %v1182 = vand.u32 %v69, 4294901760
    %1183 = vmatprep.subr.mxu0 %v1182
    %v1184 = vand.u32 %v68, 4294901760
    %1185 = vmatpush1.msra.mxu0 %v1184
    %v1186 = vand.u32 %v71, 4294901760
    %1187 = vmatprep.subr.mxu0 %v1186
    %v1188 = vand.u32 %v70, 4294901760
    %1189 = vmatpush1.msra.mxu0 %v1188
    %1190 = vmatprep.subr.mxu0 0.0
    %1191 = vmatpush1.msra.mxu0 0.0
    %1192 = vmatprep.subr.mxu0 0.0
    %1193 = vmatpush1.msra.mxu0 0.0
    %1194 = vmatprep.subr.mxu0 0.0
    %1195 = vmatpush1.msra.mxu0 0.0
    %1196 = vmatprep.subr.mxu0 0.0
    %1197 = vmatpush1.msra.mxu0 0.0
    %1198 = vmatprep.subr.mxu0 0.0
    %1199 = vmatpush1.msra.mxu0 0.0
    %1200 = vmatprep.subr.mxu0 0.0
    %1201 = vmatpush1.msra.mxu0 0.0
    %1202 = vmatprep.subr.mxu0 0.0
    %1203 = vmatpush1.msra.mxu0 0.0
    %1204 = vmatprep.subr.mxu0 0.0
    %1205 = vmatpush1.msra.mxu0 0.0
    %v1206 = vand.u32 %v80, 4294901760
    %1207 = vmatprep.mubr.f32.mxu0 %v1206
    %v1208 = vand.u32 %v74, 4294901760
    %1209 = vmatmul.mubr.f32.gmra.mrb[0].mxu0 %v1208
    %v1210 = vpop.f32.mrb[0].mxu0
    %v1211 = vadd.f32 %v1082, %v1210
    %v1212 = vpop.f32.mrb[0].mxu0
    %v1213 = vadd.f32 %v1084, %v1212
    %v1214 = vand.u32 %v83, 4294901760
    %1215 = vmatprep.mubr.f32.mxu0 %v1214
    %v1216 = vand.u32 %v76, 4294901760
    %1217 = vmatmul.mubr.f32.gmra.mrb[0].mxu0 %v1216
    %v1218 = vpop.f32.mrb[0].mxu0
    %v1219 = vadd.f32 %v1090, %v1218
    %v1220 = vpop.f32.mrb[0].mxu0
    %v1221 = vadd.f32 %v1092, %v1220
    %1222 = vdwg.mxu0
    %v1223 = vld [vmem:[%s0] sm:$0xff]
    %v1224 = vld [vmem:[%s0 + $0x8] sm:$0xff]
    %v1226 = vlaneseq
    %v1227 = vshrl.u32 %v1226, 7
    %v1228 = vsub.s32 0, %v1227
    %v1229 = vrot.slane %v73, %v1228
    %v1230 = vlaneseq
    %v1231 = vshrl.u32 %v1230, 7
    %v1232 = vsub.s32 1, %v1231
    %v1233 = vrot.slane %v73, %v1232
    %vm1236 = vcmask 130048
    %v1238 = vsel %vm1236, %v1223, 0
    %v1241 = vsel %vm1236, %v1224, 0
    %v1243 = vand.u32 %v1213, 4294901760
    %1244 = vmatprep.subr.mxu0 %v1243
    %v1245 = vand.u32 %v1211, 4294901760
    %1246 = vmatpush1.msra.mxu0 %v1245
    %v1247 = vand.u32 %v1221, 4294901760
    %1248 = vmatprep.subr.mxu0 %v1247
    %v1249 = vand.u32 %v1219, 4294901760
    %1250 = vmatpush1.msra.mxu0 %v1249
    %1251 = vmatprep.subr.mxu0 0.0
    %1252 = vmatpush1.msra.mxu0 0.0
    %1253 = vmatprep.subr.mxu0 0.0
    %1254 = vmatpush1.msra.mxu0 0.0
    %1255 = vmatprep.subr.mxu0 0.0
    %1256 = vmatpush1.msra.mxu0 0.0
    %1257 = vmatprep.subr.mxu0 0.0
    %1258 = vmatpush1.msra.mxu0 0.0
    %1259 = vmatprep.subr.mxu0 0.0
    %1260 = vmatpush1.msra.mxu0 0.0
    %1261 = vmatprep.subr.mxu0 0.0
    %1262 = vmatpush1.msra.mxu0 0.0
    %1263 = vmatprep.subr.mxu0 0.0
    %1264 = vmatpush1.msra.mxu0 0.0
    %1265 = vmatprep.subr.mxu0 0.0
    %1266 = vmatpush1.msra.mxu0 0.0
    %1267 = vmatprep.subr.mxu0 0.0
    %1268 = vmatpush1.msra.mxu0 0.0
    %1269 = vmatprep.subr.mxu0 0.0
    %1270 = vmatpush1.msra.mxu0 0.0
    %1271 = vmatprep.subr.mxu0 0.0
    %1272 = vmatpush1.msra.mxu0 0.0
    %1273 = vmatprep.subr.mxu0 0.0
    %1274 = vmatpush1.msra.mxu0 0.0
    %1275 = vmatprep.subr.mxu0 0.0
    %1276 = vmatpush1.msra.mxu0 0.0
    %1277 = vmatprep.subr.mxu0 0.0
    %1278 = vmatpush1.msra.mxu0 0.0
    %1279 = vmatprep.subr.mxu0 0.0
    %1280 = vmatpush1.msra.mxu0 0.0
    %1281 = vmatprep.subr.mxu0 0.0
    %1282 = vmatpush1.msra.mxu0 0.0
    %1283 = vmatprep.subr.mxu0 0.0
    %1284 = vmatpush1.msra.mxu0 0.0
    %1285 = vmatprep.subr.mxu0 0.0
    %1286 = vmatpush1.msra.mxu0 0.0
    %1287 = vmatprep.subr.mxu0 0.0
    %1288 = vmatpush1.msra.mxu0 0.0
    %1289 = vmatprep.subr.mxu0 0.0
    %1290 = vmatpush1.msra.mxu0 0.0
    %1291 = vmatprep.subr.mxu0 0.0
    %1292 = vmatpush1.msra.mxu0 0.0
    %1293 = vmatprep.subr.mxu0 0.0
    %1294 = vmatpush1.msra.mxu0 0.0
    %1295 = vmatprep.subr.mxu0 0.0
    %1296 = vmatpush1.msra.mxu0 0.0
    %1297 = vmatprep.subr.mxu0 0.0
    %1298 = vmatpush1.msra.mxu0 0.0
    %1299 = vmatprep.subr.mxu0 0.0
    %1300 = vmatpush1.msra.mxu0 0.0
    %1301 = vmatprep.subr.mxu0 0.0
    %1302 = vmatpush1.msra.mxu0 0.0
    %1303 = vmatprep.subr.mxu0 0.0
    %1304 = vmatpush1.msra.mxu0 0.0
    %1305 = vmatprep.subr.mxu0 0.0
    %1306 = vmatpush1.msra.mxu0 0.0
    %1307 = vmatprep.subr.mxu0 0.0
    %1308 = vmatpush1.msra.mxu0 0.0
    %1309 = vmatprep.subr.mxu0 0.0
    %1310 = vmatpush1.msra.mxu0 0.0
    %1311 = vmatprep.mubr.f32.mxu0 0.0
    %v1312 = vand.u32 %v1238, 4294901760
    %v1313 = vsub.f32 %v1238, %v1312
    %v1314 = vand.u32 %v1313, 4294901760
    %v1315 = vsub.f32 %v1313, %v1314
    %v1316 = vand.u32 %v1315, 4294901760
    %1317 = vmatmul.mubr.f32.gmra.mrb[0].mxu0 %v1316
    %v1318 = vpop.f32.mrb[0].mxu0
    %v1319 = vadd.f32 %v1229, %v1318
    %v1320 = vpop.f32.mrb[0].mxu0
    %v1321 = vadd.f32 %v1233, %v1320
    %1322 = vmatprep.mubr.f32.mxu0 0.0
    %v1323 = vand.u32 %v1241, 4294901760
    %v1324 = vsub.f32 %v1241, %v1323
    %v1325 = vand.u32 %v1324, 4294901760
    %v1326 = vsub.f32 %v1324, %v1325
    %v1327 = vand.u32 %v1326, 4294901760
    %1328 = vmatmul.mubr.f32.gmra.mrb[0].mxu0 %v1327
    %v1329 = vpop.f32.mrb[0].mxu0
    %v1330 = vadd.f32 %v1229, %v1329
    %v1331 = vpop.f32.mrb[0].mxu0
    %v1332 = vadd.f32 %v1233, %v1331
    %1333 = vdwg.mxu0
    %v1334 = vand.u32 %v1213, 4294901760
    %v1335 = vsub.f32 %v1213, %v1334
    %v1336 = vand.u32 %v1335, 4294901760
    %v1337 = vsub.f32 %v1335, %v1336
    %v1338 = vand.u32 %v1337, 4294901760
    %1339 = vmatprep.subr.mxu0 %v1338
    %v1340 = vand.u32 %v1211, 4294901760
    %v1341 = vsub.f32 %v1211, %v1340
    %v1342 = vand.u32 %v1341, 4294901760
    %v1343 = vsub.f32 %v1341, %v1342
    %v1344 = vand.u32 %v1343, 4294901760
    %1345 = vmatpush1.msra.mxu0 %v1344
    %v1346 = vand.u32 %v1221, 4294901760
    %v1347 = vsub.f32 %v1221, %v1346
    %v1348 = vand.u32 %v1347, 4294901760
    %v1349 = vsub.f32 %v1347, %v1348
    %v1350 = vand.u32 %v1349, 4294901760
    %1351 = vmatprep.subr.mxu0 %v1350
    %v1352 = vand.u32 %v1219, 4294901760
    %v1353 = vsub.f32 %v1219, %v1352
    %v1354 = vand.u32 %v1353, 4294901760
    %v1355 = vsub.f32 %v1353, %v1354
    %v1356 = vand.u32 %v1355, 4294901760
    %1357 = vmatpush1.msra.mxu0 %v1356
    %1358 = vmatprep.subr.mxu0 0.0
    %1359 = vmatpush1.msra.mxu0 0.0
    %1360 = vmatprep.subr.mxu0 0.0
    %1361 = vmatpush1.msra.mxu0 0.0
    %1362 = vmatprep.subr.mxu0 0.0
    %1363 = vmatpush1.msra.mxu0 0.0
    %1364 = vmatprep.subr.mxu0 0.0
    %1365 = vmatpush1.msra.mxu0 0.0
    %1366 = vmatprep.subr.mxu0 0.0
    %1367 = vmatpush1.msra.mxu0 0.0
    %1368 = vmatprep.subr.mxu0 0.0
    %1369 = vmatpush1.msra.mxu0 0.0
    %1370 = vmatprep.subr.mxu0 0.0
    %1371 = vmatpush1.msra.mxu0 0.0
    %1372 = vmatprep.subr.mxu0 0.0
    %1373 = vmatpush1.msra.mxu0 0.0
    %1374 = vmatprep.subr.mxu0 0.0
    %1375 = vmatpush1.msra.mxu0 0.0
    %1376 = vmatprep.subr.mxu0 0.0
    %1377 = vmatpush1.msra.mxu0 0.0
    %1378 = vmatprep.subr.mxu0 0.0
    %1379 = vmatpush1.msra.mxu0 0.0
    %1380 = vmatprep.subr.mxu0 0.0
    %1381 = vmatpush1.msra.mxu0 0.0
    %1382 = vmatprep.subr.mxu0 0.0
    %1383 = vmatpush1.msra.mxu0 0.0
    %1384 = vmatprep.subr.mxu0 0.0
    %1385 = vmatpush1.msra.mxu0 0.0
    %1386 = vmatprep.subr.mxu0 0.0
    %1387 = vmatpush1.msra.mxu0 0.0
    %1388 = vmatprep.subr.mxu0 0.0
    %1389 = vmatpush1.msra.mxu0 0.0
    %1390 = vmatprep.subr.mxu0 0.0
    %1391 = vmatpush1.msra.mxu0 0.0
    %1392 = vmatprep.subr.mxu0 0.0
    %1393 = vmatpush1.msra.mxu0 0.0
    %1394 = vmatprep.subr.mxu0 0.0
    %1395 = vmatpush1.msra.mxu0 0.0
    %1396 = vmatprep.subr.mxu0 0.0
    %1397 = vmatpush1.msra.mxu0 0.0
    %1398 = vmatprep.subr.mxu0 0.0
    %1399 = vmatpush1.msra.mxu0 0.0
    %1400 = vmatprep.subr.mxu0 0.0
    %1401 = vmatpush1.msra.mxu0 0.0
    %1402 = vmatprep.subr.mxu0 0.0
    %1403 = vmatpush1.msra.mxu0 0.0
    %1404 = vmatprep.subr.mxu0 0.0
    %1405 = vmatpush1.msra.mxu0 0.0
    %1406 = vmatprep.subr.mxu0 0.0
    %1407 = vmatpush1.msra.mxu0 0.0
    %1408 = vmatprep.subr.mxu0 0.0
    %1409 = vmatpush1.msra.mxu0 0.0
    %1410 = vmatprep.subr.mxu0 0.0
    %1411 = vmatpush1.msra.mxu0 0.0
    %1412 = vmatprep.subr.mxu0 0.0
    %1413 = vmatpush1.msra.mxu0 0.0
    %1414 = vmatprep.subr.mxu0 0.0
    %1415 = vmatpush1.msra.mxu0 0.0
    %1416 = vmatprep.subr.mxu0 0.0
    %1417 = vmatpush1.msra.mxu0 0.0
    %1418 = vmatprep.mubr.f32.mxu0 0.0
    %v1419 = vand.u32 %v1238, 4294901760
    %1420 = vmatmul.mubr.f32.gmra.mrb[0].mxu0 %v1419
    %v1421 = vpop.f32.mrb[0].mxu0
    %v1422 = vadd.f32 %v1319, %v1421
    %v1423 = vpop.f32.mrb[0].mxu0
    %v1424 = vadd.f32 %v1321, %v1423
    %1425 = vmatprep.mubr.f32.mxu0 0.0
    %v1426 = vand.u32 %v1241, 4294901760
    %1427 = vmatmul.mubr.f32.gmra.mrb[0].mxu0 %v1426
    %v1428 = vpop.f32.mrb[0].mxu0
    %v1429 = vadd.f32 %v1330, %v1428
    %v1430 = vpop.f32.mrb[0].mxu0
    %v1431 = vadd.f32 %v1332, %v1430
    %1432 = vdwg.mxu0
    %v1433 = vand.u32 %v1213, 4294901760
    %v1434 = vsub.f32 %v1213, %v1433
    %1435 = vmatprep.subr.mxu0 %v1434
    %v1436 = vand.u32 %v1211, 4294901760
    %v1437 = vsub.f32 %v1211, %v1436
    %1438 = vmatpush1.msra.mxu0 %v1437
    %v1439 = vand.u32 %v1221, 4294901760
    %v1440 = vsub.f32 %v1221, %v1439
    %1441 = vmatprep.subr.mxu0 %v1440
    %v1442 = vand.u32 %v1219, 4294901760
    %v1443 = vsub.f32 %v1219, %v1442
    %1444 = vmatpush1.msra.mxu0 %v1443
    %1445 = vmatprep.subr.mxu0 0.0
    %1446 = vmatpush1.msra.mxu0 0.0
    %1447 = vmatprep.subr.mxu0 0.0
    %1448 = vmatpush1.msra.mxu0 0.0
    %1449 = vmatprep.subr.mxu0 0.0
    %1450 = vmatpush1.msra.mxu0 0.0
    %1451 = vmatprep.subr.mxu0 0.0
    %1452 = vmatpush1.msra.mxu0 0.0
    %1453 = vmatprep.subr.mxu0 0.0
    %1454 = vmatpush1.msra.mxu0 0.0
    %1455 = vmatprep.subr.mxu0 0.0
    %1456 = vmatpush1.msra.mxu0 0.0
    %1457 = vmatprep.subr.mxu0 0.0
    %1458 = vmatpush1.msra.mxu0 0.0
    %1459 = vmatprep.subr.mxu0 0.0
    %1460 = vmatpush1.msra.mxu0 0.0
    %1461 = vmatprep.subr.mxu0 0.0
    %1462 = vmatpush1.msra.mxu0 0.0
    %1463 = vmatprep.subr.mxu0 0.0
    %1464 = vmatpush1.msra.mxu0 0.0
    %1465 = vmatprep.subr.mxu0 0.0
    %1466 = vmatpush1.msra.mxu0 0.0
    %1467 = vmatprep.subr.mxu0 0.0
    %1468 = vmatpush1.msra.mxu0 0.0
    %1469 = vmatprep.subr.mxu0 0.0
    %1470 = vmatpush1.msra.mxu0 0.0
    %1471 = vmatprep.subr.mxu0 0.0
    %1472 = vmatpush1.msra.mxu0 0.0
    %1473 = vmatprep.subr.mxu0 0.0
    %1474 = vmatpush1.msra.mxu0 0.0
    %1475 = vmatprep.subr.mxu0 0.0
    %1476 = vmatpush1.msra.mxu0 0.0
    %1477 = vmatprep.subr.mxu0 0.0
    %1478 = vmatpush1.msra.mxu0 0.0
    %1479 = vmatprep.subr.mxu0 0.0
    %1480 = vmatpush1.msra.mxu0 0.0
    %1481 = vmatprep.subr.mxu0 0.0
    %1482 = vmatpush1.msra.mxu0 0.0
    %1483 = vmatprep.subr.mxu0 0.0
    %1484 = vmatpush1.msra.mxu0 0.0
    %1485 = vmatprep.subr.mxu0 0.0
    %1486 = vmatpush1.msra.mxu0 0.0
    %1487 = vmatprep.subr.mxu0 0.0
    %1488 = vmatpush1.msra.mxu0 0.0
    %1489 = vmatprep.subr.mxu0 0.0
    %1490 = vmatpush1.msra.mxu0 0.0
    %1491 = vmatprep.subr.mxu0 0.0
    %1492 = vmatpush1.msra.mxu0 0.0
    %1493 = vmatprep.subr.mxu0 0.0
    %1494 = vmatpush1.msra.mxu0 0.0
    %1495 = vmatprep.subr.mxu0 0.0
    %1496 = vmatpush1.msra.mxu0 0.0
    %1497 = vmatprep.subr.mxu0 0.0
    %1498 = vmatpush1.msra.mxu0 0.0
    %1499 = vmatprep.subr.mxu0 0.0
    %1500 = vmatpush1.msra.mxu0 0.0
    %1501 = vmatprep.subr.mxu0 0.0
    %1502 = vmatpush1.msra.mxu0 0.0
    %1503 = vmatprep.subr.mxu0 0.0
    %1504 = vmatpush1.msra.mxu0 0.0
    %1505 = vmatprep.mubr.f32.mxu0 0.0
    %v1506 = vand.u32 %v1238, 4294901760
    %v1507 = vsub.f32 %v1238, %v1506
    %1508 = vmatmul.mubr.f32.gmra.mrb[0].mxu0 %v1507
    %v1509 = vpop.f32.mrb[0].mxu0
    %v1510 = vadd.f32 %v1422, %v1509
    %v1511 = vpop.f32.mrb[0].mxu0
    %v1512 = vadd.f32 %v1424, %v1511
    %1513 = vmatprep.mubr.f32.mxu0 0.0
    %v1514 = vand.u32 %v1241, 4294901760
    %v1515 = vsub.f32 %v1241, %v1514
    %1516 = vmatmul.mubr.f32.gmra.mrb[0].mxu0 %v1515
    %v1517 = vpop.f32.mrb[0].mxu0
    %v1518 = vadd.f32 %v1429, %v1517
    %v1519 = vpop.f32.mrb[0].mxu0
    %v1520 = vadd.f32 %v1431, %v1519
    %1521 = vdwg.mxu0
    %v1522 = vand.u32 %v1213, 4294901760
    %1523 = vmatprep.subr.mxu0 %v1522
    %v1524 = vand.u32 %v1211, 4294901760
    %1525 = vmatpush1.msra.mxu0 %v1524
    %v1526 = vand.u32 %v1221, 4294901760
    %1527 = vmatprep.subr.mxu0 %v1526
    %v1528 = vand.u32 %v1219, 4294901760
    %1529 = vmatpush1.msra.mxu0 %v1528
    %1530 = vmatprep.subr.mxu0 0.0
    %1531 = vmatpush1.msra.mxu0 0.0
    %1532 = vmatprep.subr.mxu0 0.0
    %1533 = vmatpush1.msra.mxu0 0.0
    %1534 = vmatprep.subr.mxu0 0.0
    %1535 = vmatpush1.msra.mxu0 0.0
    %1536 = vmatprep.subr.mxu0 0.0
    %1537 = vmatpush1.msra.mxu0 0.0
    %1538 = vmatprep.subr.mxu0 0.0
    %1539 = vmatpush1.msra.mxu0 0.0
    %1540 = vmatprep.subr.mxu0 0.0
    %1541 = vmatpush1.msra.mxu0 0.0
    %1542 = vmatprep.subr.mxu0 0.0
    %1543 = vmatpush1.msra.mxu0 0.0
    %1544 = vmatprep.subr.mxu0 0.0
    %1545 = vmatpush1.msra.mxu0 0.0
    %1546 = vmatprep.subr.mxu0 0.0
    %1547 = vmatpush1.msra.mxu0 0.0
    %1548 = vmatprep.subr.mxu0 0.0
    %1549 = vmatpush1.msra.mxu0 0.0
    %1550 = vmatprep.subr.mxu0 0.0
    %1551 = vmatpush1.msra.mxu0 0.0
    %1552 = vmatprep.subr.mxu0 0.0
    %1553 = vmatpush1.msra.mxu0 0.0
    %1554 = vmatprep.subr.mxu0 0.0
    %1555 = vmatpush1.msra.mxu0 0.0
    %1556 = vmatprep.subr.mxu0 0.0
    %1557 = vmatpush1.msra.mxu0 0.0
    %1558 = vmatprep.subr.mxu0 0.0
    %1559 = vmatpush1.msra.mxu0 0.0
    %1560 = vmatprep.subr.mxu0 0.0
    %1561 = vmatpush1.msra.mxu0 0.0
    %1562 = vmatprep.subr.mxu0 0.0
    %1563 = vmatpush1.msra.mxu0 0.0
    %1564 = vmatprep.subr.mxu0 0.0
    %1565 = vmatpush1.msra.mxu0 0.0
    %1566 = vmatprep.subr.mxu0 0.0
    %1567 = vmatpush1.msra.mxu0 0.0
    %1568 = vmatprep.subr.mxu0 0.0
    %1569 = vmatpush1.msra.mxu0 0.0
    %1570 = vmatprep.subr.mxu0 0.0
    %1571 = vmatpush1.msra.mxu0 0.0
    %1572 = vmatprep.subr.mxu0 0.0
    %1573 = vmatpush1.msra.mxu0 0.0
    %1574 = vmatprep.subr.mxu0 0.0
    %1575 = vmatpush1.msra.mxu0 0.0
    %1576 = vmatprep.subr.mxu0 0.0
    %1577 = vmatpush1.msra.mxu0 0.0
    %1578 = vmatprep.subr.mxu0 0.0
    %1579 = vmatpush1.msra.mxu0 0.0
    %1580 = vmatprep.subr.mxu0 0.0
    %1581 = vmatpush1.msra.mxu0 0.0
    %1582 = vmatprep.subr.mxu0 0.0
    %1583 = vmatpush1.msra.mxu0 0.0
    %1584 = vmatprep.subr.mxu0 0.0
    %1585 = vmatpush1.msra.mxu0 0.0
    %1586 = vmatprep.subr.mxu0 0.0
    %1587 = vmatpush1.msra.mxu0 0.0
    %1588 = vmatprep.subr.mxu0 0.0
    %1589 = vmatpush1.msra.mxu0 0.0
    %1590 = vmatprep.mubr.f32.mxu0 0.0
    %v1591 = vand.u32 %v1238, 4294901760
    %v1592 = vsub.f32 %v1238, %v1591
    %v1593 = vand.u32 %v1592, 4294901760
    %1594 = vmatmul.mubr.f32.gmra.mrb[0].mxu0 %v1593
    %v1595 = vpop.f32.mrb[0].mxu0
    %v1596 = vadd.f32 %v1510, %v1595
    %v1597 = vpop.f32.mrb[0].mxu0
    %v1598 = vadd.f32 %v1512, %v1597
    %1599 = vmatprep.mubr.f32.mxu0 0.0
    %v1600 = vand.u32 %v1241, 4294901760
    %v1601 = vsub.f32 %v1241, %v1600
    %v1602 = vand.u32 %v1601, 4294901760
    %1603 = vmatmul.mubr.f32.gmra.mrb[0].mxu0 %v1602
    %v1604 = vpop.f32.mrb[0].mxu0
    %v1605 = vadd.f32 %v1518, %v1604
    %v1606 = vpop.f32.mrb[0].mxu0
    %v1607 = vadd.f32 %v1520, %v1606
    %1608 = vdwg.mxu0
    %v1609 = vand.u32 %v1213, 4294901760
    %v1610 = vsub.f32 %v1213, %v1609
    %v1611 = vand.u32 %v1610, 4294901760
    %1612 = vmatprep.subr.mxu0 %v1611
    %v1613 = vand.u32 %v1211, 4294901760
    %v1614 = vsub.f32 %v1211, %v1613
    %v1615 = vand.u32 %v1614, 4294901760
    %1616 = vmatpush1.msra.mxu0 %v1615
    %v1617 = vand.u32 %v1221, 4294901760
    %v1618 = vsub.f32 %v1221, %v1617
    %v1619 = vand.u32 %v1618, 4294901760
    %1620 = vmatprep.subr.mxu0 %v1619
    %v1621 = vand.u32 %v1219, 4294901760
    %v1622 = vsub.f32 %v1219, %v1621
    %v1623 = vand.u32 %v1622, 4294901760
    %1624 = vmatpush1.msra.mxu0 %v1623
    %1625 = vmatprep.subr.mxu0 0.0
    %1626 = vmatpush1.msra.mxu0 0.0
    %1627 = vmatprep.subr.mxu0 0.0
    %1628 = vmatpush1.msra.mxu0 0.0
    %1629 = vmatprep.subr.mxu0 0.0
    %1630 = vmatpush1.msra.mxu0 0.0
    %1631 = vmatprep.subr.mxu0 0.0
    %1632 = vmatpush1.msra.mxu0 0.0
    %1633 = vmatprep.subr.mxu0 0.0
    %1634 = vmatpush1.msra.mxu0 0.0
    %1635 = vmatprep.subr.mxu0 0.0
    %1636 = vmatpush1.msra.mxu0 0.0
    %1637 = vmatprep.subr.mxu0 0.0
    %1638 = vmatpush1.msra.mxu0 0.0
    %1639 = vmatprep.subr.mxu0 0.0
    %1640 = vmatpush1.msra.mxu0 0.0
    %1641 = vmatprep.subr.mxu0 0.0
    %1642 = vmatpush1.msra.mxu0 0.0
    %1643 = vmatprep.subr.mxu0 0.0
    %1644 = vmatpush1.msra.mxu0 0.0
    %1645 = vmatprep.subr.mxu0 0.0
    %1646 = vmatpush1.msra.mxu0 0.0
    %1647 = vmatprep.subr.mxu0 0.0
    %1648 = vmatpush1.msra.mxu0 0.0
    %1649 = vmatprep.subr.mxu0 0.0
    %1650 = vmatpush1.msra.mxu0 0.0
    %1651 = vmatprep.subr.mxu0 0.0
    %1652 = vmatpush1.msra.mxu0 0.0
    %1653 = vmatprep.subr.mxu0 0.0
    %1654 = vmatpush1.msra.mxu0 0.0
    %1655 = vmatprep.subr.mxu0 0.0
    %1656 = vmatpush1.msra.mxu0 0.0
    %1657 = vmatprep.subr.mxu0 0.0
    %1658 = vmatpush1.msra.mxu0 0.0
    %1659 = vmatprep.subr.mxu0 0.0
    %1660 = vmatpush1.msra.mxu0 0.0
    %1661 = vmatprep.subr.mxu0 0.0
    %1662 = vmatpush1.msra.mxu0 0.0
    %1663 = vmatprep.subr.mxu0 0.0
    %1664 = vmatpush1.msra.mxu0 0.0
    %1665 = vmatprep.subr.mxu0 0.0
    %1666 = vmatpush1.msra.mxu0 0.0
    %1667 = vmatprep.subr.mxu0 0.0
    %1668 = vmatpush1.msra.mxu0 0.0
    %1669 = vmatprep.subr.mxu0 0.0
    %1670 = vmatpush1.msra.mxu0 0.0
    %1671 = vmatprep.subr.mxu0 0.0
    %1672 = vmatpush1.msra.mxu0 0.0
    %1673 = vmatprep.subr.mxu0 0.0
    %1674 = vmatpush1.msra.mxu0 0.0
    %1675 = vmatprep.subr.mxu0 0.0
    %1676 = vmatpush1.msra.mxu0 0.0
    %1677 = vmatprep.subr.mxu0 0.0
    %1678 = vmatpush1.msra.mxu0 0.0
    %1679 = vmatprep.subr.mxu0 0.0
    %1680 = vmatpush1.msra.mxu0 0.0
    %1681 = vmatprep.subr.mxu0 0.0
    %1682 = vmatpush1.msra.mxu0 0.0
    %1683 = vmatprep.subr.mxu0 0.0
    %1684 = vmatpush1.msra.mxu0 0.0
    %1685 = vmatprep.mubr.f32.mxu0 0.0
    %v1686 = vand.u32 %v1238, 4294901760
    %1687 = vmatmul.mubr.f32.gmra.mrb[0].mxu0 %v1686
    %v1688 = vpop.f32.mrb[0].mxu0
    %v1689 = vadd.f32 %v1596, %v1688
    %v1690 = vpop.f32.mrb[0].mxu0
    %v1691 = vadd.f32 %v1598, %v1690
    %1692 = vmatprep.mubr.f32.mxu0 0.0
    %v1693 = vand.u32 %v1241, 4294901760
    %1694 = vmatmul.mubr.f32.gmra.mrb[0].mxu0 %v1693
    %v1695 = vpop.f32.mrb[0].mxu0
    %v1696 = vadd.f32 %v1605, %v1695
    %v1697 = vpop.f32.mrb[0].mxu0
    %v1698 = vadd.f32 %v1607, %v1697
    %1699 = vdwg.mxu0
    %v1700 = vand.u32 %v1213, 4294901760
    %1701 = vmatprep.subr.mxu0 %v1700
    %v1702 = vand.u32 %v1211, 4294901760
    %1703 = vmatpush1.msra.mxu0 %v1702
    %v1704 = vand.u32 %v1221, 4294901760
    %1705 = vmatprep.subr.mxu0 %v1704
    %v1706 = vand.u32 %v1219, 4294901760
    %1707 = vmatpush1.msra.mxu0 %v1706
    %1708 = vmatprep.subr.mxu0 0.0
    %1709 = vmatpush1.msra.mxu0 0.0
    %1710 = vmatprep.subr.mxu0 0.0
    %1711 = vmatpush1.msra.mxu0 0.0
    %1712 = vmatprep.subr.mxu0 0.0
    %1713 = vmatpush1.msra.mxu0 0.0
    %1714 = vmatprep.subr.mxu0 0.0
    %1715 = vmatpush1.msra.mxu0 0.0
    %1716 = vmatprep.subr.mxu0 0.0
    %1717 = vmatpush1.msra.mxu0 0.0
    %1718 = vmatprep.subr.mxu0 0.0
    %1719 = vmatpush1.msra.mxu0 0.0
    %1720 = vmatprep.subr.mxu0 0.0
    %1721 = vmatpush1.msra.mxu0 0.0
    %1722 = vmatprep.subr.mxu0 0.0
    %1723 = vmatpush1.msra.mxu0 0.0
    %1724 = vmatprep.subr.mxu0 0.0
    %1725 = vmatpush1.msra.mxu0 0.0
    %1726 = vmatprep.subr.mxu0 0.0
    %1727 = vmatpush1.msra.mxu0 0.0
    %1728 = vmatprep.subr.mxu0 0.0
    %1729 = vmatpush1.msra.mxu0 0.0
    %1730 = vmatprep.subr.mxu0 0.0
    %1731 = vmatpush1.msra.mxu0 0.0
    %1732 = vmatprep.subr.mxu0 0.0
    %1733 = vmatpush1.msra.mxu0 0.0
    %1734 = vmatprep.subr.mxu0 0.0
    %1735 = vmatpush1.msra.mxu0 0.0
    %1736 = vmatprep.subr.mxu0 0.0
    %1737 = vmatpush1.msra.mxu0 0.0
    %1738 = vmatprep.subr.mxu0 0.0
    %1739 = vmatpush1.msra.mxu0 0.0
    %1740 = vmatprep.subr.mxu0 0.0
    %1741 = vmatpush1.msra.mxu0 0.0
    %1742 = vmatprep.subr.mxu0 0.0
    %1743 = vmatpush1.msra.mxu0 0.0
    %1744 = vmatprep.subr.mxu0 0.0
    %1745 = vmatpush1.msra.mxu0 0.0
    %1746 = vmatprep.subr.mxu0 0.0
    %1747 = vmatpush1.msra.mxu0 0.0
    %1748 = vmatprep.subr.mxu0 0.0
    %1749 = vmatpush1.msra.mxu0 0.0
    %1750 = vmatprep.subr.mxu0 0.0
    %1751 = vmatpush1.msra.mxu0 0.0
    %1752 = vmatprep.subr.mxu0 0.0
    %1753 = vmatpush1.msra.mxu0 0.0
    %1754 = vmatprep.subr.mxu0 0.0
    %1755 = vmatpush1.msra.mxu0 0.0
    %1756 = vmatprep.subr.mxu0 0.0
    %1757 = vmatpush1.msra.mxu0 0.0
    %1758 = vmatprep.subr.mxu0 0.0
    %1759 = vmatpush1.msra.mxu0 0.0
    %1760 = vmatprep.subr.mxu0 0.0
    %1761 = vmatpush1.msra.mxu0 0.0
    %1762 = vmatprep.subr.mxu0 0.0
    %1763 = vmatpush1.msra.mxu0 0.0
    %1764 = vmatprep.subr.mxu0 0.0
    %1765 = vmatpush1.msra.mxu0 0.0
    %1766 = vmatprep.subr.mxu0 0.0
    %1767 = vmatpush1.msra.mxu0 0.0
    %1768 = vmatprep.mubr.f32.mxu0 0.0
    %v1769 = vand.u32 %v1238, 4294901760
    %1770 = vmatmul.mubr.f32.gmra.mrb[0].mxu0 %v1769
    %v1771 = vpop.f32.mrb[0].mxu0
    %v1772 = vadd.f32 %v1689, %v1771
    %v1773 = vpop.f32.mrb[0].mxu0
    %v1774 = vadd.f32 %v1691, %v1773
    %1775 = vmatprep.mubr.f32.mxu0 0.0
    %v1776 = vand.u32 %v1241, 4294901760
    %1777 = vmatmul.mubr.f32.gmra.mrb[0].mxu0 %v1776
    %v1778 = vpop.f32.mrb[0].mxu0
    %v1779 = vadd.f32 %v1696, %v1778
    %v1780 = vpop.f32.mrb[0].mxu0
    %v1781 = vadd.f32 %v1698, %v1780
    %1782 = vdwg.mxu0
    %v1783 = vxor.u32 %v1772, 2147483648
    %v1784 = vxor.u32 %v1774, 2147483648
    %v1785 = vxor.u32 %v1779, 2147483648
    %v1786 = vxor.u32 %v1781, 2147483648
    %v1787 = vmul.f32 %v1783, 1.442695
    %v1788 = vpow.pop %v1787
    %v1789 = vmul.f32 %v1784, 1.442695
    %v1790 = vpow.pop %v1789
    %v1791 = vmul.f32 %v1785, 1.442695
    %v1792 = vpow.pop %v1791
    %v1793 = vmul.f32 %v1786, 1.442695
    %v1794 = vpow.pop %v1793
    %v1795 = vadd.f32 %v1788, 1.0
    %v1796 = vadd.f32 %v1790, 1.0
    %v1797 = vadd.f32 %v1792, 1.0
    %v1798 = vadd.f32 %v1794, 1.0
    %v1799 = vrcp.pop %v1795
    %v1800 = vmul.f32 1.0, %v1799
    %v1801 = vrcp.pop %v1796
    %v1802 = vmul.f32 1.0, %v1801
    %v1803 = vrcp.pop %v1797
    %v1804 = vmul.f32 1.0, %v1803
    %v1805 = vrcp.pop %v1798
    %v1806 = vmul.f32 1.0, %v1805
    %v1807 = vld [vmem:[%s3] sm:$0xff]
    %v1808 = vld [vmem:[%s3 + $0x8] sm:$0xff]
    %v1809 = vlaneseq
    %v1810 = vand.u32 %v1809, 127
    %1811 = vset.pattern.permute.xlu0 0
    %1812 = vperm.xlu0 %1811, %v1807
    %v1813 = vpop.permute.xlu0 %1812
    %1814 = vset.pattern.permute.xlu0 0
    %1815 = vperm.xlu0 %1814, %v1808
    %v1816 = vpop.permute.xlu0 %1815
    %vm1817 = vcmp.eq.s32.totalorder %v1810, %v1813
    %vm1818 = vcmp.eq.s32.totalorder %v1810, %v1816
    %v1819 = vsel %vm1817, 1, 0
    %v1820 = vsel %vm1818, 1, 0
    %v1821 = vcvt.s32.f32 %v1819
    %v1822 = vcvt.s32.f32 %v1820
    %v1823 = vld [vmem:[%s2] sm:$0xff]
    %v1824 = vld [vmem:[%s2 + $0x8] sm:$0xff]
    %1827 = vrot.lane.b32.xlu0 %v1823, 64
    %v1828 = vpop.permute.xlu0 %1827
    %1829 = vrot.lane.b32.xlu0 %v1824, 64
    %v1830 = vpop.permute.xlu0 %1829
    %v1833 = vsel %vm78, %v1802, %v1828
    %v1834 = vsel %vm78, %v1806, %v1830
    %v1836 = vsel %vm1236, %v1821, 0
    %v1839 = vsel %vm1236, %v1822, 0
    %v1841 = vand.u32 %v1833, 4294901760
    %1842 = vmatprep.subr.mxu0 %v1841
    %v1843 = vand.u32 %v1800, 4294901760
    %1844 = vmatpush1.msra.mxu0 %v1843
    %v1845 = vand.u32 %v1834, 4294901760
    %1846 = vmatprep.subr.mxu0 %v1845
    %v1847 = vand.u32 %v1804, 4294901760
    %1848 = vmatpush1.msra.mxu0 %v1847
    %1849 = vmatprep.subr.mxu0 0.0
    %1850 = vmatpush1.msra.mxu0 0.0
    %1851 = vmatprep.subr.mxu0 0.0
    %1852 = vmatpush1.msra.mxu0 0.0
    %1853 = vmatprep.subr.mxu0 0.0
    %1854 = vmatpush1.msra.mxu0 0.0
    %1855 = vmatprep.subr.mxu0 0.0
    %1856 = vmatpush1.msra.mxu0 0.0
    %1857 = vmatprep.subr.mxu0 0.0
    %1858 = vmatpush1.msra.mxu0 0.0
    %1859 = vmatprep.subr.mxu0 0.0
    %1860 = vmatpush1.msra.mxu0 0.0
    %1861 = vmatprep.subr.mxu0 0.0
    %1862 = vmatpush1.msra.mxu0 0.0
    %1863 = vmatprep.subr.mxu0 0.0
    %1864 = vmatpush1.msra.mxu0 0.0
    %1865 = vmatprep.subr.mxu0 0.0
    %1866 = vmatpush1.msra.mxu0 0.0
    %1867 = vmatprep.subr.mxu0 0.0
    %1868 = vmatpush1.msra.mxu0 0.0
    %1869 = vmatprep.subr.mxu0 0.0
    %1870 = vmatpush1.msra.mxu0 0.0
    %1871 = vmatprep.subr.mxu0 0.0
    %1872 = vmatpush1.msra.mxu0 0.0
    %1873 = vmatprep.subr.mxu0 0.0
    %1874 = vmatpush1.msra.mxu0 0.0
    %1875 = vmatprep.subr.mxu0 0.0
    %1876 = vmatpush1.msra.mxu0 0.0
    %1877 = vmatprep.subr.mxu0 0.0
    %1878 = vmatpush1.msra.mxu0 0.0
    %1879 = vmatprep.subr.mxu0 0.0
    %1880 = vmatpush1.msra.mxu0 0.0
    %1881 = vmatprep.subr.mxu0 0.0
    %1882 = vmatpush1.msra.mxu0 0.0
    %1883 = vmatprep.subr.mxu0 0.0
    %1884 = vmatpush1.msra.mxu0 0.0
    %1885 = vmatprep.subr.mxu0 0.0
    %1886 = vmatpush1.msra.mxu0 0.0
    %1887 = vmatprep.subr.mxu0 0.0
    %1888 = vmatpush1.msra.mxu0 0.0
    %1889 = vmatprep.subr.mxu0 0.0
    %1890 = vmatpush1.msra.mxu0 0.0
    %1891 = vmatprep.subr.mxu0 0.0
    %1892 = vmatpush1.msra.mxu0 0.0
    %1893 = vmatprep.subr.mxu0 0.0
    %1894 = vmatpush1.msra.mxu0 0.0
    %1895 = vmatprep.subr.mxu0 0.0
    %1896 = vmatpush1.msra.mxu0 0.0
    %1897 = vmatprep.subr.mxu0 0.0
    %1898 = vmatpush1.msra.mxu0 0.0
    %1899 = vmatprep.subr.mxu0 0.0
    %1900 = vmatpush1.msra.mxu0 0.0
    %1901 = vmatprep.subr.mxu0 0.0
    %1902 = vmatpush1.msra.mxu0 0.0
    %1903 = vmatprep.subr.mxu0 0.0
    %1904 = vmatpush1.msra.mxu0 0.0
    %1905 = vmatprep.subr.mxu0 0.0
    %1906 = vmatpush1.msra.mxu0 0.0
    %1907 = vmatprep.subr.mxu0 0.0
    %1908 = vmatpush1.msra.mxu0 0.0
    %1909 = vmatprep.mubr.f32.mxu0 0.0
    %v1910 = vand.u32 %v1836, 4294901760
    %v1911 = vsub.f32 %v1836, %v1910
    %v1912 = vand.u32 %v1911, 4294901760
    %v1913 = vsub.f32 %v1911, %v1912
    %v1914 = vand.u32 %v1913, 4294901760
    %1915 = vmatmul.mubr.f32.gmra.mrb[0].mxu0 %v1914
    %v1916 = vpop.f32.mrb[0].mxu0
    %v1917 = vadd.f32 0.0, %v1916
    %v1918 = vpop.f32.mrb[0].mxu0
    %v1919 = vadd.f32 0.0, %v1918
    %1920 = vmatprep.mubr.f32.mxu0 0.0
    %v1921 = vand.u32 %v1839, 4294901760
    %v1922 = vsub.f32 %v1839, %v1921
    %v1923 = vand.u32 %v1922, 4294901760
    %v1924 = vsub.f32 %v1922, %v1923
    %v1925 = vand.u32 %v1924, 4294901760
    %1926 = vmatmul.mubr.f32.gmra.mrb[0].mxu0 %v1925
    %v1927 = vpop.f32.mrb[0].mxu0
    %v1928 = vadd.f32 0.0, %v1927
    %v1929 = vpop.f32.mrb[0].mxu0
    %v1930 = vadd.f32 0.0, %v1929
    %1931 = vdwg.mxu0
    %v1932 = vand.u32 %v1833, 4294901760
    %v1933 = vsub.f32 %v1833, %v1932
    %v1934 = vand.u32 %v1933, 4294901760
    %v1935 = vsub.f32 %v1933, %v1934
    %v1936 = vand.u32 %v1935, 4294901760
    %1937 = vmatprep.subr.mxu0 %v1936
    %v1938 = vand.u32 %v1800, 4294901760
    %v1939 = vsub.f32 %v1800, %v1938
    %v1940 = vand.u32 %v1939, 4294901760
    %v1941 = vsub.f32 %v1939, %v1940
    %v1942 = vand.u32 %v1941, 4294901760
    %1943 = vmatpush1.msra.mxu0 %v1942
    %v1944 = vand.u32 %v1834, 4294901760
    %v1945 = vsub.f32 %v1834, %v1944
    %v1946 = vand.u32 %v1945, 4294901760
    %v1947 = vsub.f32 %v1945, %v1946
    %v1948 = vand.u32 %v1947, 4294901760
    %1949 = vmatprep.subr.mxu0 %v1948
    %v1950 = vand.u32 %v1804, 4294901760
    %v1951 = vsub.f32 %v1804, %v1950
    %v1952 = vand.u32 %v1951, 4294901760
    %v1953 = vsub.f32 %v1951, %v1952
    %v1954 = vand.u32 %v1953, 4294901760
    %1955 = vmatpush1.msra.mxu0 %v1954
    %1956 = vmatprep.subr.mxu0 0.0
    %1957 = vmatpush1.msra.mxu0 0.0
    %1958 = vmatprep.subr.mxu0 0.0
    %1959 = vmatpush1.msra.mxu0 0.0
    %1960 = vmatprep.subr.mxu0 0.0
    %1961 = vmatpush1.msra.mxu0 0.0
    %1962 = vmatprep.subr.mxu0 0.0
    %1963 = vmatpush1.msra.mxu0 0.0
    %1964 = vmatprep.subr.mxu0 0.0
    %1965 = vmatpush1.msra.mxu0 0.0
    %1966 = vmatprep.subr.mxu0 0.0
    %1967 = vmatpush1.msra.mxu0 0.0
    %1968 = vmatprep.subr.mxu0 0.0
    %1969 = vmatpush1.msra.mxu0 0.0
    %1970 = vmatprep.subr.mxu0 0.0
    %1971 = vmatpush1.msra.mxu0 0.0
    %1972 = vmatprep.subr.mxu0 0.0
    %1973 = vmatpush1.msra.mxu0 0.0
    %1974 = vmatprep.subr.mxu0 0.0
    %1975 = vmatpush1.msra.mxu0 0.0
    %1976 = vmatprep.subr.mxu0 0.0
    %1977 = vmatpush1.msra.mxu0 0.0
    %1978 = vmatprep.subr.mxu0 0.0
    %1979 = vmatpush1.msra.mxu0 0.0
    %1980 = vmatprep.subr.mxu0 0.0
    %1981 = vmatpush1.msra.mxu0 0.0
    %1982 = vmatprep.subr.mxu0 0.0
    %1983 = vmatpush1.msra.mxu0 0.0
    %1984 = vmatprep.subr.mxu0 0.0
    %1985 = vmatpush1.msra.mxu0 0.0
    %1986 = vmatprep.subr.mxu0 0.0
    %1987 = vmatpush1.msra.mxu0 0.0
    %1988 = vmatprep.subr.mxu0 0.0
    %1989 = vmatpush1.msra.mxu0 0.0
    %1990 = vmatprep.subr.mxu0 0.0
    %1991 = vmatpush1.msra.mxu0 0.0
    %1992 = vmatprep.subr.mxu0 0.0
    %1993 = vmatpush1.msra.mxu0 0.0
    %1994 = vmatprep.subr.mxu0 0.0
    %1995 = vmatpush1.msra.mxu0 0.0
    %1996 = vmatprep.subr.mxu0 0.0
    %1997 = vmatpush1.msra.mxu0 0.0
    %1998 = vmatprep.subr.mxu0 0.0
    %1999 = vmatpush1.msra.mxu0 0.0
    %2000 = vmatprep.subr.mxu0 0.0
    %2001 = vmatpush1.msra.mxu0 0.0
    %2002 = vmatprep.subr.mxu0 0.0
    %2003 = vmatpush1.msra.mxu0 0.0
    %2004 = vmatprep.subr.mxu0 0.0
    %2005 = vmatpush1.msra.mxu0 0.0
    %2006 = vmatprep.subr.mxu0 0.0
    %2007 = vmatpush1.msra.mxu0 0.0
    %2008 = vmatprep.subr.mxu0 0.0
    %2009 = vmatpush1.msra.mxu0 0.0
    %2010 = vmatprep.subr.mxu0 0.0
    %2011 = vmatpush1.msra.mxu0 0.0
    %2012 = vmatprep.subr.mxu0 0.0
    %2013 = vmatpush1.msra.mxu0 0.0
    %2014 = vmatprep.subr.mxu0 0.0
    %2015 = vmatpush1.msra.mxu0 0.0
    %2016 = vmatprep.mubr.f32.mxu0 0.0
    %v2017 = vand.u32 %v1836, 4294901760
    %2018 = vmatmul.mubr.f32.gmra.mrb[0].mxu0 %v2017
    %v2019 = vpop.f32.mrb[0].mxu0
    %v2020 = vadd.f32 %v1917, %v2019
    %v2021 = vpop.f32.mrb[0].mxu0
    %v2022 = vadd.f32 %v1919, %v2021
    %2023 = vmatprep.mubr.f32.mxu0 0.0
    %v2024 = vand.u32 %v1839, 4294901760
    %2025 = vmatmul.mubr.f32.gmra.mrb[0].mxu0 %v2024
    %v2026 = vpop.f32.mrb[0].mxu0
    %v2027 = vadd.f32 %v1928, %v2026
    %v2028 = vpop.f32.mrb[0].mxu0
    %v2029 = vadd.f32 %v1930, %v2028
    %2030 = vdwg.mxu0
    %v2031 = vand.u32 %v1833, 4294901760
    %v2032 = vsub.f32 %v1833, %v2031
    %2033 = vmatprep.subr.mxu0 %v2032
    %v2034 = vand.u32 %v1800, 4294901760
    %v2035 = vsub.f32 %v1800, %v2034
    %2036 = vmatpush1.msra.mxu0 %v2035
    %v2037 = vand.u32 %v1834, 4294901760
    %v2038 = vsub.f32 %v1834, %v2037
    %2039 = vmatprep.subr.mxu0 %v2038
    %v2040 = vand.u32 %v1804, 4294901760
    %v2041 = vsub.f32 %v1804, %v2040
    %2042 = vmatpush1.msra.mxu0 %v2041
    %2043 = vmatprep.subr.mxu0 0.0
    %2044 = vmatpush1.msra.mxu0 0.0
    %2045 = vmatprep.subr.mxu0 0.0
    %2046 = vmatpush1.msra.mxu0 0.0
    %2047 = vmatprep.subr.mxu0 0.0
    %2048 = vmatpush1.msra.mxu0 0.0
    %2049 = vmatprep.subr.mxu0 0.0
    %2050 = vmatpush1.msra.mxu0 0.0
    %2051 = vmatprep.subr.mxu0 0.0
    %2052 = vmatpush1.msra.mxu0 0.0
    %2053 = vmatprep.subr.mxu0 0.0
    %2054 = vmatpush1.msra.mxu0 0.0
    %2055 = vmatprep.subr.mxu0 0.0
    %2056 = vmatpush1.msra.mxu0 0.0
    %2057 = vmatprep.subr.mxu0 0.0
    %2058 = vmatpush1.msra.mxu0 0.0
    %2059 = vmatprep.subr.mxu0 0.0
    %2060 = vmatpush1.msra.mxu0 0.0
    %2061 = vmatprep.subr.mxu0 0.0
    %2062 = vmatpush1.msra.mxu0 0.0
    %2063 = vmatprep.subr.mxu0 0.0
    %2064 = vmatpush1.msra.mxu0 0.0
    %2065 = vmatprep.subr.mxu0 0.0
    %2066 = vmatpush1.msra.mxu0 0.0
    %2067 = vmatprep.subr.mxu0 0.0
    %2068 = vmatpush1.msra.mxu0 0.0
    %2069 = vmatprep.subr.mxu0 0.0
    %2070 = vmatpush1.msra.mxu0 0.0
    %2071 = vmatprep.subr.mxu0 0.0
    %2072 = vmatpush1.msra.mxu0 0.0
    %2073 = vmatprep.subr.mxu0 0.0
    %2074 = vmatpush1.msra.mxu0 0.0
    %2075 = vmatprep.subr.mxu0 0.0
    %2076 = vmatpush1.msra.mxu0 0.0
    %2077 = vmatprep.subr.mxu0 0.0
    %2078 = vmatpush1.msra.mxu0 0.0
    %2079 = vmatprep.subr.mxu0 0.0
    %2080 = vmatpush1.msra.mxu0 0.0
    %2081 = vmatprep.subr.mxu0 0.0
    %2082 = vmatpush1.msra.mxu0 0.0
    %2083 = vmatprep.subr.mxu0 0.0
    %2084 = vmatpush1.msra.mxu0 0.0
    %2085 = vmatprep.subr.mxu0 0.0
    %2086 = vmatpush1.msra.mxu0 0.0
    %2087 = vmatprep.subr.mxu0 0.0
    %2088 = vmatpush1.msra.mxu0 0.0
    %2089 = vmatprep.subr.mxu0 0.0
    %2090 = vmatpush1.msra.mxu0 0.0
    %2091 = vmatprep.subr.mxu0 0.0
    %2092 = vmatpush1.msra.mxu0 0.0
    %2093 = vmatprep.subr.mxu0 0.0
    %2094 = vmatpush1.msra.mxu0 0.0
    %2095 = vmatprep.subr.mxu0 0.0
    %2096 = vmatpush1.msra.mxu0 0.0
    %2097 = vmatprep.subr.mxu0 0.0
    %2098 = vmatpush1.msra.mxu0 0.0
    %2099 = vmatprep.subr.mxu0 0.0
    %2100 = vmatpush1.msra.mxu0 0.0
    %2101 = vmatprep.subr.mxu0 0.0
    %2102 = vmatpush1.msra.mxu0 0.0
    %2103 = vmatprep.mubr.f32.mxu0 0.0
    %v2104 = vand.u32 %v1836, 4294901760
    %v2105 = vsub.f32 %v1836, %v2104
    %2106 = vmatmul.mubr.f32.gmra.mrb[0].mxu0 %v2105
    %v2107 = vpop.f32.mrb[0].mxu0
    %v2108 = vadd.f32 %v2020, %v2107
    %v2109 = vpop.f32.mrb[0].mxu0
    %v2110 = vadd.f32 %v2022, %v2109
    %2111 = vmatprep.mubr.f32.mxu0 0.0
    %v2112 = vand.u32 %v1839, 4294901760
    %v2113 = vsub.f32 %v1839, %v2112
    %2114 = vmatmul.mubr.f32.gmra.mrb[0].mxu0 %v2113
    %v2115 = vpop.f32.mrb[0].mxu0
    %v2116 = vadd.f32 %v2027, %v2115
    %v2117 = vpop.f32.mrb[0].mxu0
    %v2118 = vadd.f32 %v2029, %v2117
    %2119 = vdwg.mxu0
    %v2120 = vand.u32 %v1833, 4294901760
    %2121 = vmatprep.subr.mxu0 %v2120
    %v2122 = vand.u32 %v1800, 4294901760
    %2123 = vmatpush1.msra.mxu0 %v2122
    %v2124 = vand.u32 %v1834, 4294901760
    %2125 = vmatprep.subr.mxu0 %v2124
    %v2126 = vand.u32 %v1804, 4294901760
    %2127 = vmatpush1.msra.mxu0 %v2126
    %2128 = vmatprep.subr.mxu0 0.0
    %2129 = vmatpush1.msra.mxu0 0.0
    %2130 = vmatprep.subr.mxu0 0.0
    %2131 = vmatpush1.msra.mxu0 0.0
    %2132 = vmatprep.subr.mxu0 0.0
    %2133 = vmatpush1.msra.mxu0 0.0
    %2134 = vmatprep.subr.mxu0 0.0
    %2135 = vmatpush1.msra.mxu0 0.0
    %2136 = vmatprep.subr.mxu0 0.0
    %2137 = vmatpush1.msra.mxu0 0.0
    %2138 = vmatprep.subr.mxu0 0.0
    %2139 = vmatpush1.msra.mxu0 0.0
    %2140 = vmatprep.subr.mxu0 0.0
    %2141 = vmatpush1.msra.mxu0 0.0
    %2142 = vmatprep.subr.mxu0 0.0
    %2143 = vmatpush1.msra.mxu0 0.0
    %2144 = vmatprep.subr.mxu0 0.0
    %2145 = vmatpush1.msra.mxu0 0.0
    %2146 = vmatprep.subr.mxu0 0.0
    %2147 = vmatpush1.msra.mxu0 0.0
    %2148 = vmatprep.subr.mxu0 0.0
    %2149 = vmatpush1.msra.mxu0 0.0
    %2150 = vmatprep.subr.mxu0 0.0
    %2151 = vmatpush1.msra.mxu0 0.0
    %2152 = vmatprep.subr.mxu0 0.0
    %2153 = vmatpush1.msra.mxu0 0.0
    %2154 = vmatprep.subr.mxu0 0.0
    %2155 = vmatpush1.msra.mxu0 0.0
    %2156 = vmatprep.subr.mxu0 0.0
    %2157 = vmatpush1.msra.mxu0 0.0
    %2158 = vmatprep.subr.mxu0 0.0
    %2159 = vmatpush1.msra.mxu0 0.0
    %2160 = vmatprep.subr.mxu0 0.0
    %2161 = vmatpush1.msra.mxu0 0.0
    %2162 = vmatprep.subr.mxu0 0.0
    %2163 = vmatpush1.msra.mxu0 0.0
    %2164 = vmatprep.subr.mxu0 0.0
    %2165 = vmatpush1.msra.mxu0 0.0
    %2166 = vmatprep.subr.mxu0 0.0
    %2167 = vmatpush1.msra.mxu0 0.0
    %2168 = vmatprep.subr.mxu0 0.0
    %2169 = vmatpush1.msra.mxu0 0.0
    %2170 = vmatprep.subr.mxu0 0.0
    %2171 = vmatpush1.msra.mxu0 0.0
    %2172 = vmatprep.subr.mxu0 0.0
    %2173 = vmatpush1.msra.mxu0 0.0
    %2174 = vmatprep.subr.mxu0 0.0
    %2175 = vmatpush1.msra.mxu0 0.0
    %2176 = vmatprep.subr.mxu0 0.0
    %2177 = vmatpush1.msra.mxu0 0.0
    %2178 = vmatprep.subr.mxu0 0.0
    %2179 = vmatpush1.msra.mxu0 0.0
    %2180 = vmatprep.subr.mxu0 0.0
    %2181 = vmatpush1.msra.mxu0 0.0
    %2182 = vmatprep.subr.mxu0 0.0
    %2183 = vmatpush1.msra.mxu0 0.0
    %2184 = vmatprep.subr.mxu0 0.0
    %2185 = vmatpush1.msra.mxu0 0.0
    %2186 = vmatprep.subr.mxu0 0.0
    %2187 = vmatpush1.msra.mxu0 0.0
    %2188 = vmatprep.mubr.f32.mxu0 0.0
    %v2189 = vand.u32 %v1836, 4294901760
    %v2190 = vsub.f32 %v1836, %v2189
    %v2191 = vand.u32 %v2190, 4294901760
    %2192 = vmatmul.mubr.f32.gmra.mrb[0].mxu0 %v2191
    %v2193 = vpop.f32.mrb[0].mxu0
    %v2194 = vadd.f32 %v2108, %v2193
    %v2195 = vpop.f32.mrb[0].mxu0
    %v2196 = vadd.f32 %v2110, %v2195
    %2197 = vmatprep.mubr.f32.mxu0 0.0
    %v2198 = vand.u32 %v1839, 4294901760
    %v2199 = vsub.f32 %v1839, %v2198
    %v2200 = vand.u32 %v2199, 4294901760
    %2201 = vmatmul.mubr.f32.gmra.mrb[0].mxu0 %v2200
    %v2202 = vpop.f32.mrb[0].mxu0
    %v2203 = vadd.f32 %v2116, %v2202
    %v2204 = vpop.f32.mrb[0].mxu0
    %v2205 = vadd.f32 %v2118, %v2204
    %2206 = vdwg.mxu0
    %v2207 = vand.u32 %v1833, 4294901760
    %v2208 = vsub.f32 %v1833, %v2207
    %v2209 = vand.u32 %v2208, 4294901760
    %2210 = vmatprep.subr.mxu0 %v2209
    %v2211 = vand.u32 %v1800, 4294901760
    %v2212 = vsub.f32 %v1800, %v2211
    %v2213 = vand.u32 %v2212, 4294901760
    %2214 = vmatpush1.msra.mxu0 %v2213
    %v2215 = vand.u32 %v1834, 4294901760
    %v2216 = vsub.f32 %v1834, %v2215
    %v2217 = vand.u32 %v2216, 4294901760
    %2218 = vmatprep.subr.mxu0 %v2217
    %v2219 = vand.u32 %v1804, 4294901760
    %v2220 = vsub.f32 %v1804, %v2219
    %v2221 = vand.u32 %v2220, 4294901760
    %2222 = vmatpush1.msra.mxu0 %v2221
    %2223 = vmatprep.subr.mxu0 0.0
    %2224 = vmatpush1.msra.mxu0 0.0
    %2225 = vmatprep.subr.mxu0 0.0
    %2226 = vmatpush1.msra.mxu0 0.0
    %2227 = vmatprep.subr.mxu0 0.0
    %2228 = vmatpush1.msra.mxu0 0.0
    %2229 = vmatprep.subr.mxu0 0.0
    %2230 = vmatpush1.msra.mxu0 0.0
    %2231 = vmatprep.subr.mxu0 0.0
    %2232 = vmatpush1.msra.mxu0 0.0
    %2233 = vmatprep.subr.mxu0 0.0
    %2234 = vmatpush1.msra.mxu0 0.0
    %2235 = vmatprep.subr.mxu0 0.0
    %2236 = vmatpush1.msra.mxu0 0.0
    %2237 = vmatprep.subr.mxu0 0.0
    %2238 = vmatpush1.msra.mxu0 0.0
    %2239 = vmatprep.subr.mxu0 0.0
    %2240 = vmatpush1.msra.mxu0 0.0
    %2241 = vmatprep.subr.mxu0 0.0
    %2242 = vmatpush1.msra.mxu0 0.0
    %2243 = vmatprep.subr.mxu0 0.0
    %2244 = vmatpush1.msra.mxu0 0.0
    %2245 = vmatprep.subr.mxu0 0.0
    %2246 = vmatpush1.msra.mxu0 0.0
    %2247 = vmatprep.subr.mxu0 0.0
    %2248 = vmatpush1.msra.mxu0 0.0
    %2249 = vmatprep.subr.mxu0 0.0
    %2250 = vmatpush1.msra.mxu0 0.0
    %2251 = vmatprep.subr.mxu0 0.0
    %2252 = vmatpush1.msra.mxu0 0.0
    %2253 = vmatprep.subr.mxu0 0.0
    %2254 = vmatpush1.msra.mxu0 0.0
    %2255 = vmatprep.subr.mxu0 0.0
    %2256 = vmatpush1.msra.mxu0 0.0
    %2257 = vmatprep.subr.mxu0 0.0
    %2258 = vmatpush1.msra.mxu0 0.0
    %2259 = vmatprep.subr.mxu0 0.0
    %2260 = vmatpush1.msra.mxu0 0.0
    %2261 = vmatprep.subr.mxu0 0.0
    %2262 = vmatpush1.msra.mxu0 0.0
    %2263 = vmatprep.subr.mxu0 0.0
    %2264 = vmatpush1.msra.mxu0 0.0
    %2265 = vmatprep.subr.mxu0 0.0
    %2266 = vmatpush1.msra.mxu0 0.0
    %2267 = vmatprep.subr.mxu0 0.0
    %2268 = vmatpush1.msra.mxu0 0.0
    %2269 = vmatprep.subr.mxu0 0.0
    %2270 = vmatpush1.msra.mxu0 0.0
    %2271 = vmatprep.subr.mxu0 0.0
    %2272 = vmatpush1.msra.mxu0 0.0
    %2273 = vmatprep.subr.mxu0 0.0
    %2274 = vmatpush1.msra.mxu0 0.0
    %2275 = vmatprep.subr.mxu0 0.0
    %2276 = vmatpush1.msra.mxu0 0.0
    %2277 = vmatprep.subr.mxu0 0.0
    %2278 = vmatpush1.msra.mxu0 0.0
    %2279 = vmatprep.subr.mxu0 0.0
    %2280 = vmatpush1.msra.mxu0 0.0
    %2281 = vmatprep.subr.mxu0 0.0
    %2282 = vmatpush1.msra.mxu0 0.0
    %2283 = vmatprep.mubr.f32.mxu0 0.0
    %v2284 = vand.u32 %v1836, 4294901760
    %2285 = vmatmul.mubr.f32.gmra.mrb[0].mxu0 %v2284
    %v2286 = vpop.f32.mrb[0].mxu0
    %v2287 = vadd.f32 %v2194, %v2286
    %v2288 = vpop.f32.mrb[0].mxu0
    %v2289 = vadd.f32 %v2196, %v2288
    %2290 = vmatprep.mubr.f32.mxu0 0.0
    %v2291 = vand.u32 %v1839, 4294901760
    %2292 = vmatmul.mubr.f32.gmra.mrb[0].mxu0 %v2291
    %v2293 = vpop.f32.mrb[0].mxu0
    %v2294 = vadd.f32 %v2203, %v2293
    %v2295 = vpop.f32.mrb[0].mxu0
    %v2296 = vadd.f32 %v2205, %v2295
    %2297 = vdwg.mxu0
    %v2298 = vand.u32 %v1833, 4294901760
    %2299 = vmatprep.subr.mxu0 %v2298
    %v2300 = vand.u32 %v1800, 4294901760
    %2301 = vmatpush1.msra.mxu0 %v2300
    %v2302 = vand.u32 %v1834, 4294901760
    %2303 = vmatprep.subr.mxu0 %v2302
    %v2304 = vand.u32 %v1804, 4294901760
    %2305 = vmatpush1.msra.mxu0 %v2304
    %2306 = vmatprep.subr.mxu0 0.0
    %2307 = vmatpush1.msra.mxu0 0.0
    %2308 = vmatprep.subr.mxu0 0.0
    %2309 = vmatpush1.msra.mxu0 0.0
    %2310 = vmatprep.subr.mxu0 0.0
    %2311 = vmatpush1.msra.mxu0 0.0
    %2312 = vmatprep.subr.mxu0 0.0
    %2313 = vmatpush1.msra.mxu0 0.0
    %2314 = vmatprep.subr.mxu0 0.0
    %2315 = vmatpush1.msra.mxu0 0.0
    %2316 = vmatprep.subr.mxu0 0.0
    %2317 = vmatpush1.msra.mxu0 0.0
    %2318 = vmatprep.subr.mxu0 0.0
    %2319 = vmatpush1.msra.mxu0 0.0
    %2320 = vmatprep.subr.mxu0 0.0
    %2321 = vmatpush1.msra.mxu0 0.0
    %2322 = vmatprep.subr.mxu0 0.0
    %2323 = vmatpush1.msra.mxu0 0.0
    %2324 = vmatprep.subr.mxu0 0.0
    %2325 = vmatpush1.msra.mxu0 0.0
    %2326 = vmatprep.subr.mxu0 0.0
    %2327 = vmatpush1.msra.mxu0 0.0
    %2328 = vmatprep.subr.mxu0 0.0
    %2329 = vmatpush1.msra.mxu0 0.0
    %2330 = vmatprep.subr.mxu0 0.0
    %2331 = vmatpush1.msra.mxu0 0.0
    %2332 = vmatprep.subr.mxu0 0.0
    %2333 = vmatpush1.msra.mxu0 0.0
    %2334 = vmatprep.subr.mxu0 0.0
    %2335 = vmatpush1.msra.mxu0 0.0
    %2336 = vmatprep.subr.mxu0 0.0
    %2337 = vmatpush1.msra.mxu0 0.0
    %2338 = vmatprep.subr.mxu0 0.0
    %2339 = vmatpush1.msra.mxu0 0.0
    %2340 = vmatprep.subr.mxu0 0.0
    %2341 = vmatpush1.msra.mxu0 0.0
    %2342 = vmatprep.subr.mxu0 0.0
    %2343 = vmatpush1.msra.mxu0 0.0
    %2344 = vmatprep.subr.mxu0 0.0
    %2345 = vmatpush1.msra.mxu0 0.0
    %2346 = vmatprep.subr.mxu0 0.0
    %2347 = vmatpush1.msra.mxu0 0.0
    %2348 = vmatprep.subr.mxu0 0.0
    %2349 = vmatpush1.msra.mxu0 0.0
    %2350 = vmatprep.subr.mxu0 0.0
    %2351 = vmatpush1.msra.mxu0 0.0
    %2352 = vmatprep.subr.mxu0 0.0
    %2353 = vmatpush1.msra.mxu0 0.0
    %2354 = vmatprep.subr.mxu0 0.0
    %2355 = vmatpush1.msra.mxu0 0.0
    %2356 = vmatprep.subr.mxu0 0.0
    %2357 = vmatpush1.msra.mxu0 0.0
    %2358 = vmatprep.subr.mxu0 0.0
    %2359 = vmatpush1.msra.mxu0 0.0
    %2360 = vmatprep.subr.mxu0 0.0
    %2361 = vmatpush1.msra.mxu0 0.0
    %2362 = vmatprep.subr.mxu0 0.0
    %2363 = vmatpush1.msra.mxu0 0.0
    %2364 = vmatprep.subr.mxu0 0.0
    %2365 = vmatpush1.msra.mxu0 0.0
    %2366 = vmatprep.mubr.f32.mxu0 0.0
    %v2367 = vand.u32 %v1836, 4294901760
    %2368 = vmatmul.mubr.f32.gmra.mrb[0].mxu0 %v2367
    %v2369 = vpop.f32.mrb[0].mxu0
    %v2370 = vadd.f32 %v2287, %v2369
    %v2371 = vpop.f32.mrb[0].mxu0
    %v2372 = vadd.f32 %v2289, %v2371
    %2373 = vmatprep.mubr.f32.mxu0 0.0
    %v2374 = vand.u32 %v1839, 4294901760
    %2375 = vmatmul.mubr.f32.gmra.mrb[0].mxu0 %v2374
    %v2376 = vpop.f32.mrb[0].mxu0
    %v2377 = vadd.f32 %v2294, %v2376
    %v2378 = vpop.f32.mrb[0].mxu0
    %v2379 = vadd.f32 %v2296, %v2378
    %2380 = vdwg.mxu0
    %2381 = vrot.lane.b32.xlu0 %v1822, 64
    %v2382 = vpop.permute.xlu0 %2381
    %v2384 = vmul.f32 %v2372, %v2382
    %2386 = vrot.lane.b32.xlu0 %v2384, 64
    %v2387 = vpop.permute.xlu0 %2386
    %v2389 = vsel %vm1236, %v2387, 0.0
    %2390 = vadd.xlane.f32.xlu0 %v2389
    %v2391 = vpop.xlane.xlu0 %2390
    %v2392 = vld [vmem:[%s5] sm:$0xff]
    %v2393 = vld [vmem:[%s5 + $0x8] sm:$0xff]
    %v2394 = vld [vmem:[%s5 + $0x10] sm:$0xff]
    %v2395 = vld [vmem:[%s5 + $0x18] sm:$0xff]
    %v2396 = vld [vmem:[%s5 + $0x20] sm:$0xff]
    %v2397 = vld [vmem:[%s5 + $0x28] sm:$0xff]
    %v2398 = vld [vmem:[%s5 + $0x30] sm:$0xff]
    %v2399 = vld [vmem:[%s5 + $0x38] sm:$0xff]
    %v2400 = vld [vmem:[%s5 + $0x40] sm:$0xff]
    %v2401 = vld [vmem:[%s5 + $0x48] sm:$0xff]
    %v2402 = vld [vmem:[%s5 + $0x50] sm:$0xff]
    %v2403 = vld [vmem:[%s5 + $0x58] sm:$0xff]
    %v2404 = vld [vmem:[%s5 + $0x60] sm:$0xff]
    %v2405 = vld [vmem:[%s5 + $0x68] sm:$0xff]
    %v2406 = vld [vmem:[%s5 + $0x70] sm:$0xff]
    %v2407 = vld [vmem:[%s5 + $0x78] sm:$0xff]
    %v2408 = vld [vmem:[%s5 + $0x80] sm:$0xff]
    %v2409 = vld [vmem:[%s5 + $0x88] sm:$0xff]
    %v2410 = vld [vmem:[%s5 + $0x90] sm:$0xff]
    %v2411 = vld [vmem:[%s5 + $0x98] sm:$0xff]
    %v2412 = vld [vmem:[%s5 + $0xa0] sm:$0xff]
    %v2413 = vld [vmem:[%s5 + $0xa8] sm:$0xff]
    %v2414 = vld [vmem:[%s5 + $0xb0] sm:$0xff]
    %v2415 = vld [vmem:[%s5 + $0xb8] sm:$0xff]
    %v2416 = vld [vmem:[%s5 + $0xc0] sm:$0xff]
    %v2417 = vld [vmem:[%s5 + $0xc8] sm:$0xff]
    %v2418 = vld [vmem:[%s5 + $0xd0] sm:$0xff]
    %v2419 = vld [vmem:[%s5 + $0xd8] sm:$0xff]
    %v2420 = vld [vmem:[%s5 + $0xe0] sm:$0xff]
    %v2421 = vld [vmem:[%s5 + $0xe8] sm:$0xff]
    %v2422 = vld [vmem:[%s5 + $0xf0] sm:$0xff]
    %v2423 = vld [vmem:[%s5 + $0xf8] sm:$0xff]
    %v2424 = vld [vmem:[%s5 + $0x100] sm:$0xff]
    %v2425 = vld [vmem:[%s5 + $0x108] sm:$0xff]
    %v2426 = vld [vmem:[%s5 + $0x110] sm:$0xff]
    %v2427 = vld [vmem:[%s5 + $0x118] sm:$0xff]
    %v2428 = vld [vmem:[%s5 + $0x120] sm:$0xff]
    %v2429 = vld [vmem:[%s5 + $0x128] sm:$0xff]
    %v2430 = vld [vmem:[%s5 + $0x130] sm:$0xff]
    %v2431 = vld [vmem:[%s5 + $0x138] sm:$0xff]
    %v2432 = vld [vmem:[%s5 + $0x140] sm:$0xff]
    %v2433 = vld [vmem:[%s5 + $0x148] sm:$0xff]
    %v2434 = vld [vmem:[%s5 + $0x150] sm:$0xff]
    %v2435 = vld [vmem:[%s5 + $0x158] sm:$0xff]
    %v2436 = vld [vmem:[%s5 + $0x160] sm:$0xff]
    %v2437 = vld [vmem:[%s5 + $0x168] sm:$0xff]
    %v2438 = vld [vmem:[%s5 + $0x170] sm:$0xff]
    %v2439 = vld [vmem:[%s5 + $0x178] sm:$0xff]
    %v2440 = vld [vmem:[%s5 + $0x180] sm:$0x3]
    %2443 = vrot.lane.b32.xlu0 %v2377, 64
    %v2444 = vpop.permute.xlu0 %2443
    %2445 = vrot.lane.b32.xlu0 %v2379, 64
    %v2446 = vpop.permute.xlu0 %2445
    %v2447 = vsel %vm78, %v2444, %v2446
    %v2450 = vsel %vm78, %v2372, %v2444
    %v2451 = vlaneseq
    %v2452 = vshrl.u32 %v2451, 7
    %v2453 = vsub.s32 0, %v2452
    %v2454 = vrot.slane %v2440, %v2453
    %v2455 = vmul.f32 %v2391, %v2454
    %2456 = vmatprep.subr.mxu0 0.0
    %v2457 = vand.u32 %v2392, 4294901760
    %2458 = vmatpush1.msra.mxu0 %v2457
    %2459 = vmatprep.subr.mxu0 0.0
    %v2460 = vand.u32 %v2393, 4294901760
    %2461 = vmatpush1.msra.mxu0 %v2460
    %2462 = vmatprep.subr.mxu0 0.0
    %v2463 = vand.u32 %v2394, 4294901760
    %2464 = vmatpush1.msra.mxu0 %v2463
    %2465 = vmatprep.subr.mxu0 0.0
    %v2466 = vand.u32 %v2395, 4294901760
    %2467 = vmatpush1.msra.mxu0 %v2466
    %2468 = vmatprep.subr.mxu0 0.0
    %v2469 = vand.u32 %v2396, 4294901760
    %2470 = vmatpush1.msra.mxu0 %v2469
    %2471 = vmatprep.subr.mxu0 0.0
    %v2472 = vand.u32 %v2397, 4294901760
    %2473 = vmatpush1.msra.mxu0 %v2472
    %2474 = vmatprep.subr.mxu0 0.0
    %v2475 = vand.u32 %v2398, 4294901760
    %2476 = vmatpush1.msra.mxu0 %v2475
    %2477 = vmatprep.subr.mxu0 0.0
    %v2478 = vand.u32 %v2399, 4294901760
    %2479 = vmatpush1.msra.mxu0 %v2478
    %2480 = vmatprep.subr.mxu0 0.0
    %v2481 = vand.u32 %v2400, 4294901760
    %2482 = vmatpush1.msra.mxu0 %v2481
    %2483 = vmatprep.subr.mxu0 0.0
    %v2484 = vand.u32 %v2401, 4294901760
    %2485 = vmatpush1.msra.mxu0 %v2484
    %2486 = vmatprep.subr.mxu0 0.0
    %v2487 = vand.u32 %v2402, 4294901760
    %2488 = vmatpush1.msra.mxu0 %v2487
    %2489 = vmatprep.subr.mxu0 0.0
    %v2490 = vand.u32 %v2403, 4294901760
    %2491 = vmatpush1.msra.mxu0 %v2490
    %2492 = vmatprep.subr.mxu0 0.0
    %v2493 = vand.u32 %v2404, 4294901760
    %2494 = vmatpush1.msra.mxu0 %v2493
    %2495 = vmatprep.subr.mxu0 0.0
    %v2496 = vand.u32 %v2405, 4294901760
    %2497 = vmatpush1.msra.mxu0 %v2496
    %2498 = vmatprep.subr.mxu0 0.0
    %v2499 = vand.u32 %v2406, 4294901760
    %2500 = vmatpush1.msra.mxu0 %v2499
    %2501 = vmatprep.subr.mxu0 0.0
    %v2502 = vand.u32 %v2407, 4294901760
    %2503 = vmatpush1.msra.mxu0 %v2502
    %2504 = vmatprep.subr.mxu0 0.0
    %v2505 = vand.u32 %v2408, 4294901760
    %2506 = vmatpush1.msra.mxu0 %v2505
    %2507 = vmatprep.subr.mxu0 0.0
    %v2508 = vand.u32 %v2409, 4294901760
    %2509 = vmatpush1.msra.mxu0 %v2508
    %2510 = vmatprep.subr.mxu0 0.0
    %v2511 = vand.u32 %v2410, 4294901760
    %2512 = vmatpush1.msra.mxu0 %v2511
    %2513 = vmatprep.subr.mxu0 0.0
    %v2514 = vand.u32 %v2411, 4294901760
    %2515 = vmatpush1.msra.mxu0 %v2514
    %2516 = vmatprep.subr.mxu0 0.0
    %v2517 = vand.u32 %v2412, 4294901760
    %2518 = vmatpush1.msra.mxu0 %v2517
    %2519 = vmatprep.subr.mxu0 0.0
    %v2520 = vand.u32 %v2413, 4294901760
    %2521 = vmatpush1.msra.mxu0 %v2520
    %2522 = vmatprep.subr.mxu0 0.0
    %v2523 = vand.u32 %v2414, 4294901760
    %2524 = vmatpush1.msra.mxu0 %v2523
    %2525 = vmatprep.subr.mxu0 0.0
    %v2526 = vand.u32 %v2415, 4294901760
    %2527 = vmatpush1.msra.mxu0 %v2526
    %2528 = vmatprep.subr.mxu0 0.0
    %v2529 = vand.u32 %v2416, 4294901760
    %2530 = vmatpush1.msra.mxu0 %v2529
    %2531 = vmatprep.subr.mxu0 0.0
    %v2532 = vand.u32 %v2417, 4294901760
    %2533 = vmatpush1.msra.mxu0 %v2532
    %2534 = vmatprep.subr.mxu0 0.0
    %v2535 = vand.u32 %v2418, 4294901760
    %2536 = vmatpush1.msra.mxu0 %v2535
    %2537 = vmatprep.subr.mxu0 0.0
    %v2538 = vand.u32 %v2419, 4294901760
    %2539 = vmatpush1.msra.mxu0 %v2538
    %2540 = vmatprep.subr.mxu0 0.0
    %v2541 = vand.u32 %v2420, 4294901760
    %2542 = vmatpush1.msra.mxu0 %v2541
    %2543 = vmatprep.subr.mxu0 0.0
    %v2544 = vand.u32 %v2421, 4294901760
    %2545 = vmatpush1.msra.mxu0 %v2544
    %2546 = vmatprep.subr.mxu0 0.0
    %v2547 = vand.u32 %v2422, 4294901760
    %2548 = vmatpush1.msra.mxu0 %v2547
    %2549 = vmatprep.subr.mxu0 0.0
    %v2550 = vand.u32 %v2423, 4294901760
    %2551 = vmatpush1.msra.mxu0 %v2550
    %v2552 = vand.u32 %v2450, 4294901760
    %v2553 = vsub.f32 %v2450, %v2552
    %v2554 = vand.u32 %v2553, 4294901760
    %v2555 = vsub.f32 %v2553, %v2554
    %v2556 = vand.u32 %v2555, 4294901760
    %2557 = vmatprep.mubr.f32.mxu0 %v2556
    %v2558 = vand.u32 %v2370, 4294901760
    %v2559 = vsub.f32 %v2370, %v2558
    %v2560 = vand.u32 %v2559, 4294901760
    %v2561 = vsub.f32 %v2559, %v2560
    %v2562 = vand.u32 %v2561, 4294901760
    %2563 = vmatmul.mubr.f32.gmra.mrb[0].mxu0 %v2562
    %v2564 = vpop.f32.mrb[0].mxu0
    %v2565 = vadd.f32 %v2455, %v2564
    %v2566 = vpop.f32.mrb[0].mxu0
    %2567 = vdwg.mxu0
    %2568 = vmatprep.subr.mxu0 0.0
    %v2569 = vand.u32 %v2392, 4294901760
    %v2570 = vsub.f32 %v2392, %v2569
    %v2571 = vand.u32 %v2570, 4294901760
    %v2572 = vsub.f32 %v2570, %v2571
    %v2573 = vand.u32 %v2572, 4294901760
    %2574 = vmatpush1.msra.mxu0 %v2573
    %2575 = vmatprep.subr.mxu0 0.0
    %v2576 = vand.u32 %v2393, 4294901760
    %v2577 = vsub.f32 %v2393, %v2576
    %v2578 = vand.u32 %v2577, 4294901760
    %v2579 = vsub.f32 %v2577, %v2578
    %v2580 = vand.u32 %v2579, 4294901760
    %2581 = vmatpush1.msra.mxu0 %v2580
    %2582 = vmatprep.subr.mxu0 0.0
    %v2583 = vand.u32 %v2394, 4294901760
    %v2584 = vsub.f32 %v2394, %v2583
    %v2585 = vand.u32 %v2584, 4294901760
    %v2586 = vsub.f32 %v2584, %v2585
    %v2587 = vand.u32 %v2586, 4294901760
    %2588 = vmatpush1.msra.mxu0 %v2587
    %2589 = vmatprep.subr.mxu0 0.0
    %v2590 = vand.u32 %v2395, 4294901760
    %v2591 = vsub.f32 %v2395, %v2590
    %v2592 = vand.u32 %v2591, 4294901760
    %v2593 = vsub.f32 %v2591, %v2592
    %v2594 = vand.u32 %v2593, 4294901760
    %2595 = vmatpush1.msra.mxu0 %v2594
    %2596 = vmatprep.subr.mxu0 0.0
    %v2597 = vand.u32 %v2396, 4294901760
    %v2598 = vsub.f32 %v2396, %v2597
    %v2599 = vand.u32 %v2598, 4294901760
    %v2600 = vsub.f32 %v2598, %v2599
    %v2601 = vand.u32 %v2600, 4294901760
    %2602 = vmatpush1.msra.mxu0 %v2601
    %2603 = vmatprep.subr.mxu0 0.0
    %v2604 = vand.u32 %v2397, 4294901760
    %v2605 = vsub.f32 %v2397, %v2604
    %v2606 = vand.u32 %v2605, 4294901760
    %v2607 = vsub.f32 %v2605, %v2606
    %v2608 = vand.u32 %v2607, 4294901760
    %2609 = vmatpush1.msra.mxu0 %v2608
    %2610 = vmatprep.subr.mxu0 0.0
    %v2611 = vand.u32 %v2398, 4294901760
    %v2612 = vsub.f32 %v2398, %v2611
    %v2613 = vand.u32 %v2612, 4294901760
    %v2614 = vsub.f32 %v2612, %v2613
    %v2615 = vand.u32 %v2614, 4294901760
    %2616 = vmatpush1.msra.mxu0 %v2615
    %2617 = vmatprep.subr.mxu0 0.0
    %v2618 = vand.u32 %v2399, 4294901760
    %v2619 = vsub.f32 %v2399, %v2618
    %v2620 = vand.u32 %v2619, 4294901760
    %v2621 = vsub.f32 %v2619, %v2620
    %v2622 = vand.u32 %v2621, 4294901760
    %2623 = vmatpush1.msra.mxu0 %v2622
    %2624 = vmatprep.subr.mxu0 0.0
    %v2625 = vand.u32 %v2400, 4294901760
    %v2626 = vsub.f32 %v2400, %v2625
    %v2627 = vand.u32 %v2626, 4294901760
    %v2628 = vsub.f32 %v2626, %v2627
    %v2629 = vand.u32 %v2628, 4294901760
    %2630 = vmatpush1.msra.mxu0 %v2629
    %2631 = vmatprep.subr.mxu0 0.0
    %v2632 = vand.u32 %v2401, 4294901760
    %v2633 = vsub.f32 %v2401, %v2632
    %v2634 = vand.u32 %v2633, 4294901760
    %v2635 = vsub.f32 %v2633, %v2634
    %v2636 = vand.u32 %v2635, 4294901760
    %2637 = vmatpush1.msra.mxu0 %v2636
    %2638 = vmatprep.subr.mxu0 0.0
    %v2639 = vand.u32 %v2402, 4294901760
    %v2640 = vsub.f32 %v2402, %v2639
    %v2641 = vand.u32 %v2640, 4294901760
    %v2642 = vsub.f32 %v2640, %v2641
    %v2643 = vand.u32 %v2642, 4294901760
    %2644 = vmatpush1.msra.mxu0 %v2643
    %2645 = vmatprep.subr.mxu0 0.0
    %v2646 = vand.u32 %v2403, 4294901760
    %v2647 = vsub.f32 %v2403, %v2646
    %v2648 = vand.u32 %v2647, 4294901760
    %v2649 = vsub.f32 %v2647, %v2648
    %v2650 = vand.u32 %v2649, 4294901760
    %2651 = vmatpush1.msra.mxu0 %v2650
    %2652 = vmatprep.subr.mxu0 0.0
    %v2653 = vand.u32 %v2404, 4294901760
    %v2654 = vsub.f32 %v2404, %v2653
    %v2655 = vand.u32 %v2654, 4294901760
    %v2656 = vsub.f32 %v2654, %v2655
    %v2657 = vand.u32 %v2656, 4294901760
    %2658 = vmatpush1.msra.mxu0 %v2657
    %2659 = vmatprep.subr.mxu0 0.0
    %v2660 = vand.u32 %v2405, 4294901760
    %v2661 = vsub.f32 %v2405, %v2660
    %v2662 = vand.u32 %v2661, 4294901760
    %v2663 = vsub.f32 %v2661, %v2662
    %v2664 = vand.u32 %v2663, 4294901760
    %2665 = vmatpush1.msra.mxu0 %v2664
    %2666 = vmatprep.subr.mxu0 0.0
    %v2667 = vand.u32 %v2406, 4294901760
    %v2668 = vsub.f32 %v2406, %v2667
    %v2669 = vand.u32 %v2668, 4294901760
    %v2670 = vsub.f32 %v2668, %v2669
    %v2671 = vand.u32 %v2670, 4294901760
    %2672 = vmatpush1.msra.mxu0 %v2671
    %2673 = vmatprep.subr.mxu0 0.0
    %v2674 = vand.u32 %v2407, 4294901760
    %v2675 = vsub.f32 %v2407, %v2674
    %v2676 = vand.u32 %v2675, 4294901760
    %v2677 = vsub.f32 %v2675, %v2676
    %v2678 = vand.u32 %v2677, 4294901760
    %2679 = vmatpush1.msra.mxu0 %v2678
    %2680 = vmatprep.subr.mxu0 0.0
    %v2681 = vand.u32 %v2408, 4294901760
    %v2682 = vsub.f32 %v2408, %v2681
    %v2683 = vand.u32 %v2682, 4294901760
    %v2684 = vsub.f32 %v2682, %v2683
    %v2685 = vand.u32 %v2684, 4294901760
    %2686 = vmatpush1.msra.mxu0 %v2685
    %2687 = vmatprep.subr.mxu0 0.0
    %v2688 = vand.u32 %v2409, 4294901760
    %v2689 = vsub.f32 %v2409, %v2688
    %v2690 = vand.u32 %v2689, 4294901760
    %v2691 = vsub.f32 %v2689, %v2690
    %v2692 = vand.u32 %v2691, 4294901760
    %2693 = vmatpush1.msra.mxu0 %v2692
    %2694 = vmatprep.subr.mxu0 0.0
    %v2695 = vand.u32 %v2410, 4294901760
    %v2696 = vsub.f32 %v2410, %v2695
    %v2697 = vand.u32 %v2696, 4294901760
    %v2698 = vsub.f32 %v2696, %v2697
    %v2699 = vand.u32 %v2698, 4294901760
    %2700 = vmatpush1.msra.mxu0 %v2699
    %2701 = vmatprep.subr.mxu0 0.0
    %v2702 = vand.u32 %v2411, 4294901760
    %v2703 = vsub.f32 %v2411, %v2702
    %v2704 = vand.u32 %v2703, 4294901760
    %v2705 = vsub.f32 %v2703, %v2704
    %v2706 = vand.u32 %v2705, 4294901760
    %2707 = vmatpush1.msra.mxu0 %v2706
    %2708 = vmatprep.subr.mxu0 0.0
    %v2709 = vand.u32 %v2412, 4294901760
    %v2710 = vsub.f32 %v2412, %v2709
    %v2711 = vand.u32 %v2710, 4294901760
    %v2712 = vsub.f32 %v2710, %v2711
    %v2713 = vand.u32 %v2712, 4294901760
    %2714 = vmatpush1.msra.mxu0 %v2713
    %2715 = vmatprep.subr.mxu0 0.0
    %v2716 = vand.u32 %v2413, 4294901760
    %v2717 = vsub.f32 %v2413, %v2716
    %v2718 = vand.u32 %v2717, 4294901760
    %v2719 = vsub.f32 %v2717, %v2718
    %v2720 = vand.u32 %v2719, 4294901760
    %2721 = vmatpush1.msra.mxu0 %v2720
    %2722 = vmatprep.subr.mxu0 0.0
    %v2723 = vand.u32 %v2414, 4294901760
    %v2724 = vsub.f32 %v2414, %v2723
    %v2725 = vand.u32 %v2724, 4294901760
    %v2726 = vsub.f32 %v2724, %v2725
    %v2727 = vand.u32 %v2726, 4294901760
    %2728 = vmatpush1.msra.mxu0 %v2727
    %2729 = vmatprep.subr.mxu0 0.0
    %v2730 = vand.u32 %v2415, 4294901760
    %v2731 = vsub.f32 %v2415, %v2730
    %v2732 = vand.u32 %v2731, 4294901760
    %v2733 = vsub.f32 %v2731, %v2732
    %v2734 = vand.u32 %v2733, 4294901760
    %2735 = vmatpush1.msra.mxu0 %v2734
    %2736 = vmatprep.subr.mxu0 0.0
    %v2737 = vand.u32 %v2416, 4294901760
    %v2738 = vsub.f32 %v2416, %v2737
    %v2739 = vand.u32 %v2738, 4294901760
    %v2740 = vsub.f32 %v2738, %v2739
    %v2741 = vand.u32 %v2740, 4294901760
    %2742 = vmatpush1.msra.mxu0 %v2741
    %2743 = vmatprep.subr.mxu0 0.0
    %v2744 = vand.u32 %v2417, 4294901760
    %v2745 = vsub.f32 %v2417, %v2744
    %v2746 = vand.u32 %v2745, 4294901760
    %v2747 = vsub.f32 %v2745, %v2746
    %v2748 = vand.u32 %v2747, 4294901760
    %2749 = vmatpush1.msra.mxu0 %v2748
    %2750 = vmatprep.subr.mxu0 0.0
    %v2751 = vand.u32 %v2418, 4294901760
    %v2752 = vsub.f32 %v2418, %v2751
    %v2753 = vand.u32 %v2752, 4294901760
    %v2754 = vsub.f32 %v2752, %v2753
    %v2755 = vand.u32 %v2754, 4294901760
    %2756 = vmatpush1.msra.mxu0 %v2755
    %2757 = vmatprep.subr.mxu0 0.0
    %v2758 = vand.u32 %v2419, 4294901760
    %v2759 = vsub.f32 %v2419, %v2758
    %v2760 = vand.u32 %v2759, 4294901760
    %v2761 = vsub.f32 %v2759, %v2760
    %v2762 = vand.u32 %v2761, 4294901760
    %2763 = vmatpush1.msra.mxu0 %v2762
    %2764 = vmatprep.subr.mxu0 0.0
    %v2765 = vand.u32 %v2420, 4294901760
    %v2766 = vsub.f32 %v2420, %v2765
    %v2767 = vand.u32 %v2766, 4294901760
    %v2768 = vsub.f32 %v2766, %v2767
    %v2769 = vand.u32 %v2768, 4294901760
    %2770 = vmatpush1.msra.mxu0 %v2769
    %2771 = vmatprep.subr.mxu0 0.0
    %v2772 = vand.u32 %v2421, 4294901760
    %v2773 = vsub.f32 %v2421, %v2772
    %v2774 = vand.u32 %v2773, 4294901760
    %v2775 = vsub.f32 %v2773, %v2774
    %v2776 = vand.u32 %v2775, 4294901760
    %2777 = vmatpush1.msra.mxu0 %v2776
    %2778 = vmatprep.subr.mxu0 0.0
    %v2779 = vand.u32 %v2422, 4294901760
    %v2780 = vsub.f32 %v2422, %v2779
    %v2781 = vand.u32 %v2780, 4294901760
    %v2782 = vsub.f32 %v2780, %v2781
    %v2783 = vand.u32 %v2782, 4294901760
    %2784 = vmatpush1.msra.mxu0 %v2783
    %2785 = vmatprep.subr.mxu0 0.0
    %v2786 = vand.u32 %v2423, 4294901760
    %v2787 = vsub.f32 %v2423, %v2786
    %v2788 = vand.u32 %v2787, 4294901760
    %v2789 = vsub.f32 %v2787, %v2788
    %v2790 = vand.u32 %v2789, 4294901760
    %2791 = vmatpush1.msra.mxu0 %v2790
    %v2792 = vand.u32 %v2450, 4294901760
    %2793 = vmatprep.mubr.f32.mxu0 %v2792
    %v2794 = vand.u32 %v2370, 4294901760
    %2795 = vmatmul.mubr.f32.gmra.mrb[0].mxu0 %v2794
    %v2796 = vpop.f32.mrb[0].mxu0
    %v2797 = vadd.f32 %v2565, %v2796
    %v2798 = vpop.f32.mrb[0].mxu0
    %2799 = vdwg.mxu0
    %2800 = vmatprep.subr.mxu0 0.0
    %v2801 = vand.u32 %v2392, 4294901760
    %v2802 = vsub.f32 %v2392, %v2801
    %2803 = vmatpush1.msra.mxu0 %v2802
    %2804 = vmatprep.subr.mxu0 0.0
    %v2805 = vand.u32 %v2393, 4294901760
    %v2806 = vsub.f32 %v2393, %v2805
    %2807 = vmatpush1.msra.mxu0 %v2806
    %2808 = vmatprep.subr.mxu0 0.0
    %v2809 = vand.u32 %v2394, 4294901760
    %v2810 = vsub.f32 %v2394, %v2809
    %2811 = vmatpush1.msra.mxu0 %v2810
    %2812 = vmatprep.subr.mxu0 0.0
    %v2813 = vand.u32 %v2395, 4294901760
    %v2814 = vsub.f32 %v2395, %v2813
    %2815 = vmatpush1.msra.mxu0 %v2814
    %2816 = vmatprep.subr.mxu0 0.0
    %v2817 = vand.u32 %v2396, 4294901760
    %v2818 = vsub.f32 %v2396, %v2817
    %2819 = vmatpush1.msra.mxu0 %v2818
    %2820 = vmatprep.subr.mxu0 0.0
    %v2821 = vand.u32 %v2397, 4294901760
    %v2822 = vsub.f32 %v2397, %v2821
    %2823 = vmatpush1.msra.mxu0 %v2822
    %2824 = vmatprep.subr.mxu0 0.0
    %v2825 = vand.u32 %v2398, 4294901760
    %v2826 = vsub.f32 %v2398, %v2825
    %2827 = vmatpush1.msra.mxu0 %v2826
    %2828 = vmatprep.subr.mxu0 0.0
    %v2829 = vand.u32 %v2399, 4294901760
    %v2830 = vsub.f32 %v2399, %v2829
    %2831 = vmatpush1.msra.mxu0 %v2830
    %2832 = vmatprep.subr.mxu0 0.0
    %v2833 = vand.u32 %v2400, 4294901760
    %v2834 = vsub.f32 %v2400, %v2833
    %2835 = vmatpush1.msra.mxu0 %v2834
    %2836 = vmatprep.subr.mxu0 0.0
    %v2837 = vand.u32 %v2401, 4294901760
    %v2838 = vsub.f32 %v2401, %v2837
    %2839 = vmatpush1.msra.mxu0 %v2838
    %2840 = vmatprep.subr.mxu0 0.0
    %v2841 = vand.u32 %v2402, 4294901760
    %v2842 = vsub.f32 %v2402, %v2841
    %2843 = vmatpush1.msra.mxu0 %v2842
    %2844 = vmatprep.subr.mxu0 0.0
    %v2845 = vand.u32 %v2403, 4294901760
    %v2846 = vsub.f32 %v2403, %v2845
    %2847 = vmatpush1.msra.mxu0 %v2846
    %2848 = vmatprep.subr.mxu0 0.0
    %v2849 = vand.u32 %v2404, 4294901760
    %v2850 = vsub.f32 %v2404, %v2849
    %2851 = vmatpush1.msra.mxu0 %v2850
    %2852 = vmatprep.subr.mxu0 0.0
    %v2853 = vand.u32 %v2405, 4294901760
    %v2854 = vsub.f32 %v2405, %v2853
    %2855 = vmatpush1.msra.mxu0 %v2854
    %2856 = vmatprep.subr.mxu0 0.0
    %v2857 = vand.u32 %v2406, 4294901760
    %v2858 = vsub.f32 %v2406, %v2857
    %2859 = vmatpush1.msra.mxu0 %v2858
    %2860 = vmatprep.subr.mxu0 0.0
    %v2861 = vand.u32 %v2407, 4294901760
    %v2862 = vsub.f32 %v2407, %v2861
    %2863 = vmatpush1.msra.mxu0 %v2862
    %2864 = vmatprep.subr.mxu0 0.0
    %v2865 = vand.u32 %v2408, 4294901760
    %v2866 = vsub.f32 %v2408, %v2865
    %2867 = vmatpush1.msra.mxu0 %v2866
    %2868 = vmatprep.subr.mxu0 0.0
    %v2869 = vand.u32 %v2409, 4294901760
    %v2870 = vsub.f32 %v2409, %v2869
    %2871 = vmatpush1.msra.mxu0 %v2870
    %2872 = vmatprep.subr.mxu0 0.0
    %v2873 = vand.u32 %v2410, 4294901760
    %v2874 = vsub.f32 %v2410, %v2873
    %2875 = vmatpush1.msra.mxu0 %v2874
    %2876 = vmatprep.subr.mxu0 0.0
    %v2877 = vand.u32 %v2411, 4294901760
    %v2878 = vsub.f32 %v2411, %v2877
    %2879 = vmatpush1.msra.mxu0 %v2878
    %2880 = vmatprep.subr.mxu0 0.0
    %v2881 = vand.u32 %v2412, 4294901760
    %v2882 = vsub.f32 %v2412, %v2881
    %2883 = vmatpush1.msra.mxu0 %v2882
    %2884 = vmatprep.subr.mxu0 0.0
    %v2885 = vand.u32 %v2413, 4294901760
    %v2886 = vsub.f32 %v2413, %v2885
    %2887 = vmatpush1.msra.mxu0 %v2886
    %2888 = vmatprep.subr.mxu0 0.0
    %v2889 = vand.u32 %v2414, 4294901760
    %v2890 = vsub.f32 %v2414, %v2889
    %2891 = vmatpush1.msra.mxu0 %v2890
    %2892 = vmatprep.subr.mxu0 0.0
    %v2893 = vand.u32 %v2415, 4294901760
    %v2894 = vsub.f32 %v2415, %v2893
    %2895 = vmatpush1.msra.mxu0 %v2894
    %2896 = vmatprep.subr.mxu0 0.0
    %v2897 = vand.u32 %v2416, 4294901760
    %v2898 = vsub.f32 %v2416, %v2897
    %2899 = vmatpush1.msra.mxu0 %v2898
    %2900 = vmatprep.subr.mxu0 0.0
    %v2901 = vand.u32 %v2417, 4294901760
    %v2902 = vsub.f32 %v2417, %v2901
    %2903 = vmatpush1.msra.mxu0 %v2902
    %2904 = vmatprep.subr.mxu0 0.0
    %v2905 = vand.u32 %v2418, 4294901760
    %v2906 = vsub.f32 %v2418, %v2905
    %2907 = vmatpush1.msra.mxu0 %v2906
    %2908 = vmatprep.subr.mxu0 0.0
    %v2909 = vand.u32 %v2419, 4294901760
    %v2910 = vsub.f32 %v2419, %v2909
    %2911 = vmatpush1.msra.mxu0 %v2910
    %2912 = vmatprep.subr.mxu0 0.0
    %v2913 = vand.u32 %v2420, 4294901760
    %v2914 = vsub.f32 %v2420, %v2913
    %2915 = vmatpush1.msra.mxu0 %v2914
    %2916 = vmatprep.subr.mxu0 0.0
    %v2917 = vand.u32 %v2421, 4294901760
    %v2918 = vsub.f32 %v2421, %v2917
    %2919 = vmatpush1.msra.mxu0 %v2918
    %2920 = vmatprep.subr.mxu0 0.0
    %v2921 = vand.u32 %v2422, 4294901760
    %v2922 = vsub.f32 %v2422, %v2921
    %2923 = vmatpush1.msra.mxu0 %v2922
    %2924 = vmatprep.subr.mxu0 0.0
    %v2925 = vand.u32 %v2423, 4294901760
    %v2926 = vsub.f32 %v2423, %v2925
    %2927 = vmatpush1.msra.mxu0 %v2926
    %v2928 = vand.u32 %v2450, 4294901760
    %v2929 = vsub.f32 %v2450, %v2928
    %2930 = vmatprep.mubr.f32.mxu0 %v2929
    %v2931 = vand.u32 %v2370, 4294901760
    %v2932 = vsub.f32 %v2370, %v2931
    %2933 = vmatmul.mubr.f32.gmra.mrb[0].mxu0 %v2932
    %v2934 = vpop.f32.mrb[0].mxu0
    %v2935 = vadd.f32 %v2797, %v2934
    %v2936 = vpop.f32.mrb[0].mxu0
    %2937 = vdwg.mxu0
    %2938 = vmatprep.subr.mxu0 0.0
    %v2939 = vand.u32 %v2392, 4294901760
    %2940 = vmatpush1.msra.mxu0 %v2939
    %2941 = vmatprep.subr.mxu0 0.0
    %v2942 = vand.u32 %v2393, 4294901760
    %2943 = vmatpush1.msra.mxu0 %v2942
    %2944 = vmatprep.subr.mxu0 0.0
    %v2945 = vand.u32 %v2394, 4294901760
    %2946 = vmatpush1.msra.mxu0 %v2945
    %2947 = vmatprep.subr.mxu0 0.0
    %v2948 = vand.u32 %v2395, 4294901760
    %2949 = vmatpush1.msra.mxu0 %v2948
    %2950 = vmatprep.subr.mxu0 0.0
    %v2951 = vand.u32 %v2396, 4294901760
    %2952 = vmatpush1.msra.mxu0 %v2951
    %2953 = vmatprep.subr.mxu0 0.0
    %v2954 = vand.u32 %v2397, 4294901760
    %2955 = vmatpush1.msra.mxu0 %v2954
    %2956 = vmatprep.subr.mxu0 0.0
    %v2957 = vand.u32 %v2398, 4294901760
    %2958 = vmatpush1.msra.mxu0 %v2957
    %2959 = vmatprep.subr.mxu0 0.0
    %v2960 = vand.u32 %v2399, 4294901760
    %2961 = vmatpush1.msra.mxu0 %v2960
    %2962 = vmatprep.subr.mxu0 0.0
    %v2963 = vand.u32 %v2400, 4294901760
    %2964 = vmatpush1.msra.mxu0 %v2963
    %2965 = vmatprep.subr.mxu0 0.0
    %v2966 = vand.u32 %v2401, 4294901760
    %2967 = vmatpush1.msra.mxu0 %v2966
    %2968 = vmatprep.subr.mxu0 0.0
    %v2969 = vand.u32 %v2402, 4294901760
    %2970 = vmatpush1.msra.mxu0 %v2969
    %2971 = vmatprep.subr.mxu0 0.0
    %v2972 = vand.u32 %v2403, 4294901760
    %2973 = vmatpush1.msra.mxu0 %v2972
    %2974 = vmatprep.subr.mxu0 0.0
    %v2975 = vand.u32 %v2404, 4294901760
    %2976 = vmatpush1.msra.mxu0 %v2975
    %2977 = vmatprep.subr.mxu0 0.0
    %v2978 = vand.u32 %v2405, 4294901760
    %2979 = vmatpush1.msra.mxu0 %v2978
    %2980 = vmatprep.subr.mxu0 0.0
    %v2981 = vand.u32 %v2406, 4294901760
    %2982 = vmatpush1.msra.mxu0 %v2981
    %2983 = vmatprep.subr.mxu0 0.0
    %v2984 = vand.u32 %v2407, 4294901760
    %2985 = vmatpush1.msra.mxu0 %v2984
    %2986 = vmatprep.subr.mxu0 0.0
    %v2987 = vand.u32 %v2408, 4294901760
    %2988 = vmatpush1.msra.mxu0 %v2987
    %2989 = vmatprep.subr.mxu0 0.0
    %v2990 = vand.u32 %v2409, 4294901760
    %2991 = vmatpush1.msra.mxu0 %v2990
    %2992 = vmatprep.subr.mxu0 0.0
    %v2993 = vand.u32 %v2410, 4294901760
    %2994 = vmatpush1.msra.mxu0 %v2993
    %2995 = vmatprep.subr.mxu0 0.0
    %v2996 = vand.u32 %v2411, 4294901760
    %2997 = vmatpush1.msra.mxu0 %v2996
    %2998 = vmatprep.subr.mxu0 0.0
    %v2999 = vand.u32 %v2412, 4294901760
    %3000 = vmatpush1.msra.mxu0 %v2999
    %3001 = vmatprep.subr.mxu0 0.0
    %v3002 = vand.u32 %v2413, 4294901760
    %3003 = vmatpush1.msra.mxu0 %v3002
    %3004 = vmatprep.subr.mxu0 0.0
    %v3005 = vand.u32 %v2414, 4294901760
    %3006 = vmatpush1.msra.mxu0 %v3005
    %3007 = vmatprep.subr.mxu0 0.0
    %v3008 = vand.u32 %v2415, 4294901760
    %3009 = vmatpush1.msra.mxu0 %v3008
    %3010 = vmatprep.subr.mxu0 0.0
    %v3011 = vand.u32 %v2416, 4294901760
    %3012 = vmatpush1.msra.mxu0 %v3011
    %3013 = vmatprep.subr.mxu0 0.0
    %v3014 = vand.u32 %v2417, 4294901760
    %3015 = vmatpush1.msra.mxu0 %v3014
    %3016 = vmatprep.subr.mxu0 0.0
    %v3017 = vand.u32 %v2418, 4294901760
    %3018 = vmatpush1.msra.mxu0 %v3017
    %3019 = vmatprep.subr.mxu0 0.0
    %v3020 = vand.u32 %v2419, 4294901760
    %3021 = vmatpush1.msra.mxu0 %v3020
    %3022 = vmatprep.subr.mxu0 0.0
    %v3023 = vand.u32 %v2420, 4294901760
    %3024 = vmatpush1.msra.mxu0 %v3023
    %3025 = vmatprep.subr.mxu0 0.0
    %v3026 = vand.u32 %v2421, 4294901760
    %3027 = vmatpush1.msra.mxu0 %v3026
    %3028 = vmatprep.subr.mxu0 0.0
    %v3029 = vand.u32 %v2422, 4294901760
    %3030 = vmatpush1.msra.mxu0 %v3029
    %3031 = vmatprep.subr.mxu0 0.0
    %v3032 = vand.u32 %v2423, 4294901760
    %3033 = vmatpush1.msra.mxu0 %v3032
    %v3034 = vand.u32 %v2450, 4294901760
    %v3035 = vsub.f32 %v2450, %v3034
    %v3036 = vand.u32 %v3035, 4294901760
    %3037 = vmatprep.mubr.f32.mxu0 %v3036
    %v3038 = vand.u32 %v2370, 4294901760
    %v3039 = vsub.f32 %v2370, %v3038
    %v3040 = vand.u32 %v3039, 4294901760
    %3041 = vmatmul.mubr.f32.gmra.mrb[0].mxu0 %v3040
    %v3042 = vpop.f32.mrb[0].mxu0
    %v3043 = vadd.f32 %v2935, %v3042
    %v3044 = vpop.f32.mrb[0].mxu0
    %3045 = vdwg.mxu0
    %3046 = vmatprep.subr.mxu0 0.0
    %v3047 = vand.u32 %v2392, 4294901760
    %v3048 = vsub.f32 %v2392, %v3047
    %v3049 = vand.u32 %v3048, 4294901760
    %3050 = vmatpush1.msra.mxu0 %v3049
    %3051 = vmatprep.subr.mxu0 0.0
    %v3052 = vand.u32 %v2393, 4294901760
    %v3053 = vsub.f32 %v2393, %v3052
    %v3054 = vand.u32 %v3053, 4294901760
    %3055 = vmatpush1.msra.mxu0 %v3054
    %3056 = vmatprep.subr.mxu0 0.0
    %v3057 = vand.u32 %v2394, 4294901760
    %v3058 = vsub.f32 %v2394, %v3057
    %v3059 = vand.u32 %v3058, 4294901760
    %3060 = vmatpush1.msra.mxu0 %v3059
    %3061 = vmatprep.subr.mxu0 0.0
    %v3062 = vand.u32 %v2395, 4294901760
    %v3063 = vsub.f32 %v2395, %v3062
    %v3064 = vand.u32 %v3063, 4294901760
    %3065 = vmatpush1.msra.mxu0 %v3064
    %3066 = vmatprep.subr.mxu0 0.0
    %v3067 = vand.u32 %v2396, 4294901760
    %v3068 = vsub.f32 %v2396, %v3067
    %v3069 = vand.u32 %v3068, 4294901760
    %3070 = vmatpush1.msra.mxu0 %v3069
    %3071 = vmatprep.subr.mxu0 0.0
    %v3072 = vand.u32 %v2397, 4294901760
    %v3073 = vsub.f32 %v2397, %v3072
    %v3074 = vand.u32 %v3073, 4294901760
    %3075 = vmatpush1.msra.mxu0 %v3074
    %3076 = vmatprep.subr.mxu0 0.0
    %v3077 = vand.u32 %v2398, 4294901760
    %v3078 = vsub.f32 %v2398, %v3077
    %v3079 = vand.u32 %v3078, 4294901760
    %3080 = vmatpush1.msra.mxu0 %v3079
    %3081 = vmatprep.subr.mxu0 0.0
    %v3082 = vand.u32 %v2399, 4294901760
    %v3083 = vsub.f32 %v2399, %v3082
    %v3084 = vand.u32 %v3083, 4294901760
    %3085 = vmatpush1.msra.mxu0 %v3084
    %3086 = vmatprep.subr.mxu0 0.0
    %v3087 = vand.u32 %v2400, 4294901760
    %v3088 = vsub.f32 %v2400, %v3087
    %v3089 = vand.u32 %v3088, 4294901760
    %3090 = vmatpush1.msra.mxu0 %v3089
    %3091 = vmatprep.subr.mxu0 0.0
    %v3092 = vand.u32 %v2401, 4294901760
    %v3093 = vsub.f32 %v2401, %v3092
    %v3094 = vand.u32 %v3093, 4294901760
    %3095 = vmatpush1.msra.mxu0 %v3094
    %3096 = vmatprep.subr.mxu0 0.0
    %v3097 = vand.u32 %v2402, 4294901760
    %v3098 = vsub.f32 %v2402, %v3097
    %v3099 = vand.u32 %v3098, 4294901760
    %3100 = vmatpush1.msra.mxu0 %v3099
    %3101 = vmatprep.subr.mxu0 0.0
    %v3102 = vand.u32 %v2403, 4294901760
    %v3103 = vsub.f32 %v2403, %v3102
    %v3104 = vand.u32 %v3103, 4294901760
    %3105 = vmatpush1.msra.mxu0 %v3104
    %3106 = vmatprep.subr.mxu0 0.0
    %v3107 = vand.u32 %v2404, 4294901760
    %v3108 = vsub.f32 %v2404, %v3107
    %v3109 = vand.u32 %v3108, 4294901760
    %3110 = vmatpush1.msra.mxu0 %v3109
    %3111 = vmatprep.subr.mxu0 0.0
    %v3112 = vand.u32 %v2405, 4294901760
    %v3113 = vsub.f32 %v2405, %v3112
    %v3114 = vand.u32 %v3113, 4294901760
    %3115 = vmatpush1.msra.mxu0 %v3114
    %3116 = vmatprep.subr.mxu0 0.0
    %v3117 = vand.u32 %v2406, 4294901760
    %v3118 = vsub.f32 %v2406, %v3117
    %v3119 = vand.u32 %v3118, 4294901760
    %3120 = vmatpush1.msra.mxu0 %v3119
    %3121 = vmatprep.subr.mxu0 0.0
    %v3122 = vand.u32 %v2407, 4294901760
    %v3123 = vsub.f32 %v2407, %v3122
    %v3124 = vand.u32 %v3123, 4294901760
    %3125 = vmatpush1.msra.mxu0 %v3124
    %3126 = vmatprep.subr.mxu0 0.0
    %v3127 = vand.u32 %v2408, 4294901760
    %v3128 = vsub.f32 %v2408, %v3127
    %v3129 = vand.u32 %v3128, 4294901760
    %3130 = vmatpush1.msra.mxu0 %v3129
    %3131 = vmatprep.subr.mxu0 0.0
    %v3132 = vand.u32 %v2409, 4294901760
    %v3133 = vsub.f32 %v2409, %v3132
    %v3134 = vand.u32 %v3133, 4294901760
    %3135 = vmatpush1.msra.mxu0 %v3134
    %3136 = vmatprep.subr.mxu0 0.0
    %v3137 = vand.u32 %v2410, 4294901760
    %v3138 = vsub.f32 %v2410, %v3137
    %v3139 = vand.u32 %v3138, 4294901760
    %3140 = vmatpush1.msra.mxu0 %v3139
    %3141 = vmatprep.subr.mxu0 0.0
    %v3142 = vand.u32 %v2411, 4294901760
    %v3143 = vsub.f32 %v2411, %v3142
    %v3144 = vand.u32 %v3143, 4294901760
    %3145 = vmatpush1.msra.mxu0 %v3144
    %3146 = vmatprep.subr.mxu0 0.0
    %v3147 = vand.u32 %v2412, 4294901760
    %v3148 = vsub.f32 %v2412, %v3147
    %v3149 = vand.u32 %v3148, 4294901760
    %3150 = vmatpush1.msra.mxu0 %v3149
    %3151 = vmatprep.subr.mxu0 0.0
    %v3152 = vand.u32 %v2413, 4294901760
    %v3153 = vsub.f32 %v2413, %v3152
    %v3154 = vand.u32 %v3153, 4294901760
    %3155 = vmatpush1.msra.mxu0 %v3154
    %3156 = vmatprep.subr.mxu0 0.0
    %v3157 = vand.u32 %v2414, 4294901760
    %v3158 = vsub.f32 %v2414, %v3157
    %v3159 = vand.u32 %v3158, 4294901760
    %3160 = vmatpush1.msra.mxu0 %v3159
    %3161 = vmatprep.subr.mxu0 0.0
    %v3162 = vand.u32 %v2415, 4294901760
    %v3163 = vsub.f32 %v2415, %v3162
    %v3164 = vand.u32 %v3163, 4294901760
    %3165 = vmatpush1.msra.mxu0 %v3164
    %3166 = vmatprep.subr.mxu0 0.0
    %v3167 = vand.u32 %v2416, 4294901760
    %v3168 = vsub.f32 %v2416, %v3167
    %v3169 = vand.u32 %v3168, 4294901760
    %3170 = vmatpush1.msra.mxu0 %v3169
    %3171 = vmatprep.subr.mxu0 0.0
    %v3172 = vand.u32 %v2417, 4294901760
    %v3173 = vsub.f32 %v2417, %v3172
    %v3174 = vand.u32 %v3173, 4294901760
    %3175 = vmatpush1.msra.mxu0 %v3174
    %3176 = vmatprep.subr.mxu0 0.0
    %v3177 = vand.u32 %v2418, 4294901760
    %v3178 = vsub.f32 %v2418, %v3177
    %v3179 = vand.u32 %v3178, 4294901760
    %3180 = vmatpush1.msra.mxu0 %v3179
    %3181 = vmatprep.subr.mxu0 0.0
    %v3182 = vand.u32 %v2419, 4294901760
    %v3183 = vsub.f32 %v2419, %v3182
    %v3184 = vand.u32 %v3183, 4294901760
    %3185 = vmatpush1.msra.mxu0 %v3184
    %3186 = vmatprep.subr.mxu0 0.0
    %v3187 = vand.u32 %v2420, 4294901760
    %v3188 = vsub.f32 %v2420, %v3187
    %v3189 = vand.u32 %v3188, 4294901760
    %3190 = vmatpush1.msra.mxu0 %v3189
    %3191 = vmatprep.subr.mxu0 0.0
    %v3192 = vand.u32 %v2421, 4294901760
    %v3193 = vsub.f32 %v2421, %v3192
    %v3194 = vand.u32 %v3193, 4294901760
    %3195 = vmatpush1.msra.mxu0 %v3194
    %3196 = vmatprep.subr.mxu0 0.0
    %v3197 = vand.u32 %v2422, 4294901760
    %v3198 = vsub.f32 %v2422, %v3197
    %v3199 = vand.u32 %v3198, 4294901760
    %3200 = vmatpush1.msra.mxu0 %v3199
    %3201 = vmatprep.subr.mxu0 0.0
    %v3202 = vand.u32 %v2423, 4294901760
    %v3203 = vsub.f32 %v2423, %v3202
    %v3204 = vand.u32 %v3203, 4294901760
    %3205 = vmatpush1.msra.mxu0 %v3204
    %v3206 = vand.u32 %v2450, 4294901760
    %3207 = vmatprep.mubr.f32.mxu0 %v3206
    %v3208 = vand.u32 %v2370, 4294901760
    %3209 = vmatmul.mubr.f32.gmra.mrb[0].mxu0 %v3208
    %v3210 = vpop.f32.mrb[0].mxu0
    %v3211 = vadd.f32 %v3043, %v3210
    %v3212 = vpop.f32.mrb[0].mxu0
    %3213 = vdwg.mxu0
    %3214 = vmatprep.subr.mxu0 0.0
    %v3215 = vand.u32 %v2392, 4294901760
    %3216 = vmatpush1.msra.mxu0 %v3215
    %3217 = vmatprep.subr.mxu0 0.0
    %v3218 = vand.u32 %v2393, 4294901760
    %3219 = vmatpush1.msra.mxu0 %v3218
    %3220 = vmatprep.subr.mxu0 0.0
    %v3221 = vand.u32 %v2394, 4294901760
    %3222 = vmatpush1.msra.mxu0 %v3221
    %3223 = vmatprep.subr.mxu0 0.0
    %v3224 = vand.u32 %v2395, 4294901760
    %3225 = vmatpush1.msra.mxu0 %v3224
    %3226 = vmatprep.subr.mxu0 0.0
    %v3227 = vand.u32 %v2396, 4294901760
    %3228 = vmatpush1.msra.mxu0 %v3227
    %3229 = vmatprep.subr.mxu0 0.0
    %v3230 = vand.u32 %v2397, 4294901760
    %3231 = vmatpush1.msra.mxu0 %v3230
    %3232 = vmatprep.subr.mxu0 0.0
    %v3233 = vand.u32 %v2398, 4294901760
    %3234 = vmatpush1.msra.mxu0 %v3233
    %3235 = vmatprep.subr.mxu0 0.0
    %v3236 = vand.u32 %v2399, 4294901760
    %3237 = vmatpush1.msra.mxu0 %v3236
    %3238 = vmatprep.subr.mxu0 0.0
    %v3239 = vand.u32 %v2400, 4294901760
    %3240 = vmatpush1.msra.mxu0 %v3239
    %3241 = vmatprep.subr.mxu0 0.0
    %v3242 = vand.u32 %v2401, 4294901760
    %3243 = vmatpush1.msra.mxu0 %v3242
    %3244 = vmatprep.subr.mxu0 0.0
    %v3245 = vand.u32 %v2402, 4294901760
    %3246 = vmatpush1.msra.mxu0 %v3245
    %3247 = vmatprep.subr.mxu0 0.0
    %v3248 = vand.u32 %v2403, 4294901760
    %3249 = vmatpush1.msra.mxu0 %v3248
    %3250 = vmatprep.subr.mxu0 0.0
    %v3251 = vand.u32 %v2404, 4294901760
    %3252 = vmatpush1.msra.mxu0 %v3251
    %3253 = vmatprep.subr.mxu0 0.0
    %v3254 = vand.u32 %v2405, 4294901760
    %3255 = vmatpush1.msra.mxu0 %v3254
    %3256 = vmatprep.subr.mxu0 0.0
    %v3257 = vand.u32 %v2406, 4294901760
    %3258 = vmatpush1.msra.mxu0 %v3257
    %3259 = vmatprep.subr.mxu0 0.0
    %v3260 = vand.u32 %v2407, 4294901760
    %3261 = vmatpush1.msra.mxu0 %v3260
    %3262 = vmatprep.subr.mxu0 0.0
    %v3263 = vand.u32 %v2408, 4294901760
    %3264 = vmatpush1.msra.mxu0 %v3263
    %3265 = vmatprep.subr.mxu0 0.0
    %v3266 = vand.u32 %v2409, 4294901760
    %3267 = vmatpush1.msra.mxu0 %v3266
    %3268 = vmatprep.subr.mxu0 0.0
    %v3269 = vand.u32 %v2410, 4294901760
    %3270 = vmatpush1.msra.mxu0 %v3269
    %3271 = vmatprep.subr.mxu0 0.0
    %v3272 = vand.u32 %v2411, 4294901760
    %3273 = vmatpush1.msra.mxu0 %v3272
    %3274 = vmatprep.subr.mxu0 0.0
    %v3275 = vand.u32 %v2412, 4294901760
    %3276 = vmatpush1.msra.mxu0 %v3275
    %3277 = vmatprep.subr.mxu0 0.0
    %v3278 = vand.u32 %v2413, 4294901760
    %3279 = vmatpush1.msra.mxu0 %v3278
    %3280 = vmatprep.subr.mxu0 0.0
    %v3281 = vand.u32 %v2414, 4294901760
    %3282 = vmatpush1.msra.mxu0 %v3281
    %3283 = vmatprep.subr.mxu0 0.0
    %v3284 = vand.u32 %v2415, 4294901760
    %3285 = vmatpush1.msra.mxu0 %v3284
    %3286 = vmatprep.subr.mxu0 0.0
    %v3287 = vand.u32 %v2416, 4294901760
    %3288 = vmatpush1.msra.mxu0 %v3287
    %3289 = vmatprep.subr.mxu0 0.0
    %v3290 = vand.u32 %v2417, 4294901760
    %3291 = vmatpush1.msra.mxu0 %v3290
    %3292 = vmatprep.subr.mxu0 0.0
    %v3293 = vand.u32 %v2418, 4294901760
    %3294 = vmatpush1.msra.mxu0 %v3293
    %3295 = vmatprep.subr.mxu0 0.0
    %v3296 = vand.u32 %v2419, 4294901760
    %3297 = vmatpush1.msra.mxu0 %v3296
    %3298 = vmatprep.subr.mxu0 0.0
    %v3299 = vand.u32 %v2420, 4294901760
    %3300 = vmatpush1.msra.mxu0 %v3299
    %3301 = vmatprep.subr.mxu0 0.0
    %v3302 = vand.u32 %v2421, 4294901760
    %3303 = vmatpush1.msra.mxu0 %v3302
    %3304 = vmatprep.subr.mxu0 0.0
    %v3305 = vand.u32 %v2422, 4294901760
    %3306 = vmatpush1.msra.mxu0 %v3305
    %3307 = vmatprep.subr.mxu0 0.0
    %v3308 = vand.u32 %v2423, 4294901760
    %3309 = vmatpush1.msra.mxu0 %v3308
    %v3310 = vand.u32 %v2450, 4294901760
    %3311 = vmatprep.mubr.f32.mxu0 %v3310
    %v3312 = vand.u32 %v2370, 4294901760
    %3313 = vmatmul.mubr.f32.gmra.mrb[0].mxu0 %v3312
    %v3314 = vpop.f32.mrb[0].mxu0
    %v3315 = vadd.f32 %v3211, %v3314
    %v3316 = vpop.f32.mrb[0].mxu0
    %3317 = vdwg.mxu0
    %3318 = vmatprep.subr.mxu0 0.0
    %v3319 = vand.u32 %v2424, 4294901760
    %3320 = vmatpush1.msra.mxu0 %v3319
    %3321 = vmatprep.subr.mxu0 0.0
    %v3322 = vand.u32 %v2425, 4294901760
    %3323 = vmatpush1.msra.mxu0 %v3322
    %3324 = vmatprep.subr.mxu0 0.0
    %v3325 = vand.u32 %v2426, 4294901760
    %3326 = vmatpush1.msra.mxu0 %v3325
    %3327 = vmatprep.subr.mxu0 0.0
    %v3328 = vand.u32 %v2427, 4294901760
    %3329 = vmatpush1.msra.mxu0 %v3328
    %3330 = vmatprep.subr.mxu0 0.0
    %v3331 = vand.u32 %v2428, 4294901760
    %3332 = vmatpush1.msra.mxu0 %v3331
    %3333 = vmatprep.subr.mxu0 0.0
    %v3334 = vand.u32 %v2429, 4294901760
    %3335 = vmatpush1.msra.mxu0 %v3334
    %3336 = vmatprep.subr.mxu0 0.0
    %v3337 = vand.u32 %v2430, 4294901760
    %3338 = vmatpush1.msra.mxu0 %v3337
    %3339 = vmatprep.subr.mxu0 0.0
    %v3340 = vand.u32 %v2431, 4294901760
    %3341 = vmatpush1.msra.mxu0 %v3340
    %3342 = vmatprep.subr.mxu0 0.0
    %v3343 = vand.u32 %v2432, 4294901760
    %3344 = vmatpush1.msra.mxu0 %v3343
    %3345 = vmatprep.subr.mxu0 0.0
    %v3346 = vand.u32 %v2433, 4294901760
    %3347 = vmatpush1.msra.mxu0 %v3346
    %3348 = vmatprep.subr.mxu0 0.0
    %v3349 = vand.u32 %v2434, 4294901760
    %3350 = vmatpush1.msra.mxu0 %v3349
    %3351 = vmatprep.subr.mxu0 0.0
    %v3352 = vand.u32 %v2435, 4294901760
    %3353 = vmatpush1.msra.mxu0 %v3352
    %3354 = vmatprep.subr.mxu0 0.0
    %v3355 = vand.u32 %v2436, 4294901760
    %3356 = vmatpush1.msra.mxu0 %v3355
    %3357 = vmatprep.subr.mxu0 0.0
    %v3358 = vand.u32 %v2437, 4294901760
    %3359 = vmatpush1.msra.mxu0 %v3358
    %3360 = vmatprep.subr.mxu0 0.0
    %v3361 = vand.u32 %v2438, 4294901760
    %3362 = vmatpush1.msra.mxu0 %v3361
    %3363 = vmatprep.subr.mxu0 0.0
    %v3364 = vand.u32 %v2439, 4294901760
    %3365 = vmatpush1.msra.mxu0 %v3364
    %3366 = vmatprep.subr.mxu0 0.0
    %3367 = vmatpush1.msra.mxu0 0.0
    %3368 = vmatprep.subr.mxu0 0.0
    %3369 = vmatpush1.msra.mxu0 0.0
    %3370 = vmatprep.subr.mxu0 0.0
    %3371 = vmatpush1.msra.mxu0 0.0
    %3372 = vmatprep.subr.mxu0 0.0
    %3373 = vmatpush1.msra.mxu0 0.0
    %3374 = vmatprep.subr.mxu0 0.0
    %3375 = vmatpush1.msra.mxu0 0.0
    %3376 = vmatprep.subr.mxu0 0.0
    %3377 = vmatpush1.msra.mxu0 0.0
    %3378 = vmatprep.subr.mxu0 0.0
    %3379 = vmatpush1.msra.mxu0 0.0
    %3380 = vmatprep.subr.mxu0 0.0
    %3381 = vmatpush1.msra.mxu0 0.0
    %3382 = vmatprep.subr.mxu0 0.0
    %3383 = vmatpush1.msra.mxu0 0.0
    %3384 = vmatprep.subr.mxu0 0.0
    %3385 = vmatpush1.msra.mxu0 0.0
    %3386 = vmatprep.subr.mxu0 0.0
    %3387 = vmatpush1.msra.mxu0 0.0
    %3388 = vmatprep.subr.mxu0 0.0
    %3389 = vmatpush1.msra.mxu0 0.0
    %3390 = vmatprep.subr.mxu0 0.0
    %3391 = vmatpush1.msra.mxu0 0.0
    %3392 = vmatprep.subr.mxu0 0.0
    %3393 = vmatpush1.msra.mxu0 0.0
    %3394 = vmatprep.subr.mxu0 0.0
    %3395 = vmatpush1.msra.mxu0 0.0
    %3396 = vmatprep.subr.mxu0 0.0
    %3397 = vmatpush1.msra.mxu0 0.0
    %3398 = vmatprep.mubr.f32.mxu0 0.0
    %v3399 = vand.u32 %v2447, 4294901760
    %v3400 = vsub.f32 %v2447, %v3399
    %v3401 = vand.u32 %v3400, 4294901760
    %v3402 = vsub.f32 %v3400, %v3401
    %v3403 = vand.u32 %v3402, 4294901760
    %3404 = vmatmul.mubr.f32.gmra.mrb[0].mxu0 %v3403
    %v3405 = vpop.f32.mrb[0].mxu0
    %v3406 = vadd.f32 %v3315, %v3405
    %v3407 = vpop.f32.mrb[0].mxu0
    %3408 = vdwg.mxu0
    %3409 = vmatprep.subr.mxu0 0.0
    %v3410 = vand.u32 %v2424, 4294901760
    %v3411 = vsub.f32 %v2424, %v3410
    %v3412 = vand.u32 %v3411, 4294901760
    %v3413 = vsub.f32 %v3411, %v3412
    %v3414 = vand.u32 %v3413, 4294901760
    %3415 = vmatpush1.msra.mxu0 %v3414
    %3416 = vmatprep.subr.mxu0 0.0
    %v3417 = vand.u32 %v2425, 4294901760
    %v3418 = vsub.f32 %v2425, %v3417
    %v3419 = vand.u32 %v3418, 4294901760
    %v3420 = vsub.f32 %v3418, %v3419
    %v3421 = vand.u32 %v3420, 4294901760
    %3422 = vmatpush1.msra.mxu0 %v3421
    %3423 = vmatprep.subr.mxu0 0.0
    %v3424 = vand.u32 %v2426, 4294901760
    %v3425 = vsub.f32 %v2426, %v3424
    %v3426 = vand.u32 %v3425, 4294901760
    %v3427 = vsub.f32 %v3425, %v3426
    %v3428 = vand.u32 %v3427, 4294901760
    %3429 = vmatpush1.msra.mxu0 %v3428
    %3430 = vmatprep.subr.mxu0 0.0
    %v3431 = vand.u32 %v2427, 4294901760
    %v3432 = vsub.f32 %v2427, %v3431
    %v3433 = vand.u32 %v3432, 4294901760
    %v3434 = vsub.f32 %v3432, %v3433
    %v3435 = vand.u32 %v3434, 4294901760
    %3436 = vmatpush1.msra.mxu0 %v3435
    %3437 = vmatprep.subr.mxu0 0.0
    %v3438 = vand.u32 %v2428, 4294901760
    %v3439 = vsub.f32 %v2428, %v3438
    %v3440 = vand.u32 %v3439, 4294901760
    %v3441 = vsub.f32 %v3439, %v3440
    %v3442 = vand.u32 %v3441, 4294901760
    %3443 = vmatpush1.msra.mxu0 %v3442
    %3444 = vmatprep.subr.mxu0 0.0
    %v3445 = vand.u32 %v2429, 4294901760
    %v3446 = vsub.f32 %v2429, %v3445
    %v3447 = vand.u32 %v3446, 4294901760
    %v3448 = vsub.f32 %v3446, %v3447
    %v3449 = vand.u32 %v3448, 4294901760
    %3450 = vmatpush1.msra.mxu0 %v3449
    %3451 = vmatprep.subr.mxu0 0.0
    %v3452 = vand.u32 %v2430, 4294901760
    %v3453 = vsub.f32 %v2430, %v3452
    %v3454 = vand.u32 %v3453, 4294901760
    %v3455 = vsub.f32 %v3453, %v3454
    %v3456 = vand.u32 %v3455, 4294901760
    %3457 = vmatpush1.msra.mxu0 %v3456
    %3458 = vmatprep.subr.mxu0 0.0
    %v3459 = vand.u32 %v2431, 4294901760
    %v3460 = vsub.f32 %v2431, %v3459
    %v3461 = vand.u32 %v3460, 4294901760
    %v3462 = vsub.f32 %v3460, %v3461
    %v3463 = vand.u32 %v3462, 4294901760
    %3464 = vmatpush1.msra.mxu0 %v3463
    %3465 = vmatprep.subr.mxu0 0.0
    %v3466 = vand.u32 %v2432, 4294901760
    %v3467 = vsub.f32 %v2432, %v3466
    %v3468 = vand.u32 %v3467, 4294901760
    %v3469 = vsub.f32 %v3467, %v3468
    %v3470 = vand.u32 %v3469, 4294901760
    %3471 = vmatpush1.msra.mxu0 %v3470
    %3472 = vmatprep.subr.mxu0 0.0
    %v3473 = vand.u32 %v2433, 4294901760
    %v3474 = vsub.f32 %v2433, %v3473
    %v3475 = vand.u32 %v3474, 4294901760
    %v3476 = vsub.f32 %v3474, %v3475
    %v3477 = vand.u32 %v3476, 4294901760
    %3478 = vmatpush1.msra.mxu0 %v3477
    %3479 = vmatprep.subr.mxu0 0.0
    %v3480 = vand.u32 %v2434, 4294901760
    %v3481 = vsub.f32 %v2434, %v3480
    %v3482 = vand.u32 %v3481, 4294901760
    %v3483 = vsub.f32 %v3481, %v3482
    %v3484 = vand.u32 %v3483, 4294901760
    %3485 = vmatpush1.msra.mxu0 %v3484
    %3486 = vmatprep.subr.mxu0 0.0
    %v3487 = vand.u32 %v2435, 4294901760
    %v3488 = vsub.f32 %v2435, %v3487
    %v3489 = vand.u32 %v3488, 4294901760
    %v3490 = vsub.f32 %v3488, %v3489
    %v3491 = vand.u32 %v3490, 4294901760
    %3492 = vmatpush1.msra.mxu0 %v3491
    %3493 = vmatprep.subr.mxu0 0.0
    %v3494 = vand.u32 %v2436, 4294901760
    %v3495 = vsub.f32 %v2436, %v3494
    %v3496 = vand.u32 %v3495, 4294901760
    %v3497 = vsub.f32 %v3495, %v3496
    %v3498 = vand.u32 %v3497, 4294901760
    %3499 = vmatpush1.msra.mxu0 %v3498
    %3500 = vmatprep.subr.mxu0 0.0
    %v3501 = vand.u32 %v2437, 4294901760
    %v3502 = vsub.f32 %v2437, %v3501
    %v3503 = vand.u32 %v3502, 4294901760
    %v3504 = vsub.f32 %v3502, %v3503
    %v3505 = vand.u32 %v3504, 4294901760
    %3506 = vmatpush1.msra.mxu0 %v3505
    %3507 = vmatprep.subr.mxu0 0.0
    %v3508 = vand.u32 %v2438, 4294901760
    %v3509 = vsub.f32 %v2438, %v3508
    %v3510 = vand.u32 %v3509, 4294901760
    %v3511 = vsub.f32 %v3509, %v3510
    %v3512 = vand.u32 %v3511, 4294901760
    %3513 = vmatpush1.msra.mxu0 %v3512
    %3514 = vmatprep.subr.mxu0 0.0
    %v3515 = vand.u32 %v2439, 4294901760
    %v3516 = vsub.f32 %v2439, %v3515
    %v3517 = vand.u32 %v3516, 4294901760
    %v3518 = vsub.f32 %v3516, %v3517
    %v3519 = vand.u32 %v3518, 4294901760
    %3520 = vmatpush1.msra.mxu0 %v3519
    %3521 = vmatprep.subr.mxu0 0.0
    %3522 = vmatpush1.msra.mxu0 0.0
    %3523 = vmatprep.subr.mxu0 0.0
    %3524 = vmatpush1.msra.mxu0 0.0
    %3525 = vmatprep.subr.mxu0 0.0
    %3526 = vmatpush1.msra.mxu0 0.0
    %3527 = vmatprep.subr.mxu0 0.0
    %3528 = vmatpush1.msra.mxu0 0.0
    %3529 = vmatprep.subr.mxu0 0.0
    %3530 = vmatpush1.msra.mxu0 0.0
    %3531 = vmatprep.subr.mxu0 0.0
    %3532 = vmatpush1.msra.mxu0 0.0
    %3533 = vmatprep.subr.mxu0 0.0
    %3534 = vmatpush1.msra.mxu0 0.0
    %3535 = vmatprep.subr.mxu0 0.0
    %3536 = vmatpush1.msra.mxu0 0.0
    %3537 = vmatprep.subr.mxu0 0.0
    %3538 = vmatpush1.msra.mxu0 0.0
    %3539 = vmatprep.subr.mxu0 0.0
    %3540 = vmatpush1.msra.mxu0 0.0
    %3541 = vmatprep.subr.mxu0 0.0
    %3542 = vmatpush1.msra.mxu0 0.0
    %3543 = vmatprep.subr.mxu0 0.0
    %3544 = vmatpush1.msra.mxu0 0.0
    %3545 = vmatprep.subr.mxu0 0.0
    %3546 = vmatpush1.msra.mxu0 0.0
    %3547 = vmatprep.subr.mxu0 0.0
    %3548 = vmatpush1.msra.mxu0 0.0
    %3549 = vmatprep.subr.mxu0 0.0
    %3550 = vmatpush1.msra.mxu0 0.0
    %3551 = vmatprep.subr.mxu0 0.0
    %3552 = vmatpush1.msra.mxu0 0.0
    %3553 = vmatprep.mubr.f32.mxu0 0.0
    %v3554 = vand.u32 %v2447, 4294901760
    %3555 = vmatmul.mubr.f32.gmra.mrb[0].mxu0 %v3554
    %v3556 = vpop.f32.mrb[0].mxu0
    %v3557 = vadd.f32 %v3406, %v3556
    %v3558 = vpop.f32.mrb[0].mxu0
    %3559 = vdwg.mxu0
    %3560 = vmatprep.subr.mxu0 0.0
    %v3561 = vand.u32 %v2424, 4294901760
    %v3562 = vsub.f32 %v2424, %v3561
    %3563 = vmatpush1.msra.mxu0 %v3562
    %3564 = vmatprep.subr.mxu0 0.0
    %v3565 = vand.u32 %v2425, 4294901760
    %v3566 = vsub.f32 %v2425, %v3565
    %3567 = vmatpush1.msra.mxu0 %v3566
    %3568 = vmatprep.subr.mxu0 0.0
    %v3569 = vand.u32 %v2426, 4294901760
    %v3570 = vsub.f32 %v2426, %v3569
    %3571 = vmatpush1.msra.mxu0 %v3570
    %3572 = vmatprep.subr.mxu0 0.0
    %v3573 = vand.u32 %v2427, 4294901760
    %v3574 = vsub.f32 %v2427, %v3573
    %3575 = vmatpush1.msra.mxu0 %v3574
    %3576 = vmatprep.subr.mxu0 0.0
    %v3577 = vand.u32 %v2428, 4294901760
    %v3578 = vsub.f32 %v2428, %v3577
    %3579 = vmatpush1.msra.mxu0 %v3578
    %3580 = vmatprep.subr.mxu0 0.0
    %v3581 = vand.u32 %v2429, 4294901760
    %v3582 = vsub.f32 %v2429, %v3581
    %3583 = vmatpush1.msra.mxu0 %v3582
    %3584 = vmatprep.subr.mxu0 0.0
    %v3585 = vand.u32 %v2430, 4294901760
    %v3586 = vsub.f32 %v2430, %v3585
    %3587 = vmatpush1.msra.mxu0 %v3586
    %3588 = vmatprep.subr.mxu0 0.0
    %v3589 = vand.u32 %v2431, 4294901760
    %v3590 = vsub.f32 %v2431, %v3589
    %3591 = vmatpush1.msra.mxu0 %v3590
    %3592 = vmatprep.subr.mxu0 0.0
    %v3593 = vand.u32 %v2432, 4294901760
    %v3594 = vsub.f32 %v2432, %v3593
    %3595 = vmatpush1.msra.mxu0 %v3594
    %3596 = vmatprep.subr.mxu0 0.0
    %v3597 = vand.u32 %v2433, 4294901760
    %v3598 = vsub.f32 %v2433, %v3597
    %3599 = vmatpush1.msra.mxu0 %v3598
    %3600 = vmatprep.subr.mxu0 0.0
    %v3601 = vand.u32 %v2434, 4294901760
    %v3602 = vsub.f32 %v2434, %v3601
    %3603 = vmatpush1.msra.mxu0 %v3602
    %3604 = vmatprep.subr.mxu0 0.0
    %v3605 = vand.u32 %v2435, 4294901760
    %v3606 = vsub.f32 %v2435, %v3605
    %3607 = vmatpush1.msra.mxu0 %v3606
    %3608 = vmatprep.subr.mxu0 0.0
    %v3609 = vand.u32 %v2436, 4294901760
    %v3610 = vsub.f32 %v2436, %v3609
    %3611 = vmatpush1.msra.mxu0 %v3610
    %3612 = vmatprep.subr.mxu0 0.0
    %v3613 = vand.u32 %v2437, 4294901760
    %v3614 = vsub.f32 %v2437, %v3613
    %3615 = vmatpush1.msra.mxu0 %v3614
    %3616 = vmatprep.subr.mxu0 0.0
    %v3617 = vand.u32 %v2438, 4294901760
    %v3618 = vsub.f32 %v2438, %v3617
    %3619 = vmatpush1.msra.mxu0 %v3618
    %3620 = vmatprep.subr.mxu0 0.0
    %v3621 = vand.u32 %v2439, 4294901760
    %v3622 = vsub.f32 %v2439, %v3621
    %3623 = vmatpush1.msra.mxu0 %v3622
    %3624 = vmatprep.subr.mxu0 0.0
    %3625 = vmatpush1.msra.mxu0 0.0
    %3626 = vmatprep.subr.mxu0 0.0
    %3627 = vmatpush1.msra.mxu0 0.0
    %3628 = vmatprep.subr.mxu0 0.0
    %3629 = vmatpush1.msra.mxu0 0.0
    %3630 = vmatprep.subr.mxu0 0.0
    %3631 = vmatpush1.msra.mxu0 0.0
    %3632 = vmatprep.subr.mxu0 0.0
    %3633 = vmatpush1.msra.mxu0 0.0
    %3634 = vmatprep.subr.mxu0 0.0
    %3635 = vmatpush1.msra.mxu0 0.0
    %3636 = vmatprep.subr.mxu0 0.0
    %3637 = vmatpush1.msra.mxu0 0.0
    %3638 = vmatprep.subr.mxu0 0.0
    %3639 = vmatpush1.msra.mxu0 0.0
    %3640 = vmatprep.subr.mxu0 0.0
    %3641 = vmatpush1.msra.mxu0 0.0
    %3642 = vmatprep.subr.mxu0 0.0
    %3643 = vmatpush1.msra.mxu0 0.0
    %3644 = vmatprep.subr.mxu0 0.0
    %3645 = vmatpush1.msra.mxu0 0.0
    %3646 = vmatprep.subr.mxu0 0.0
    %3647 = vmatpush1.msra.mxu0 0.0
    %3648 = vmatprep.subr.mxu0 0.0
    %3649 = vmatpush1.msra.mxu0 0.0
    %3650 = vmatprep.subr.mxu0 0.0
    %3651 = vmatpush1.msra.mxu0 0.0
    %3652 = vmatprep.subr.mxu0 0.0
    %3653 = vmatpush1.msra.mxu0 0.0
    %3654 = vmatprep.subr.mxu0 0.0
    %3655 = vmatpush1.msra.mxu0 0.0
    %3656 = vmatprep.mubr.f32.mxu0 0.0
    %v3657 = vand.u32 %v2447, 4294901760
    %v3658 = vsub.f32 %v2447, %v3657
    %3659 = vmatmul.mubr.f32.gmra.mrb[0].mxu0 %v3658
    %v3660 = vpop.f32.mrb[0].mxu0
    %v3661 = vadd.f32 %v3557, %v3660
    %v3662 = vpop.f32.mrb[0].mxu0
    %3663 = vdwg.mxu0
    %3664 = vmatprep.subr.mxu0 0.0
    %v3665 = vand.u32 %v2424, 4294901760
    %3666 = vmatpush1.msra.mxu0 %v3665
    %3667 = vmatprep.subr.mxu0 0.0
    %v3668 = vand.u32 %v2425, 4294901760
    %3669 = vmatpush1.msra.mxu0 %v3668
    %3670 = vmatprep.subr.mxu0 0.0
    %v3671 = vand.u32 %v2426, 4294901760
    %3672 = vmatpush1.msra.mxu0 %v3671
    %3673 = vmatprep.subr.mxu0 0.0
    %v3674 = vand.u32 %v2427, 4294901760
    %3675 = vmatpush1.msra.mxu0 %v3674
    %3676 = vmatprep.subr.mxu0 0.0
    %v3677 = vand.u32 %v2428, 4294901760
    %3678 = vmatpush1.msra.mxu0 %v3677
    %3679 = vmatprep.subr.mxu0 0.0
    %v3680 = vand.u32 %v2429, 4294901760
    %3681 = vmatpush1.msra.mxu0 %v3680
    %3682 = vmatprep.subr.mxu0 0.0
    %v3683 = vand.u32 %v2430, 4294901760
    %3684 = vmatpush1.msra.mxu0 %v3683
    %3685 = vmatprep.subr.mxu0 0.0
    %v3686 = vand.u32 %v2431, 4294901760
    %3687 = vmatpush1.msra.mxu0 %v3686
    %3688 = vmatprep.subr.mxu0 0.0
    %v3689 = vand.u32 %v2432, 4294901760
    %3690 = vmatpush1.msra.mxu0 %v3689
    %3691 = vmatprep.subr.mxu0 0.0
    %v3692 = vand.u32 %v2433, 4294901760
    %3693 = vmatpush1.msra.mxu0 %v3692
    %3694 = vmatprep.subr.mxu0 0.0
    %v3695 = vand.u32 %v2434, 4294901760
    %3696 = vmatpush1.msra.mxu0 %v3695
    %3697 = vmatprep.subr.mxu0 0.0
    %v3698 = vand.u32 %v2435, 4294901760
    %3699 = vmatpush1.msra.mxu0 %v3698
    %3700 = vmatprep.subr.mxu0 0.0
    %v3701 = vand.u32 %v2436, 4294901760
    %3702 = vmatpush1.msra.mxu0 %v3701
    %3703 = vmatprep.subr.mxu0 0.0
    %v3704 = vand.u32 %v2437, 4294901760
    %3705 = vmatpush1.msra.mxu0 %v3704
    %3706 = vmatprep.subr.mxu0 0.0
    %v3707 = vand.u32 %v2438, 4294901760
    %3708 = vmatpush1.msra.mxu0 %v3707
    %3709 = vmatprep.subr.mxu0 0.0
    %v3710 = vand.u32 %v2439, 4294901760
    %3711 = vmatpush1.msra.mxu0 %v3710
    %3712 = vmatprep.subr.mxu0 0.0
    %3713 = vmatpush1.msra.mxu0 0.0
    %3714 = vmatprep.subr.mxu0 0.0
    %3715 = vmatpush1.msra.mxu0 0.0
    %3716 = vmatprep.subr.mxu0 0.0
    %3717 = vmatpush1.msra.mxu0 0.0
    %3718 = vmatprep.subr.mxu0 0.0
    %3719 = vmatpush1.msra.mxu0 0.0
    %3720 = vmatprep.subr.mxu0 0.0
    %3721 = vmatpush1.msra.mxu0 0.0
    %3722 = vmatprep.subr.mxu0 0.0
    %3723 = vmatpush1.msra.mxu0 0.0
    %3724 = vmatprep.subr.mxu0 0.0
    %3725 = vmatpush1.msra.mxu0 0.0
    %3726 = vmatprep.subr.mxu0 0.0
    %3727 = vmatpush1.msra.mxu0 0.0
    %3728 = vmatprep.subr.mxu0 0.0
    %3729 = vmatpush1.msra.mxu0 0.0
    %3730 = vmatprep.subr.mxu0 0.0
    %3731 = vmatpush1.msra.mxu0 0.0
    %3732 = vmatprep.subr.mxu0 0.0
    %3733 = vmatpush1.msra.mxu0 0.0
    %3734 = vmatprep.subr.mxu0 0.0
    %3735 = vmatpush1.msra.mxu0 0.0
    %3736 = vmatprep.subr.mxu0 0.0
    %3737 = vmatpush1.msra.mxu0 0.0
    %3738 = vmatprep.subr.mxu0 0.0
    %3739 = vmatpush1.msra.mxu0 0.0
    %3740 = vmatprep.subr.mxu0 0.0
    %3741 = vmatpush1.msra.mxu0 0.0
    %3742 = vmatprep.subr.mxu0 0.0
    %3743 = vmatpush1.msra.mxu0 0.0
    %3744 = vmatprep.mubr.f32.mxu0 0.0
    %v3745 = vand.u32 %v2447, 4294901760
    %v3746 = vsub.f32 %v2447, %v3745
    %v3747 = vand.u32 %v3746, 4294901760
    %3748 = vmatmul.mubr.f32.gmra.mrb[0].mxu0 %v3747
    %v3749 = vpop.f32.mrb[0].mxu0
    %v3750 = vadd.f32 %v3661, %v3749
    %v3751 = vpop.f32.mrb[0].mxu0
    %3752 = vdwg.mxu0
    %3753 = vmatprep.subr.mxu0 0.0
    %v3754 = vand.u32 %v2424, 4294901760
    %v3755 = vsub.f32 %v2424, %v3754
    %v3756 = vand.u32 %v3755, 4294901760
    %3757 = vmatpush1.msra.mxu0 %v3756
    %3758 = vmatprep.subr.mxu0 0.0
    %v3759 = vand.u32 %v2425, 4294901760
    %v3760 = vsub.f32 %v2425, %v3759
    %v3761 = vand.u32 %v3760, 4294901760
    %3762 = vmatpush1.msra.mxu0 %v3761
    %3763 = vmatprep.subr.mxu0 0.0
    %v3764 = vand.u32 %v2426, 4294901760
    %v3765 = vsub.f32 %v2426, %v3764
    %v3766 = vand.u32 %v3765, 4294901760
    %3767 = vmatpush1.msra.mxu0 %v3766
    %3768 = vmatprep.subr.mxu0 0.0
    %v3769 = vand.u32 %v2427, 4294901760
    %v3770 = vsub.f32 %v2427, %v3769
    %v3771 = vand.u32 %v3770, 4294901760
    %3772 = vmatpush1.msra.mxu0 %v3771
    %3773 = vmatprep.subr.mxu0 0.0
    %v3774 = vand.u32 %v2428, 4294901760
    %v3775 = vsub.f32 %v2428, %v3774
    %v3776 = vand.u32 %v3775, 4294901760
    %3777 = vmatpush1.msra.mxu0 %v3776
    %3778 = vmatprep.subr.mxu0 0.0
    %v3779 = vand.u32 %v2429, 4294901760
    %v3780 = vsub.f32 %v2429, %v3779
    %v3781 = vand.u32 %v3780, 4294901760
    %3782 = vmatpush1.msra.mxu0 %v3781
    %3783 = vmatprep.subr.mxu0 0.0
    %v3784 = vand.u32 %v2430, 4294901760
    %v3785 = vsub.f32 %v2430, %v3784
    %v3786 = vand.u32 %v3785, 4294901760
    %3787 = vmatpush1.msra.mxu0 %v3786
    %3788 = vmatprep.subr.mxu0 0.0
    %v3789 = vand.u32 %v2431, 4294901760
    %v3790 = vsub.f32 %v2431, %v3789
    %v3791 = vand.u32 %v3790, 4294901760
    %3792 = vmatpush1.msra.mxu0 %v3791
    %3793 = vmatprep.subr.mxu0 0.0
    %v3794 = vand.u32 %v2432, 4294901760
    %v3795 = vsub.f32 %v2432, %v3794
    %v3796 = vand.u32 %v3795, 4294901760
    %3797 = vmatpush1.msra.mxu0 %v3796
    %3798 = vmatprep.subr.mxu0 0.0
    %v3799 = vand.u32 %v2433, 4294901760
    %v3800 = vsub.f32 %v2433, %v3799
    %v3801 = vand.u32 %v3800, 4294901760
    %3802 = vmatpush1.msra.mxu0 %v3801
    %3803 = vmatprep.subr.mxu0 0.0
    %v3804 = vand.u32 %v2434, 4294901760
    %v3805 = vsub.f32 %v2434, %v3804
    %v3806 = vand.u32 %v3805, 4294901760
    %3807 = vmatpush1.msra.mxu0 %v3806
    %3808 = vmatprep.subr.mxu0 0.0
    %v3809 = vand.u32 %v2435, 4294901760
    %v3810 = vsub.f32 %v2435, %v3809
    %v3811 = vand.u32 %v3810, 4294901760
    %3812 = vmatpush1.msra.mxu0 %v3811
    %3813 = vmatprep.subr.mxu0 0.0
    %v3814 = vand.u32 %v2436, 4294901760
    %v3815 = vsub.f32 %v2436, %v3814
    %v3816 = vand.u32 %v3815, 4294901760
    %3817 = vmatpush1.msra.mxu0 %v3816
    %3818 = vmatprep.subr.mxu0 0.0
    %v3819 = vand.u32 %v2437, 4294901760
    %v3820 = vsub.f32 %v2437, %v3819
    %v3821 = vand.u32 %v3820, 4294901760
    %3822 = vmatpush1.msra.mxu0 %v3821
    %3823 = vmatprep.subr.mxu0 0.0
    %v3824 = vand.u32 %v2438, 4294901760
    %v3825 = vsub.f32 %v2438, %v3824
    %v3826 = vand.u32 %v3825, 4294901760
    %3827 = vmatpush1.msra.mxu0 %v3826
    %3828 = vmatprep.subr.mxu0 0.0
    %v3829 = vand.u32 %v2439, 4294901760
    %v3830 = vsub.f32 %v2439, %v3829
    %v3831 = vand.u32 %v3830, 4294901760
    %3832 = vmatpush1.msra.mxu0 %v3831
    %3833 = vmatprep.subr.mxu0 0.0
    %3834 = vmatpush1.msra.mxu0 0.0
    %3835 = vmatprep.subr.mxu0 0.0
    %3836 = vmatpush1.msra.mxu0 0.0
    %3837 = vmatprep.subr.mxu0 0.0
    %3838 = vmatpush1.msra.mxu0 0.0
    %3839 = vmatprep.subr.mxu0 0.0
    %3840 = vmatpush1.msra.mxu0 0.0
    %3841 = vmatprep.subr.mxu0 0.0
    %3842 = vmatpush1.msra.mxu0 0.0
    %3843 = vmatprep.subr.mxu0 0.0
    %3844 = vmatpush1.msra.mxu0 0.0
    %3845 = vmatprep.subr.mxu0 0.0
    %3846 = vmatpush1.msra.mxu0 0.0
    %3847 = vmatprep.subr.mxu0 0.0
    %3848 = vmatpush1.msra.mxu0 0.0
    %3849 = vmatprep.subr.mxu0 0.0
    %3850 = vmatpush1.msra.mxu0 0.0
    %3851 = vmatprep.subr.mxu0 0.0
    %3852 = vmatpush1.msra.mxu0 0.0
    %3853 = vmatprep.subr.mxu0 0.0
    %3854 = vmatpush1.msra.mxu0 0.0
    %3855 = vmatprep.subr.mxu0 0.0
    %3856 = vmatpush1.msra.mxu0 0.0
    %3857 = vmatprep.subr.mxu0 0.0
    %3858 = vmatpush1.msra.mxu0 0.0
    %3859 = vmatprep.subr.mxu0 0.0
    %3860 = vmatpush1.msra.mxu0 0.0
    %3861 = vmatprep.subr.mxu0 0.0
    %3862 = vmatpush1.msra.mxu0 0.0
    %3863 = vmatprep.subr.mxu0 0.0
    %3864 = vmatpush1.msra.mxu0 0.0
    %3865 = vmatprep.mubr.f32.mxu0 0.0
    %v3866 = vand.u32 %v2447, 4294901760
    %3867 = vmatmul.mubr.f32.gmra.mrb[0].mxu0 %v3866
    %v3868 = vpop.f32.mrb[0].mxu0
    %v3869 = vadd.f32 %v3750, %v3868
    %v3870 = vpop.f32.mrb[0].mxu0
    %3871 = vdwg.mxu0
    %3872 = vmatprep.subr.mxu0 0.0
    %v3873 = vand.u32 %v2424, 4294901760
    %3874 = vmatpush1.msra.mxu0 %v3873
    %3875 = vmatprep.subr.mxu0 0.0
    %v3876 = vand.u32 %v2425, 4294901760
    %3877 = vmatpush1.msra.mxu0 %v3876
    %3878 = vmatprep.subr.mxu0 0.0
    %v3879 = vand.u32 %v2426, 4294901760
    %3880 = vmatpush1.msra.mxu0 %v3879
    %3881 = vmatprep.subr.mxu0 0.0
    %v3882 = vand.u32 %v2427, 4294901760
    %3883 = vmatpush1.msra.mxu0 %v3882
    %3884 = vmatprep.subr.mxu0 0.0
    %v3885 = vand.u32 %v2428, 4294901760
    %3886 = vmatpush1.msra.mxu0 %v3885
    %3887 = vmatprep.subr.mxu0 0.0
    %v3888 = vand.u32 %v2429, 4294901760
    %3889 = vmatpush1.msra.mxu0 %v3888
    %3890 = vmatprep.subr.mxu0 0.0
    %v3891 = vand.u32 %v2430, 4294901760
    %3892 = vmatpush1.msra.mxu0 %v3891
    %3893 = vmatprep.subr.mxu0 0.0
    %v3894 = vand.u32 %v2431, 4294901760
    %3895 = vmatpush1.msra.mxu0 %v3894
    %3896 = vmatprep.subr.mxu0 0.0
    %v3897 = vand.u32 %v2432, 4294901760
    %3898 = vmatpush1.msra.mxu0 %v3897
    %3899 = vmatprep.subr.mxu0 0.0
    %v3900 = vand.u32 %v2433, 4294901760
    %3901 = vmatpush1.msra.mxu0 %v3900
    %3902 = vmatprep.subr.mxu0 0.0
    %v3903 = vand.u32 %v2434, 4294901760
    %3904 = vmatpush1.msra.mxu0 %v3903
    %3905 = vmatprep.subr.mxu0 0.0
    %v3906 = vand.u32 %v2435, 4294901760
    %3907 = vmatpush1.msra.mxu0 %v3906
    %3908 = vmatprep.subr.mxu0 0.0
    %v3909 = vand.u32 %v2436, 4294901760
    %3910 = vmatpush1.msra.mxu0 %v3909
    %3911 = vmatprep.subr.mxu0 0.0
    %v3912 = vand.u32 %v2437, 4294901760
    %3913 = vmatpush1.msra.mxu0 %v3912
    %3914 = vmatprep.subr.mxu0 0.0
    %v3915 = vand.u32 %v2438, 4294901760
    %3916 = vmatpush1.msra.mxu0 %v3915
    %3917 = vmatprep.subr.mxu0 0.0
    %v3918 = vand.u32 %v2439, 4294901760
    %3919 = vmatpush1.msra.mxu0 %v3918
    %3920 = vmatprep.subr.mxu0 0.0
    %3921 = vmatpush1.msra.mxu0 0.0
    %3922 = vmatprep.subr.mxu0 0.0
    %3923 = vmatpush1.msra.mxu0 0.0
    %3924 = vmatprep.subr.mxu0 0.0
    %3925 = vmatpush1.msra.mxu0 0.0
    %3926 = vmatprep.subr.mxu0 0.0
    %3927 = vmatpush1.msra.mxu0 0.0
    %3928 = vmatprep.subr.mxu0 0.0
    %3929 = vmatpush1.msra.mxu0 0.0
    %3930 = vmatprep.subr.mxu0 0.0
    %3931 = vmatpush1.msra.mxu0 0.0
    %3932 = vmatprep.subr.mxu0 0.0
    %3933 = vmatpush1.msra.mxu0 0.0
    %3934 = vmatprep.subr.mxu0 0.0
    %3935 = vmatpush1.msra.mxu0 0.0
    %3936 = vmatprep.subr.mxu0 0.0
    %3937 = vmatpush1.msra.mxu0 0.0
    %3938 = vmatprep.subr.mxu0 0.0
    %3939 = vmatpush1.msra.mxu0 0.0
    %3940 = vmatprep.subr.mxu0 0.0
    %3941 = vmatpush1.msra.mxu0 0.0
    %3942 = vmatprep.subr.mxu0 0.0
    %3943 = vmatpush1.msra.mxu0 0.0
    %3944 = vmatprep.subr.mxu0 0.0
    %3945 = vmatpush1.msra.mxu0 0.0
    %3946 = vmatprep.subr.mxu0 0.0
    %3947 = vmatpush1.msra.mxu0 0.0
    %3948 = vmatprep.subr.mxu0 0.0
    %3949 = vmatpush1.msra.mxu0 0.0
    %3950 = vmatprep.subr.mxu0 0.0
    %3951 = vmatpush1.msra.mxu0 0.0
    %3952 = vmatprep.mubr.f32.mxu0 0.0
    %v3953 = vand.u32 %v2447, 4294901760
    %3954 = vmatmul.mubr.f32.gmra.mrb[0].mxu0 %v3953
    %v3955 = vpop.f32.mrb[0].mxu0
    %v3956 = vadd.f32 %v3869, %v3955
    %v3957 = vpop.f32.mrb[0].mxu0
    %3958 = vdwg.mxu0
    %v3959 = vlaneseq
    %v3960 = vshrl.u32 %v3959, 7
    %v3961 = vsub.s32 1, %v3960
    %v3962 = vrot.slane %v2440, %v3961
    %v3963 = vadd.f32 %v3956, %v3962
    %v3964 = vtanh.pop %v3963
    %vm3965 = vcmask 195584
    %3966 = vst.msk [vmem:[#allocation2] sm:$0xff] %vm3965, %v3964
    // Predicated region
    $region26: #{one_gnn_forward.1} parent=1 // pred_check
      _
    $region27: #{one_gnn_forward.1} parent=1 // pred_check_branch
      %3968 = sbr.rel (0) target = $region29
    $region28: #{one_gnn_forward.1} parent=1 // pred_region
      %s3970 = ssub.s32 128, 128
      %3971 = vsyncadd [#allocation3], %s3970
      %s3973 = sshll.u32 [#allocation2], 4
      %s3974 = int_to_ptr.vmem [resolvable:$true] %s3973
      %3976 = dma.vmem_to_hbm [thread:$0]  %s3974, 128, %s6, [#allocation3]
    $region29: #{one_gnn_forward.1} parent=1 // pred_fallthru
      _
    // Predicated region
    $region30: #{one_gnn_forward.1} parent=1 // pred_check
      _
    $region31: #{one_gnn_forward.1} parent=1 // pred_check_branch
      %3978 = sbr.rel (0) target = $region33
    $region32: #{one_gnn_forward.1} parent=1 // pred_region
      %3979 = dma.done [#allocation3], 128
    $region33: #{one_gnn_forward.1} parent=1 // pred_fallthru
      _
    %3980 = vsyncpa [#allocation3], 1

</llo_original>
